<compile_context>
chip_gen: v5e
topology: v5e:2x2
jax: 0.10.0
libtpu: 0.0.40
codegen_flags: <defaults>
</compile_context>

<pallas_src>
import functools

import numpy as np
import jax
import jax.numpy as jnp
from jax import lax
from jax.experimental import pallas as pl
from jax.experimental.pallas import tpu as pltpu


# ----------------------------------------------------------------------------
# Kernel 1: conv trunk (conv1/2 + folded BN + ReLU, conv3 pre-activation) +
# lane-dense online max over points.  Grid = (B, N_tiles), reduction axis last.
# ----------------------------------------------------------------------------
def stn3d_conv_kernel(x_ref,                     # (1, C, TN)   f32
                      w1_ref, b1_ref,            # (64, C) bf16, (64, 1)  f32
                      w2_ref, b2_ref,            # (128, 64),    (128, 1)
                      w3_ref,                    # (1024, 128) bf16 (b3 deferred)
                      pooled_ref,                # (1, 1024, 1)  f32 (pre-b3/ReLU max)
                      acc_ref,                   # (1024, AL)    f32 scratch (lane-dense)
                      *, n_points):
    n_idx = pl.program_id(1)
    last = pl.num_programs(1) - 1

    @pl.when(n_idx == 0)
    def _init():
        acc_ref[...] = jnp.full(acc_ref.shape, -jnp.inf, dtype=acc_ref.dtype)

    x = x_ref[0].astype(jnp.bfloat16)                                   # (C, TN)

    # conv1 + bn1 + relu : (64, C) @ (C, TN) -> (64, TN)
    h = jnp.dot(w1_ref[...], x, preferred_element_type=jnp.float32)
    h = jnp.maximum(h + b1_ref[...], 0.0).astype(jnp.bfloat16)
    # conv2 + bn2 + relu : (128, 64) @ (64, TN) -> (128, TN)
    h = jnp.dot(w2_ref[...], h, preferred_element_type=jnp.float32)
    h = jnp.maximum(h + b2_ref[...], 0.0).astype(jnp.bfloat16)
    # conv3 (pre-bias, pre-ReLU): (1024, 128) @ (128, TN) -> (1024, TN) f32.
    # bn3 bias + ReLU commute with the max over points -> applied in the head.
    h = jnp.dot(w3_ref[...], h, preferred_element_type=jnp.float32)

    tn = h.shape[1]
    al = acc_ref.shape[1]

    def fold_max(valid_cols):
        # Fold the (1024, TN) tile into the lane-dense (1024, AL) running max
        # using full-width VPU maxima only (no per-tile XLU reduce, no
        # lane-sparse accumulator update).  `valid_cols` is a *static* int
        # (or None): only the slices overlapping the padded tail get masked,
        # fully-padded slices are skipped at trace time.
        m = acc_ref[...]
        for j in range(tn // al):
            lo = j * al
            if valid_cols is not None and lo >= valid_cols:
                continue                                   # entirely padded
            s = h[:, lo:lo + al]
            if valid_cols is not None and lo + al > valid_cols:
                col = lo + lax.broadcasted_iota(jnp.int32, s.shape, 1)
                s = jnp.where(col < valid_cols, s, -jnp.inf)
            m = jnp.maximum(m, s)
        acc_ref[...] = m

    rem = n_points % tn                                     # static
    if rem == 0:
        fold_max(None)
    else:
        @pl.when(n_idx != last)
        def _full_tile():
            fold_max(None)

        @pl.when(n_idx == last)
        def _ragged_tile():
            fold_max(rem)

    @pl.when(n_idx == last)
    def _finalize():
        # 128 -> 1 lane reduce + pooled store once per batch element.
        pooled_ref[...] = jnp.max(acc_ref[...], axis=1, keepdims=True)[None]


# ----------------------------------------------------------------------------
# Kernel 2: deferred conv3 bias + ReLU, then FC head (fc1/fc2/fc3 + folded BN
# + identity), batched over B.
# ----------------------------------------------------------------------------
def stn3d_head_kernel(g_ref,                     # (B, 1024) f32 (pre-b3/ReLU max)
                      b3_ref,                    # (1, 1024) f32 (folded bn3 bias)
                      wf1_ref, bf1_ref,          # (1024, 512) bf16, (1, 512) f32
                      wf2_ref, bf2_ref,          # (512, 256),       (1, 256)
                      wf3_ref, bf3_ref,          # (256, 9),         (1, 9) (+iden)
                      o_ref):                    # (B, 9) f32
    # Deferred conv3/bn3 bias + ReLU (commutes with the max over points).
    f = jnp.maximum(g_ref[...] + b3_ref[...], 0.0).astype(jnp.bfloat16)
    f = jnp.dot(f, wf1_ref[...], preferred_element_type=jnp.float32) + bf1_ref[...]
    f = jnp.maximum(f, 0.0).astype(jnp.bfloat16)
    f = jnp.dot(f, wf2_ref[...], preferred_element_type=jnp.float32) + bf2_ref[...]
    f = jnp.maximum(f, 0.0).astype(jnp.bfloat16)
    o_ref[...] = jnp.dot(f, wf3_ref[...], preferred_element_type=jnp.float32) + bf3_ref[...]


# ----------------------------------------------------------------------------
# Wrapper
# ----------------------------------------------------------------------------
@jax.jit
def stn3d_forward(x_bcn, params):
    """x_bcn: (B, C, N) float32, matching PyTorch Conv1d input layout."""
    B, C, N = x_bcn.shape
    (w1, b1, w2, b2, w3, b3, wf1, bf1, wf2, bf2, wf3, bf3) = params

    # N tile: a multiple of 128 (lane/MXU friendly), capped at 2048 so the
    # (1024, TN) f32 conv3 slab (~8 MiB) + buffers fits the VMEM budget on all
    # generations, including v7x's 64 MiB physical VMEM.  Small N: single tile.
    if N <= 128:
        TN = N
    else:
        TN = min(2048, (N // 128) * 128)
    NT = pl.cdiv(N, TN)
    AL = TN if TN < 128 else 128          # lane width of the running-max scratch

    conv_weights = (w1, b1, w2, b2, w3)   # b3 deferred to the head
    conv_flops = 2 * B * N * (C * 64 + 64 * 128 + 128 * 1024)
    conv_bytes = (x_bcn.size * x_bcn.dtype.itemsize
                  + sum(w.size * w.dtype.itemsize for w in conv_weights)
                  + B * 1024 * 4)

    def const_spec(shape):
        return pl.BlockSpec(shape, lambda b, n: (0,) * len(shape))

    pooled = pl.pallas_call(
        functools.partial(stn3d_conv_kernel, n_points=N),
        out_shape=jax.ShapeDtypeStruct((B, 1024, 1), jnp.float32),
        grid_spec=pltpu.PrefetchScalarGridSpec(
            num_scalar_prefetch=0,
            grid=(B, NT),                                   # reduction axis last
            in_specs=[pl.BlockSpec((1, C, TN), lambda b, n: (b, 0, n))]
                     + [const_spec(w.shape) for w in conv_weights],
            out_specs=pl.BlockSpec((1, 1024, 1), lambda b, n: (b, 0, 0)),
            scratch_shapes=[pltpu.VMEM((1024, AL), jnp.float32)],
        ),
        compiler_params=pltpu.CompilerParams(
            dimension_semantics=("parallel", "arbitrary"),
            # Budget at TN=2048: ~8 MiB conv3 slab + ~2 MiB smaller activations
            # + ~0.9 MiB double-buffered weights/biases + 1 MiB output block
            # + 0.5 MiB scratch -> well under 48 MiB (<= v7x's 64 MiB physical).
            vmem_limit_bytes=48 * 1024 * 1024,
        ),
        cost_estimate=pl.CostEstimate(flops=conv_flops, transcendentals=0,
                                      bytes_accessed=conv_bytes),
    )(x_bcn, *conv_weights)

    g = pooled[:, :, 0]                                     # (B, 1024), free squeeze

    head_weights = (b3, wf1, bf1, wf2, bf2, wf3, bf3)
    head_flops = 2 * B * (1024 * 512 + 512 * 256 + 256 * 9)
    head_bytes = (g.size * 4
                  + sum(w.size * w.dtype.itemsize for w in head_weights)
                  + B * 9 * 4)

    # Kept as a separate batched call (amortizes head weights over B). For
    # B == 1 latency-critical use this could be fused into the conv kernel's
    # last tile to save a launch + HBM hop.
    out9 = pl.pallas_call(
        stn3d_head_kernel,
        out_shape=jax.ShapeDtypeStruct((B, 9), jnp.float32),
        cost_estimate=pl.CostEstimate(flops=head_flops, transcendentals=0,
                                      bytes_accessed=head_bytes),
    )(g, *head_weights)

    return out9.reshape(B, 3, 3)


# ----------------------------------------------------------------------------
# Deterministic parameter construction + BN folding (plain-JAX glue)
# ----------------------------------------------------------------------------
def make_params(channel, key):
    def dense(key, fan_in, fan_out):
        kw, kb = jax.random.split(key)
        w = jax.random.normal(kw, (fan_in, fan_out), jnp.float32) * 0.05
        b = jax.random.normal(kb, (fan_out,), jnp.float32) * 0.05
        return w, b

    def bn(fan_out, key):
        kg, kb = jax.random.split(key)
        gamma = 1.0 + 0.1 * jax.random.normal(kg, (fan_out,), jnp.float32)
        beta = 0.1 * jax.random.normal(kb, (fan_out,), jnp.float32)
        running_mean = jnp.zeros((fan_out,), jnp.float32)
        running_var = jnp.ones((fan_out,), jnp.float32)
        return gamma, beta, running_mean, running_var

    def fold(w, b, bn_p, eps=1e-5):
        gamma, beta, mean, var = bn_p
        scale = gamma / jnp.sqrt(var + eps)
        return w * scale[None, :], (b - mean) * scale + beta

    keys = jax.random.split(key, 11)
    w1, b1 = dense(keys[0], channel, 64)
    w2, b2 = dense(keys[1], 64, 128)
    w3, b3 = dense(keys[2], 128, 1024)
    wf1, bf1 = dense(keys[3], 1024, 512)
    wf2, bf2 = dense(keys[4], 512, 256)
    wf3, bf3 = dense(keys[5], 256, 9)

    w1f, b1f = fold(w1, b1, bn(64, keys[6]))
    w2f, b2f = fold(w2, b2, bn(128, keys[7]))
    w3f, b3f = fold(w3, b3, bn(1024, keys[8]))
    wf1f, bf1f = fold(wf1, bf1, bn(512, keys[9]))
    wf2f, bf2f = fold(wf2, bf2, bn(256, keys[10]))

    # fold identity "iden" add into fc3 bias
    iden = jnp.array([1, 0, 0, 0, 1, 0, 0, 0, 1], jnp.float32)
    bf3f = bf3 + iden

    bf16 = jnp.bfloat16
    return (
        # conv weights pre-transposed to (Cout, Cin); b1/b2 as (Cout, 1),
        # b3 as (1, 1024) row (applied in the head, after the max-pool).
        w1f.T.astype(bf16), b1f.reshape(-1, 1),
        w2f.T.astype(bf16), b2f.reshape(-1, 1),
        w3f.T.astype(bf16), b3f.reshape(1, -1),
        # fc weights as (Cin, Cout), biases as (1, Cout)
        wf1f.astype(bf16), bf1f.reshape(1, -1),
        wf2f.astype(bf16), bf2f.reshape(1, -1),
        wf3.astype(bf16), bf3f.reshape(1, -1),
    )


def stn3d_reference(x_bcn, params):
    """Pure-JAX f32 reference of the same (BN-folded) forward pass."""
    (wt1, b1, wt2, b2, wt3, b3, wf1, bf1, wf2, bf2, wf3, bf3) = params
    f32 = jnp.float32
    x = x_bcn.astype(f32)                                            # (B, C, N)
    h = jax.nn.relu(jnp.einsum('oc,bcn->bon', wt1.astype(f32), x) + b1[None])
    h = jax.nn.relu(jnp.einsum('oc,bcn->bon', wt2.astype(f32), h) + b2[None])
    h = jax.nn.relu(jnp.einsum('oc,bcn->bon', wt3.astype(f32), h) + b3.reshape(1, -1, 1))
    g = jnp.max(h, axis=2)                                           # (B, 1024)
    f = jax.nn.relu(g @ wf1.astype(f32) + bf1[0])
    f = jax.nn.relu(f @ wf2.astype(f32) + bf2[0])
    out = f @ wf3.astype(f32) + bf3[0]
    return out.reshape(-1, 3, 3)


if __name__ == "__main__":
    key = jax.random.PRNGKey(0)
    kx1, kx2, kp = jax.random.split(key, 3)

    B, C = 2, 4
    params = make_params(C, kp)

    # Small shape (single tile per batch element).
    x_small = jax.random.normal(kx1, (B, C, 16), jnp.float32)   # (B, C, N) Conv1d layout
    out_small = jax.block_until_ready(stn3d_forward(x_small, params))
    ref_small = stn3d_reference(x_small, params)
    np.testing.assert_allclose(np.asarray(out_small), np.asarray(ref_small),
                               rtol=2e-2, atol=2e-2)
    assert out_small.shape == (B, 3, 3)

    # Larger ragged shape: exercises the multi-tile online max and the
    # last-tile-only masking path (N=300 -> TN=128, 3 tiles, 44 valid tail cols).
    x_big = jax.random.normal(kx2, (B, C, 300), jnp.float32)
    out_big = jax.block_until_ready(stn3d_forward(x_big, params))
    ref_big = stn3d_reference(x_big, params)
    np.testing.assert_allclose(np.asarray(out_big), np.asarray(ref_big),
                               rtol=2e-2, atol=2e-2)

    print("KERNEL_OK")
</pallas_src>

<mosaic_0001>
module attributes {stable_mosaic.version = 11 : i64} {
  func.func @stn3d_conv_kernel(%arg0: i32, %arg1: i32, %arg2: memref<1x4x16xf32, #tpu.memory_space<vmem>>, %arg3: memref<64x4xbf16, #tpu.memory_space<vmem>>, %arg4: memref<64x1xf32, #tpu.memory_space<vmem>>, %arg5: memref<128x64xbf16, #tpu.memory_space<vmem>>, %arg6: memref<128x1xf32, #tpu.memory_space<vmem>>, %arg7: memref<1024x128xbf16, #tpu.memory_space<vmem>>, %arg8: memref<1x1024x1xf32, #tpu.memory_space<vmem>>, %arg9: memref<1024x16xf32, #tpu.memory_space<vmem>>) attributes {dimension_semantics = [#tpu.dimension_semantics<parallel>, #tpu.dimension_semantics<arbitrary>], iteration_bounds = array<i64: 2, 1>, scalar_prefetch = 0 : i64, scratch_operands = 1 : i64, tpu.core_type = #tpu.core_type<tc>, window_params = [{transform_indices = @transform_0, window_bounds = array<i64: 1, 4, 16>}, {pipeline_mode = #tpu.pipeline_mode<synchronous>, transform_indices = @transform_1, window_bounds = array<i64: 64, 4>}, {pipeline_mode = #tpu.pipeline_mode<synchronous>, transform_indices = @transform_2, window_bounds = array<i64: 64, 1>}, {pipeline_mode = #tpu.pipeline_mode<synchronous>, transform_indices = @transform_3, window_bounds = array<i64: 128, 64>}, {pipeline_mode = #tpu.pipeline_mode<synchronous>, transform_indices = @transform_4, window_bounds = array<i64: 128, 1>}, {pipeline_mode = #tpu.pipeline_mode<synchronous>, transform_indices = @transform_5, window_bounds = array<i64: 1024, 128>}, {transform_indices = @transform_6, window_bounds = array<i64: 1, 1024, 1>}]} {
    %c0_i32 = arith.constant 0 : i32
    %0 = arith.cmpi eq, %arg1, %c0_i32 : i32
    %1 = arith.extui %0 : i1 to i32
    %c0_i32_0 = arith.constant 0 : i32
    %2 = arith.cmpi ne, %1, %c0_i32_0 : i32
    scf.if %2 {
      %cst_23 = arith.constant 0xFF800000 : f32
      %30 = vector.broadcast %cst_23 : f32 to vector<1024x16xf32>
      %c0_24 = arith.constant 0 : index
      %c0_25 = arith.constant 0 : index
      %31 = vector.load %arg9[%c0_24, %c0_25] : memref<1024x16xf32, #tpu.memory_space<vmem>>, vector<1024x16xf32>
      tpu.vector_store %arg9[%c0_24, %c0_25], %30 {strides = array<i32>} : memref<1024x16xf32, #tpu.memory_space<vmem>>, vector<1024x16xf32>,
    } else {
    }
    %c0 = arith.constant 0 : index
    %c0_1 = arith.constant 0 : index
    %c0_2 = arith.constant 0 : index
    %3 = vector.load %arg2[%c0, %c0_1, %c0_2] : memref<1x4x16xf32, #tpu.memory_space<vmem>>, vector<1x4x16xf32>
    %4 = vector.shape_cast %3 : vector<1x4x16xf32> to vector<4x16xf32>
    %5 = arith.truncf %4 : vector<4x16xf32> to vector<4x16xbf16>
    %c0_3 = arith.constant 0 : index
    %c0_4 = arith.constant 0 : index
    %6 = vector.load %arg3[%c0_3, %c0_4] : memref<64x4xbf16, #tpu.memory_space<vmem>>, vector<64x4xbf16>
    %cst = arith.constant dense<0.000000e+00> : vector<64x16xf32>
    %7 = tpu.matmul %6, %5, %cst {dimension_numbers = #tpu.dot_dimension_numbers<[1], [0], [0], [1], [0, 0, 1, 1], [], []>} : vector<64x4xbf16>, vector<4x16xbf16>, vector<64x16xf32> -> vector<64x16xf32>
    %c0_5 = arith.constant 0 : index
    %c0_6 = arith.constant 0 : index
    %8 = vector.load %arg4[%c0_5, %c0_6] : memref<64x1xf32, #tpu.memory_space<vmem>>, vector<64x1xf32>
    %9 = vector.broadcast %8 : vector<64x1xf32> to vector<64x16xf32>
    %10 = arith.addf %7, %9 : vector<64x16xf32>
    %cst_7 = arith.constant 0.000000e+00 : f32
    %11 = vector.broadcast %cst_7 : f32 to vector<64x16xf32>
    %12 = arith.maximumf %10, %11 : vector<64x16xf32>
    %13 = arith.truncf %12 : vector<64x16xf32> to vector<64x16xbf16>
    %c0_8 = arith.constant 0 : index
    %c0_9 = arith.constant 0 : index
    %14 = vector.load %arg5[%c0_8, %c0_9] : memref<128x64xbf16, #tpu.memory_space<vmem>>, vector<128x64xbf16>
    %cst_10 = arith.constant dense<0.000000e+00> : vector<128x16xf32>
    %15 = tpu.matmul %14, %13, %cst_10 {dimension_numbers = #tpu.dot_dimension_numbers<[1], [0], [0], [1], [0, 0, 1, 1], [], []>} : vector<128x64xbf16>, vector<64x16xbf16>, vector<128x16xf32> -> vector<128x16xf32>
    %c0_11 = arith.constant 0 : index
    %c0_12 = arith.constant 0 : index
    %16 = vector.load %arg6[%c0_11, %c0_12] : memref<128x1xf32, #tpu.memory_space<vmem>>, vector<128x1xf32>
    %17 = vector.broadcast %16 : vector<128x1xf32> to vector<128x16xf32>
    %18 = arith.addf %15, %17 : vector<128x16xf32>
    %cst_13 = arith.constant 0.000000e+00 : f32
    %19 = vector.broadcast %cst_13 : f32 to vector<128x16xf32>
    %20 = arith.maximumf %18, %19 : vector<128x16xf32>
    %21 = arith.truncf %20 : vector<128x16xf32> to vector<128x16xbf16>
    %c0_14 = arith.constant 0 : index
    %c0_15 = arith.constant 0 : index
    %22 = vector.load %arg7[%c0_14, %c0_15] : memref<1024x128xbf16, #tpu.memory_space<vmem>>, vector<1024x128xbf16>
    %cst_16 = arith.constant dense<0.000000e+00> : vector<1024x16xf32>
    %23 = tpu.matmul %22, %21, %cst_16 {dimension_numbers = #tpu.dot_dimension_numbers<[1], [0], [0], [1], [0, 0, 1, 1], [], []>} : vector<1024x128xbf16>, vector<128x16xbf16>, vector<1024x16xf32> -> vector<1024x16xf32>
    %c0_17 = arith.constant 0 : index
    %c0_18 = arith.constant 0 : index
    %24 = vector.load %arg9[%c0_17, %c0_18] : memref<1024x16xf32, #tpu.memory_space<vmem>>, vector<1024x16xf32>
    %25 = arith.maximumf %24, %23 : vector<1024x16xf32>
    %c0_19 = arith.constant 0 : index
    %c0_20 = arith.constant 0 : index
    %26 = vector.load %arg9[%c0_19, %c0_20] : memref<1024x16xf32, #tpu.memory_space<vmem>>, vector<1024x16xf32>
    tpu.vector_store %arg9[%c0_19, %c0_20], %25 {strides = array<i32>} : memref<1024x16xf32, #tpu.memory_space<vmem>>, vector<1024x16xf32>,
    %c0_i32_21 = arith.constant 0 : i32
    %27 = arith.cmpi eq, %arg1, %c0_i32_21 : i32
    %28 = arith.extui %27 : i1 to i32
    %c0_i32_22 = arith.constant 0 : i32
    %29 = arith.cmpi ne, %28, %c0_i32_22 : i32
    scf.if %29 {
      %c0_23 = arith.constant 0 : index
      %c0_24 = arith.constant 0 : index
      %30 = vector.load %arg9[%c0_23, %c0_24] : memref<1024x16xf32, #tpu.memory_space<vmem>>, vector<1024x16xf32>
      %cst_25 = arith.constant dense<0xFF800000> : vector<1024xf32>
      %31 = vector.multi_reduction <maximumf>, %30, %cst_25 [1] : vector<1024x16xf32> to vector<1024xf32>
      %32 = vector.shape_cast %31 : vector<1024xf32> to vector<1024x1xf32>
      %33 = vector.shape_cast %32 : vector<1024x1xf32> to vector<1x1024x1xf32>
      %c0_26 = arith.constant 0 : index
      %c0_27 = arith.constant 0 : index
      %c0_28 = arith.constant 0 : index
      %34 = vector.load %arg8[%c0_26, %c0_27, %c0_28] : memref<1x1024x1xf32, #tpu.memory_space<vmem>>, vector<1x1024x1xf32>
      tpu.vector_store %arg8[%c0_26, %c0_27, %c0_28], %33 {strides = array<i32>} : memref<1x1024x1xf32, #tpu.memory_space<vmem>>, vector<1x1024x1xf32>,
    } else {
    }
    return
  }
  func.func @transform_0(%arg0: i32, %arg1: i32) -> (i32, i32, i32) {
    %c0_i32 = arith.constant 0 : i32
    %c0_i32_0 = arith.constant 0 : i32
    return %arg0, %c0_i32, %arg1 : i32, i32, i32
  }
  func.func @transform_1(%arg0: i32, %arg1: i32) -> (i32, i32) {
    %c0_i32 = arith.constant 0 : i32
    %c0_i32_0 = arith.constant 0 : i32
    %c0_i32_1 = arith.constant 0 : i32
    return %c0_i32, %c0_i32_0 : i32, i32
  }
  func.func @transform_2(%arg0: i32, %arg1: i32) -> (i32, i32) {
    %c0_i32 = arith.constant 0 : i32
    %c0_i32_0 = arith.constant 0 : i32
    %c0_i32_1 = arith.constant 0 : i32
    return %c0_i32, %c0_i32_0 : i32, i32
  }
  func.func @transform_3(%arg0: i32, %arg1: i32) -> (i32, i32) {
    %c0_i32 = arith.constant 0 : i32
    %c0_i32_0 = arith.constant 0 : i32
    %c0_i32_1 = arith.constant 0 : i32
    return %c0_i32, %c0_i32_0 : i32, i32
  }
  func.func @transform_4(%arg0: i32, %arg1: i32) -> (i32, i32) {
    %c0_i32 = arith.constant 0 : i32
    %c0_i32_0 = arith.constant 0 : i32
    %c0_i32_1 = arith.constant 0 : i32
    return %c0_i32, %c0_i32_0 : i32, i32
  }
  func.func @transform_5(%arg0: i32, %arg1: i32) -> (i32, i32) {
    %c0_i32 = arith.constant 0 : i32
    %c0_i32_0 = arith.constant 0 : i32
    %c0_i32_1 = arith.constant 0 : i32
    return %c0_i32, %c0_i32_0 : i32, i32
  }
  func.func @transform_6(%arg0: i32, %arg1: i32) -> (i32, i32, i32) {
    %c0_i32 = arith.constant 0 : i32
    %c0_i32_0 = arith.constant 0 : i32
    %c0_i32_1 = arith.constant 0 : i32
    return %arg0, %c0_i32, %c0_i32_0 : i32, i32, i32
  }
}

module attributes {stable_mosaic.version = 11 : i64} {
  func.func @stn3d_head_kernel(%arg0: memref<2x1024xf32, #tpu.memory_space<vmem>>, %arg1: memref<1x1024xf32, #tpu.memory_space<vmem>>, %arg2: memref<1024x512xbf16, #tpu.memory_space<vmem>>, %arg3: memref<1x512xf32, #tpu.memory_space<vmem>>, %arg4: memref<512x256xbf16, #tpu.memory_space<vmem>>, %arg5: memref<1x256xf32, #tpu.memory_space<vmem>>, %arg6: memref<256x9xbf16, #tpu.memory_space<vmem>>, %arg7: memref<1x9xf32, #tpu.memory_space<vmem>>, %arg8: memref<2x9xf32, #tpu.memory_space<vmem>>) attributes {dimension_semantics = [], scalar_prefetch = 0 : i64, scratch_operands = 0 : i64, tpu.core_type = #tpu.core_type<tc>} {
    %c0 = arith.constant 0 : index
    %c0_0 = arith.constant 0 : index
    %0 = vector.load %arg0[%c0, %c0_0] : memref<2x1024xf32, #tpu.memory_space<vmem>>, vector<2x1024xf32>
    %c0_1 = arith.constant 0 : index
    %c0_2 = arith.constant 0 : index
    %1 = vector.load %arg1[%c0_1, %c0_2] : memref<1x1024xf32, #tpu.memory_space<vmem>>, vector<1x1024xf32>
    %2 = vector.broadcast %1 : vector<1x1024xf32> to vector<2x1024xf32>
    %3 = arith.addf %0, %2 : vector<2x1024xf32>
    %cst = arith.constant 0.000000e+00 : f32
    %4 = vector.broadcast %cst : f32 to vector<2x1024xf32>
    %5 = arith.maximumf %3, %4 : vector<2x1024xf32>
    %6 = arith.truncf %5 : vector<2x1024xf32> to vector<2x1024xbf16>
    %c0_3 = arith.constant 0 : index
    %c0_4 = arith.constant 0 : index
    %7 = vector.load %arg2[%c0_3, %c0_4] : memref<1024x512xbf16, #tpu.memory_space<vmem>>, vector<1024x512xbf16>
    %cst_5 = arith.constant dense<0.000000e+00> : vector<2x512xf32>
    %8 = tpu.matmul %6, %7, %cst_5 {dimension_numbers = #tpu.dot_dimension_numbers<[1], [0], [0], [1], [0, 0, 1, 1], [], []>} : vector<2x1024xbf16>, vector<1024x512xbf16>, vector<2x512xf32> -> vector<2x512xf32>
    %c0_6 = arith.constant 0 : index
    %c0_7 = arith.constant 0 : index
    %9 = vector.load %arg3[%c0_6, %c0_7] : memref<1x512xf32, #tpu.memory_space<vmem>>, vector<1x512xf32>
    %10 = vector.broadcast %9 : vector<1x512xf32> to vector<2x512xf32>
    %11 = arith.addf %8, %10 : vector<2x512xf32>
    %cst_8 = arith.constant 0.000000e+00 : f32
    %12 = vector.broadcast %cst_8 : f32 to vector<2x512xf32>
    %13 = arith.maximumf %11, %12 : vector<2x512xf32>
    %14 = arith.truncf %13 : vector<2x512xf32> to vector<2x512xbf16>
    %c0_9 = arith.constant 0 : index
    %c0_10 = arith.constant 0 : index
    %15 = vector.load %arg4[%c0_9, %c0_10] : memref<512x256xbf16, #tpu.memory_space<vmem>>, vector<512x256xbf16>
    %cst_11 = arith.constant dense<0.000000e+00> : vector<2x256xf32>
    %16 = tpu.matmul %14, %15, %cst_11 {dimension_numbers = #tpu.dot_dimension_numbers<[1], [0], [0], [1], [0, 0, 1, 1], [], []>} : vector<2x512xbf16>, vector<512x256xbf16>, vector<2x256xf32> -> vector<2x256xf32>
    %c0_12 = arith.constant 0 : index
    %c0_13 = arith.constant 0 : index
    %17 = vector.load %arg5[%c0_12, %c0_13] : memref<1x256xf32, #tpu.memory_space<vmem>>, vector<1x256xf32>
    %18 = vector.broadcast %17 : vector<1x256xf32> to vector<2x256xf32>
    %19 = arith.addf %16, %18 : vector<2x256xf32>
    %cst_14 = arith.constant 0.000000e+00 : f32
    %20 = vector.broadcast %cst_14 : f32 to vector<2x256xf32>
    %21 = arith.maximumf %19, %20 : vector<2x256xf32>
    %22 = arith.truncf %21 : vector<2x256xf32> to vector<2x256xbf16>
    %c0_15 = arith.constant 0 : index
    %c0_16 = arith.constant 0 : index
    %23 = vector.load %arg6[%c0_15, %c0_16] : memref<256x9xbf16, #tpu.memory_space<vmem>>, vector<256x9xbf16>
    %cst_17 = arith.constant dense<0.000000e+00> : vector<2x9xf32>
    %24 = tpu.matmul %22, %23, %cst_17 {dimension_numbers = #tpu.dot_dimension_numbers<[1], [0], [0], [1], [0, 0, 1, 1], [], []>} : vector<2x256xbf16>, vector<256x9xbf16>, vector<2x9xf32> -> vector<2x9xf32>
    %c0_18 = arith.constant 0 : index
    %c0_19 = arith.constant 0 : index
    %25 = vector.load %arg7[%c0_18, %c0_19] : memref<1x9xf32, #tpu.memory_space<vmem>>, vector<1x9xf32>
    %26 = vector.broadcast %25 : vector<1x9xf32> to vector<2x9xf32>
    %27 = arith.addf %24, %26 : vector<2x9xf32>
    %c0_20 = arith.constant 0 : index
    %c0_21 = arith.constant 0 : index
    %28 = vector.load %arg8[%c0_20, %c0_21] : memref<2x9xf32, #tpu.memory_space<vmem>>, vector<2x9xf32>
    tpu.vector_store %arg8[%c0_20, %c0_21], %27 {strides = array<i32>} : memref<2x9xf32, #tpu.memory_space<vmem>>, vector<2x9xf32>,
    return
  }
}

</mosaic_0001>

<llo_original>
// kernel: stn3d_forward.2
$region0: #{stn3d_forward.2}
  #allocation0 [shape = 'u32[]', space=smem, size = 0x4, offset = 0x4, fixed_abs, tag = 'smem constant byte address 0x4 - core index']
  #allocation1 [shape = 'u32[72,128]{1,0:T(1,128)}', space=vmem, size = 0x9000, scoped, tag = 'internal scratch']
  #allocation2 [shape = 'f32[1024,16]{1,0:T(8,128)}', space=vmem, size = 0x80000, scoped, tag = 'scratch operand']
  %s0 = inlined_call_operand.vmem [shape: f32[2,4,16], index: 0, kind: input, shape index: {}]
  %s1 = inlined_call_operand.vmem [shape: bf16[64,4], index: 1, kind: input, shape index: {}]
  %s2 = inlined_call_operand.vmem [shape: f32[64,1], index: 2, kind: input, shape index: {}]
  %s3 = inlined_call_operand.vmem [shape: bf16[128,64], index: 3, kind: input, shape index: {}]
  %s4 = inlined_call_operand.vmem [shape: f32[128,1], index: 4, kind: input, shape index: {}]
  %s5 = inlined_call_operand.hbm [shape: bf16[1024,128], index: 5, kind: input, shape index: {}]
  %s6 = inlined_call_operand.vmem [shape: f32[2,1024,1], index: 6, kind: output, shape index: {}]
  %s7 = sld [smem:[#allocation0]]
  $region69: #{stn3d_forward.2} parent=0
    _
  %s9 = ssub.s32 1, %s7
  %s10 = scalar_select 0, %s9, %s7
  $region1: #{stn3d_forward.2} parent=0
    #allocation3 [shape = 'u8[262144]{0}', space=vmem, size = 0x40000, scoped, tag = 'input window, operand 5, single buffered']
    #allocation4 [shape = 's32[2]{0}', space=sflag, size = 0x8, scoped, tag = 'scoped memory for stn3d_forward.2']
    %11 = vsyncpa [#allocation4], 0
    loop: start=0, step=1, limit=4
    $region2: #{stn3d_forward.2} parent=1 // loop_pre_header
      _
    $region3: #{stn3d_forward.2} parent=1 // loop_header
      %s13 = sphi 0, %s17
      %p14 = scmp.ge.s32.totalorder %s13, 4
      %s20 = sphi 0, %s32
      %s21 = sphi 0, %s28
      %s22 = sphi 0, %s20
      %s23 = sphi 0, %s21
      %s24 = sphi 0, %s22
      %s25 = sphi 0, %s23
      %s37 = sphi 0, %s39
      %s40 = sphi 0, %s37
      %s41 = sphi 0, %s40
      %s57 = sphi 0, %s41
      %s61 = sphi 0, %s61
      %s63 = sphi 0, %s61
      %s64 = sphi 0, %s63
      %s78 = sphi 0, %s64
      %s82 = sphi 0, %s82
      %s84 = sphi 0, %s82
      %s85 = sphi 0, %s84
      %s99 = sphi 0, %s85
      %s103 = sphi 0, %s103
      %s105 = sphi 0, %s103
      %s106 = sphi 0, %s105
      %s120 = sphi 0, %s106
      %s124 = sphi 0, %s124
      %s126 = sphi 0, %s124
      %s127 = sphi 0, %s126
      %s141 = sphi 0, %s127
      %s145 = sphi 0, %s145
      %s147 = sphi 0, %s145
      %s148 = sphi 0, %s147
      %s162 = sphi 0, %s148
      %s168 = sphi 0, %s170
      %s171 = sphi 0, %s168
      %s172 = sphi 0, %s171
      %s188 = sphi 0, %s172
    $region4: #{stn3d_forward.2} parent=1 // loop_header_branch
      %16 = sbr.rel (%p14) target = $region8
    $region5: #{stn3d_forward.2} parent=1 // loop_body
      %s18 = ssub.s32 %s13, 1
      %s19 = ssub.s32 %s13, 2
      %s26 = sadd.s32 1, %s21
      %p27 = scmp.ge.s32.totalorder %s26, 1
      %s28 = scalar_select %p27, 0, %s26
      %s29 = sadd.s32 1, %s20
      %s30 = scalar_select %p27, %s29, %s20
      %p31 = scmp.ge.s32.totalorder %s30, 2
      %s32 = scalar_select %p31, 0, %s30
      %s33 = ssub.s32 %s20, %s32
      %s34 = ssub.s32 %s21, %s28
      %s35 = sor.u32 %s33, %s34
      %p36 = scmp.eq.s32.totalorder %s35, 0
      %s38 = sadd.s32 %s37, 1
      %s39 = scalar_select %p36, %s37, %s38
      %p42 = pneg %p36
      %p43 = scmp.eq.s32.totalorder %s13, 1
      %p44 = por %p42, %p43
      %p45 = scmp.ne.s32.totalorder %s37, %s40
      %p46 = scmp.eq.s32.totalorder %s13, 0
      %p47 = por %p45, %p46
      %p48 = scmp.ne.s32.totalorder %s37, %s40
      %p49 = scmp.eq.s32.totalorder %s18, 1
      %p50 = por %p48, %p49
      %p51 = scmp.ne.s32.totalorder %s40, %s41
      %p52 = scmp.eq.s32.totalorder %s18, 0
      %p53 = por %p51, %p52
      %p54 = scmp.ne.s32.totalorder %s40, %s41
      %p55 = scmp.eq.s32.totalorder %s19, 1
      %p56 = por %p54, %p55
      %p58 = scmp.ne.s32.totalorder %s41, %s57
      %p59 = scmp.eq.s32.totalorder %s19, 0
      %p60 = por %p58, %p59
      %s62 = sadd.s32 %s61, 1
      %p65 = scmp.eq.s32.totalorder %s13, 1
      %p66 = scmp.ne.s32.totalorder %s61, %s63
      %p67 = scmp.eq.s32.totalorder %s13, 0
      %p68 = por %p66, %p67
      %p69 = scmp.ne.s32.totalorder %s61, %s63
      %p70 = scmp.eq.s32.totalorder %s18, 1
      %p71 = por %p69, %p70
      %p72 = scmp.ne.s32.totalorder %s63, %s64
      %p73 = scmp.eq.s32.totalorder %s18, 0
      %p74 = por %p72, %p73
      %p75 = scmp.ne.s32.totalorder %s63, %s64
      %p76 = scmp.eq.s32.totalorder %s19, 1
      %p77 = por %p75, %p76
      %p79 = scmp.ne.s32.totalorder %s64, %s78
      %p80 = scmp.eq.s32.totalorder %s19, 0
      %p81 = por %p79, %p80
      %s83 = sadd.s32 %s82, 1
      %p86 = scmp.eq.s32.totalorder %s13, 1
      %p87 = scmp.ne.s32.totalorder %s82, %s84
      %p88 = scmp.eq.s32.totalorder %s13, 0
      %p89 = por %p87, %p88
      %p90 = scmp.ne.s32.totalorder %s82, %s84
      %p91 = scmp.eq.s32.totalorder %s18, 1
      %p92 = por %p90, %p91
      %p93 = scmp.ne.s32.totalorder %s84, %s85
      %p94 = scmp.eq.s32.totalorder %s18, 0
      %p95 = por %p93, %p94
      %p96 = scmp.ne.s32.totalorder %s84, %s85
      %p97 = scmp.eq.s32.totalorder %s19, 1
      %p98 = por %p96, %p97
      %p100 = scmp.ne.s32.totalorder %s85, %s99
      %p101 = scmp.eq.s32.totalorder %s19, 0
      %p102 = por %p100, %p101
      %s104 = sadd.s32 %s103, 1
      %p107 = scmp.eq.s32.totalorder %s13, 1
      %p108 = scmp.ne.s32.totalorder %s103, %s105
      %p109 = scmp.eq.s32.totalorder %s13, 0
      %p110 = por %p108, %p109
      %p111 = scmp.ne.s32.totalorder %s103, %s105
      %p112 = scmp.eq.s32.totalorder %s18, 1
      %p113 = por %p111, %p112
      %p114 = scmp.ne.s32.totalorder %s105, %s106
      %p115 = scmp.eq.s32.totalorder %s18, 0
      %p116 = por %p114, %p115
      %p117 = scmp.ne.s32.totalorder %s105, %s106
      %p118 = scmp.eq.s32.totalorder %s19, 1
      %p119 = por %p117, %p118
      %p121 = scmp.ne.s32.totalorder %s106, %s120
      %p122 = scmp.eq.s32.totalorder %s19, 0
      %p123 = por %p121, %p122
      %s125 = sadd.s32 %s124, 1
      %p128 = scmp.eq.s32.totalorder %s13, 1
      %p129 = scmp.ne.s32.totalorder %s124, %s126
      %p130 = scmp.eq.s32.totalorder %s13, 0
      %p131 = por %p129, %p130
      %p132 = scmp.ne.s32.totalorder %s124, %s126
      %p133 = scmp.eq.s32.totalorder %s18, 1
      %p134 = por %p132, %p133
      %p135 = scmp.ne.s32.totalorder %s126, %s127
      %p136 = scmp.eq.s32.totalorder %s18, 0
      %p137 = por %p135, %p136
      %p138 = scmp.ne.s32.totalorder %s126, %s127
      %p139 = scmp.eq.s32.totalorder %s19, 1
      %p140 = por %p138, %p139
      %p142 = scmp.ne.s32.totalorder %s127, %s141
      %p143 = scmp.eq.s32.totalorder %s19, 0
      %p144 = por %p142, %p143
      %s146 = sadd.s32 %s145, 1
      %p149 = scmp.eq.s32.totalorder %s13, 1
      %p150 = scmp.ne.s32.totalorder %s145, %s147
      %p151 = scmp.eq.s32.totalorder %s13, 0
      %p152 = por %p150, %p151
      %p153 = scmp.ne.s32.totalorder %s145, %s147
      %p154 = scmp.eq.s32.totalorder %s18, 1
      %p155 = por %p153, %p154
      %p156 = scmp.ne.s32.totalorder %s147, %s148
      %p157 = scmp.eq.s32.totalorder %s18, 0
      %p158 = por %p156, %p157
      %p159 = scmp.ne.s32.totalorder %s147, %s148
      %p160 = scmp.eq.s32.totalorder %s19, 1
      %p161 = por %p159, %p160
      %p163 = scmp.ne.s32.totalorder %s148, %s162
      %p164 = scmp.eq.s32.totalorder %s19, 0
      %p165 = por %p163, %p164
      %s166 = ssub.s32 %s20, %s32
      %p167 = scmp.eq.s32.totalorder %s166, 0
      %s169 = sadd.s32 %s168, 1
      %s170 = scalar_select %p167, %s168, %s169
      %p173 = pneg %p167
      %p174 = scmp.eq.s32.totalorder %s13, 1
      %p175 = por %p173, %p174
      %p176 = scmp.ne.s32.totalorder %s168, %s171
      %p177 = scmp.eq.s32.totalorder %s13, 0
      %p178 = por %p176, %p177
      %p179 = scmp.ne.s32.totalorder %s168, %s171
      %p180 = scmp.eq.s32.totalorder %s18, 1
      %p181 = por %p179, %p180
      %p182 = scmp.ne.s32.totalorder %s171, %s172
      %p183 = scmp.eq.s32.totalorder %s18, 0
      %p184 = por %p182, %p183
      %p185 = scmp.ne.s32.totalorder %s171, %s172
      %p186 = scmp.eq.s32.totalorder %s19, 1
      %p187 = por %p185, %p186
      %p189 = scmp.ne.s32.totalorder %s172, %s188
      %p190 = scmp.eq.s32.totalorder %s19, 0
      %p191 = por %p189, %p190
      %p192 = scmp.le.s32.totalorder 1, %s13
      %p193 = scmp.lt.s32.totalorder %s13, 3
      %p194 = pnand %p192, %p193
      %p195 = pneg %p194
      // Predicated region
      $region9: #{stn3d_forward.2} parent=5 // pred_check
        _
      $region10: #{stn3d_forward.2} parent=5 // pred_check_branch
        %197 = sbr.rel (%p194) target = $region12
      $region11: #{stn3d_forward.2} parent=5 // pred_region
        %s198 = ssub.s32 %s13, 1
        // Predicated region
        $region13: #{stn3d_forward.2} parent=11 // pred_check
          %p199 = pneg %p74
        $region14: #{stn3d_forward.2} parent=11 // pred_check_branch
          %201 = sbr.rel (%p199) target = $region16
        $region15: #{stn3d_forward.2} parent=11 // pred_region
          _
        $region16: #{stn3d_forward.2} parent=11 // pred_fallthru
          _
        // Predicated region
        $region17: #{stn3d_forward.2} parent=11 // pred_check
          %p202 = pneg %p95
        $region18: #{stn3d_forward.2} parent=11 // pred_check_branch
          %204 = sbr.rel (%p202) target = $region20
        $region19: #{stn3d_forward.2} parent=11 // pred_region
          _
        $region20: #{stn3d_forward.2} parent=11 // pred_fallthru
          _
        // Predicated region
        $region21: #{stn3d_forward.2} parent=11 // pred_check
          %p205 = pneg %p116
        $region22: #{stn3d_forward.2} parent=11 // pred_check_branch
          %207 = sbr.rel (%p205) target = $region24
        $region23: #{stn3d_forward.2} parent=11 // pred_region
          _
        $region24: #{stn3d_forward.2} parent=11 // pred_fallthru
          _
        // Predicated region
        $region25: #{stn3d_forward.2} parent=11 // pred_check
          %p208 = pneg %p137
        $region26: #{stn3d_forward.2} parent=11 // pred_check_branch
          %210 = sbr.rel (%p208) target = $region28
        $region27: #{stn3d_forward.2} parent=11 // pred_region
          _
        $region28: #{stn3d_forward.2} parent=11 // pred_fallthru
          _
        // Predicated region
        $region29: #{stn3d_forward.2} parent=11 // pred_check
          %p211 = pneg %p158
        $region30: #{stn3d_forward.2} parent=11 // pred_check_branch
          %213 = sbr.rel (%p211) target = $region32
        $region31: #{stn3d_forward.2} parent=11 // pred_region
          %215 = vsyncadd [#allocation4], 0
          %s216 = sshll.u32 %s5, 4
          %s217 = int_to_ptr.hbm [resolvable:$true] %s216
          %s218 = sshll.u32 [#allocation3], 4
          %s219 = int_to_ptr.vmem [resolvable:$true] %s218
          %224 = dma.hbm_to_vmem [thread:$0]  %s217, 8192, %s219, [#allocation4], 64, 64, 4
        $region32: #{stn3d_forward.2} parent=11 // pred_fallthru
          _
      $region12: #{stn3d_forward.2} parent=5 // pred_fallthru
        _
      %p225 = scmp.lt.s32.totalorder %s13, 2
      // Predicated region
      $region33: #{stn3d_forward.2} parent=5 // pred_check
        %p226 = pneg %p225
      $region34: #{stn3d_forward.2} parent=5 // pred_check_branch
        %228 = sbr.rel (%p226) target = $region36
      $region35: #{stn3d_forward.2} parent=5 // pred_region
        // Predicated region
        $region37: #{stn3d_forward.2} parent=35 // pred_check
          %p229 = pneg %p47
        $region38: #{stn3d_forward.2} parent=35 // pred_check_branch
          %231 = sbr.rel (%p229) target = $region40
        $region39: #{stn3d_forward.2} parent=35 // pred_region
          %p232 = scmp.lt.s32.totalorder %s20, 1
          %s233 = scalar_select %p232, %s20, 1
          %p234 = scmp.lt.s32.totalorder %s21, 0
          %s235 = scalar_select %p234, %s21, 0
          %s236 = sadd.s32 %s235, %s233
          %s237 = smul.addr %s236, 4
          %s238 = scalar_lea.vmem %s0, %s237
        $region40: #{stn3d_forward.2} parent=35 // pred_fallthru
          _
      $region36: #{stn3d_forward.2} parent=5 // pred_fallthru
        _
      %p239 = scmp.le.s32.totalorder 1, %s13
      %p240 = scmp.lt.s32.totalorder %s13, 3
      %p241 = pnand %p239, %p240
      %p242 = pneg %p241
      // Predicated region
      $region41: #{stn3d_forward.2} parent=5 // pred_check
        _
      $region42: #{stn3d_forward.2} parent=5 // pred_check_branch
        %244 = sbr.rel (%p241) target = $region44
      $region43: #{stn3d_forward.2} parent=5 // pred_region
        %s245 = ssub.s32 %s13, 1
        // Predicated region
        $region45: #{stn3d_forward.2} parent=43 // pred_check
          %p246 = pneg %p158
        $region46: #{stn3d_forward.2} parent=43 // pred_check_branch
          %248 = sbr.rel (%p246) target = $region48
        $region47: #{stn3d_forward.2} parent=43 // pred_region
          %250 = dma.done [#allocation4], 8192
        $region48: #{stn3d_forward.2} parent=43 // pred_fallthru
          _
        %p251 = scmp.lt.s32.totalorder %s22, 1
        %s252 = scalar_select %p251, %s22, 1
        %p253 = scmp.lt.s32.totalorder %s23, 0
        %s254 = scalar_select %p253, %s23, 0
        %s255 = sadd.s32 %s254, %s252
        %s256 = smul.addr %s255, 4
        %s257 = scalar_lea.vmem %s0, %s256
        %p258 = pneg %p53
        %p259 = pneg %p50
        %p260 = pneg %p74
        %p261 = pneg %p71
        %p262 = pneg %p95
        %p263 = pneg %p92
        %p264 = pneg %p116
        %p265 = pneg %p113
        %p266 = pneg %p137
        %p267 = pneg %p134
        %p268 = pneg %p158
        %p269 = pneg %p155
        %p270 = pneg %p184
        %p271 = pneg %p181
        %p272 = scmp.lt.s32.totalorder %s22, 1
        %s273 = scalar_select %p272, %s22, 1
        %s274 = smul.addr %s273, 128
        %s275 = smul.addr %s274, 8
        %s276 = scalar_lea.vmem %s6, %s275
        %p277 = scmp.lt.s32.totalorder %s22, 1
        %s278 = scalar_select %p277, %s22, 1
        %p279 = scmp.lt.s32.totalorder %s23, 0
        %s280 = scalar_select %p279, %s23, 0
        %s281 = sadd.s32 %s280, %s278
        %s282 = smul.addr %s281, 4
        %s283 = scalar_lea.vmem %s0, %s282
        %p284 = scmp.lt.s32.totalorder %s22, 1
        %s285 = scalar_select %p284, %s22, 1
        %s286 = smul.addr %s285, 128
        %s287 = smul.addr %s286, 8
        %s288 = scalar_lea.vmem %s6, %s287
        %p290 = scmp.eq.s32.totalorder %s23, 0
        // Predicated region
        $region49: #{stn3d_forward.2} parent=43 // pred_check
          %p291 = pneg %p290
        $region50: #{stn3d_forward.2} parent=43 // pred_check_branch
          %293 = sbr.rel (%p291) target = $region52
        $region51: #{stn3d_forward.2} parent=43 // pred_region
          %vm294 = vcmask 130048
          %295 = vst.msk [vmem:[#allocation2] sm:$0xff] %vm294, -inf
          %296 = vst.msk [vmem:[#allocation2 + $0x8] sm:$0xff] %vm294, -inf
          %297 = vst.msk [vmem:[#allocation2 + $0x10] sm:$0xff] %vm294, -inf
          %298 = vst.msk [vmem:[#allocation2 + $0x18] sm:$0xff] %vm294, -inf
          %299 = vst.msk [vmem:[#allocation2 + $0x20] sm:$0xff] %vm294, -inf
          %300 = vst.msk [vmem:[#allocation2 + $0x28] sm:$0xff] %vm294, -inf
          %301 = vst.msk [vmem:[#allocation2 + $0x30] sm:$0xff] %vm294, -inf
          %302 = vst.msk [vmem:[#allocation2 + $0x38] sm:$0xff] %vm294, -inf
          %303 = vst.msk [vmem:[#allocation2 + $0x40] sm:$0xff] %vm294, -inf
          %304 = vst.msk [vmem:[#allocation2 + $0x48] sm:$0xff] %vm294, -inf
          %305 = vst.msk [vmem:[#allocation2 + $0x50] sm:$0xff] %vm294, -inf
          %306 = vst.msk [vmem:[#allocation2 + $0x58] sm:$0xff] %vm294, -inf
          %307 = vst.msk [vmem:[#allocation2 + $0x60] sm:$0xff] %vm294, -inf
          %308 = vst.msk [vmem:[#allocation2 + $0x68] sm:$0xff] %vm294, -inf
          %309 = vst.msk [vmem:[#allocation2 + $0x70] sm:$0xff] %vm294, -inf
          %310 = vst.msk [vmem:[#allocation2 + $0x78] sm:$0xff] %vm294, -inf
          %311 = vst.msk [vmem:[#allocation2 + $0x80] sm:$0xff] %vm294, -inf
          %312 = vst.msk [vmem:[#allocation2 + $0x88] sm:$0xff] %vm294, -inf
          %313 = vst.msk [vmem:[#allocation2 + $0x90] sm:$0xff] %vm294, -inf
          %314 = vst.msk [vmem:[#allocation2 + $0x98] sm:$0xff] %vm294, -inf
          %315 = vst.msk [vmem:[#allocation2 + $0xa0] sm:$0xff] %vm294, -inf
          %316 = vst.msk [vmem:[#allocation2 + $0xa8] sm:$0xff] %vm294, -inf
          %317 = vst.msk [vmem:[#allocation2 + $0xb0] sm:$0xff] %vm294, -inf
          %318 = vst.msk [vmem:[#allocation2 + $0xb8] sm:$0xff] %vm294, -inf
          %319 = vst.msk [vmem:[#allocation2 + $0xc0] sm:$0xff] %vm294, -inf
          %320 = vst.msk [vmem:[#allocation2 + $0xc8] sm:$0xff] %vm294, -inf
          %321 = vst.msk [vmem:[#allocation2 + $0xd0] sm:$0xff] %vm294, -inf
          %322 = vst.msk [vmem:[#allocation2 + $0xd8] sm:$0xff] %vm294, -inf
          %323 = vst.msk [vmem:[#allocation2 + $0xe0] sm:$0xff] %vm294, -inf
          %324 = vst.msk [vmem:[#allocation2 + $0xe8] sm:$0xff] %vm294, -inf
          %325 = vst.msk [vmem:[#allocation2 + $0xf0] sm:$0xff] %vm294, -inf
          %326 = vst.msk [vmem:[#allocation2 + $0xf8] sm:$0xff] %vm294, -inf
          %327 = vst.msk [vmem:[#allocation2 + $0x100] sm:$0xff] %vm294, -inf
          %328 = vst.msk [vmem:[#allocation2 + $0x108] sm:$0xff] %vm294, -inf
          %329 = vst.msk [vmem:[#allocation2 + $0x110] sm:$0xff] %vm294, -inf
          %330 = vst.msk [vmem:[#allocation2 + $0x118] sm:$0xff] %vm294, -inf
          %331 = vst.msk [vmem:[#allocation2 + $0x120] sm:$0xff] %vm294, -inf
          %332 = vst.msk [vmem:[#allocation2 + $0x128] sm:$0xff] %vm294, -inf
          %333 = vst.msk [vmem:[#allocation2 + $0x130] sm:$0xff] %vm294, -inf
          %334 = vst.msk [vmem:[#allocation2 + $0x138] sm:$0xff] %vm294, -inf
          %335 = vst.msk [vmem:[#allocation2 + $0x140] sm:$0xff] %vm294, -inf
          %336 = vst.msk [vmem:[#allocation2 + $0x148] sm:$0xff] %vm294, -inf
          %337 = vst.msk [vmem:[#allocation2 + $0x150] sm:$0xff] %vm294, -inf
          %338 = vst.msk [vmem:[#allocation2 + $0x158] sm:$0xff] %vm294, -inf
          %339 = vst.msk [vmem:[#allocation2 + $0x160] sm:$0xff] %vm294, -inf
          %340 = vst.msk [vmem:[#allocation2 + $0x168] sm:$0xff] %vm294, -inf
          %341 = vst.msk [vmem:[#allocation2 + $0x170] sm:$0xff] %vm294, -inf
          %342 = vst.msk [vmem:[#allocation2 + $0x178] sm:$0xff] %vm294, -inf
          %343 = vst.msk [vmem:[#allocation2 + $0x180] sm:$0xff] %vm294, -inf
          %344 = vst.msk [vmem:[#allocation2 + $0x188] sm:$0xff] %vm294, -inf
          %345 = vst.msk [vmem:[#allocation2 + $0x190] sm:$0xff] %vm294, -inf
          %346 = vst.msk [vmem:[#allocation2 + $0x198] sm:$0xff] %vm294, -inf
          %347 = vst.msk [vmem:[#allocation2 + $0x1a0] sm:$0xff] %vm294, -inf
          %348 = vst.msk [vmem:[#allocation2 + $0x1a8] sm:$0xff] %vm294, -inf
          %349 = vst.msk [vmem:[#allocation2 + $0x1b0] sm:$0xff] %vm294, -inf
          %350 = vst.msk [vmem:[#allocation2 + $0x1b8] sm:$0xff] %vm294, -inf
          %351 = vst.msk [vmem:[#allocation2 + $0x1c0] sm:$0xff] %vm294, -inf
          %352 = vst.msk [vmem:[#allocation2 + $0x1c8] sm:$0xff] %vm294, -inf
          %353 = vst.msk [vmem:[#allocation2 + $0x1d0] sm:$0xff] %vm294, -inf
          %354 = vst.msk [vmem:[#allocation2 + $0x1d8] sm:$0xff] %vm294, -inf
          %355 = vst.msk [vmem:[#allocation2 + $0x1e0] sm:$0xff] %vm294, -inf
          %356 = vst.msk [vmem:[#allocation2 + $0x1e8] sm:$0xff] %vm294, -inf
          %357 = vst.msk [vmem:[#allocation2 + $0x1f0] sm:$0xff] %vm294, -inf
          %358 = vst.msk [vmem:[#allocation2 + $0x1f8] sm:$0xff] %vm294, -inf
          %359 = vst.msk [vmem:[#allocation2 + $0x200] sm:$0xff] %vm294, -inf
          %360 = vst.msk [vmem:[#allocation2 + $0x208] sm:$0xff] %vm294, -inf
          %361 = vst.msk [vmem:[#allocation2 + $0x210] sm:$0xff] %vm294, -inf
          %362 = vst.msk [vmem:[#allocation2 + $0x218] sm:$0xff] %vm294, -inf
          %363 = vst.msk [vmem:[#allocation2 + $0x220] sm:$0xff] %vm294, -inf
          %364 = vst.msk [vmem:[#allocation2 + $0x228] sm:$0xff] %vm294, -inf
          %365 = vst.msk [vmem:[#allocation2 + $0x230] sm:$0xff] %vm294, -inf
          %366 = vst.msk [vmem:[#allocation2 + $0x238] sm:$0xff] %vm294, -inf
          %367 = vst.msk [vmem:[#allocation2 + $0x240] sm:$0xff] %vm294, -inf
          %368 = vst.msk [vmem:[#allocation2 + $0x248] sm:$0xff] %vm294, -inf
          %369 = vst.msk [vmem:[#allocation2 + $0x250] sm:$0xff] %vm294, -inf
          %370 = vst.msk [vmem:[#allocation2 + $0x258] sm:$0xff] %vm294, -inf
          %371 = vst.msk [vmem:[#allocation2 + $0x260] sm:$0xff] %vm294, -inf
          %372 = vst.msk [vmem:[#allocation2 + $0x268] sm:$0xff] %vm294, -inf
          %373 = vst.msk [vmem:[#allocation2 + $0x270] sm:$0xff] %vm294, -inf
          %374 = vst.msk [vmem:[#allocation2 + $0x278] sm:$0xff] %vm294, -inf
          %375 = vst.msk [vmem:[#allocation2 + $0x280] sm:$0xff] %vm294, -inf
          %376 = vst.msk [vmem:[#allocation2 + $0x288] sm:$0xff] %vm294, -inf
          %377 = vst.msk [vmem:[#allocation2 + $0x290] sm:$0xff] %vm294, -inf
          %378 = vst.msk [vmem:[#allocation2 + $0x298] sm:$0xff] %vm294, -inf
          %379 = vst.msk [vmem:[#allocation2 + $0x2a0] sm:$0xff] %vm294, -inf
          %380 = vst.msk [vmem:[#allocation2 + $0x2a8] sm:$0xff] %vm294, -inf
          %381 = vst.msk [vmem:[#allocation2 + $0x2b0] sm:$0xff] %vm294, -inf
          %382 = vst.msk [vmem:[#allocation2 + $0x2b8] sm:$0xff] %vm294, -inf
          %383 = vst.msk [vmem:[#allocation2 + $0x2c0] sm:$0xff] %vm294, -inf
          %384 = vst.msk [vmem:[#allocation2 + $0x2c8] sm:$0xff] %vm294, -inf
          %385 = vst.msk [vmem:[#allocation2 + $0x2d0] sm:$0xff] %vm294, -inf
          %386 = vst.msk [vmem:[#allocation2 + $0x2d8] sm:$0xff] %vm294, -inf
          %387 = vst.msk [vmem:[#allocation2 + $0x2e0] sm:$0xff] %vm294, -inf
          %388 = vst.msk [vmem:[#allocation2 + $0x2e8] sm:$0xff] %vm294, -inf
          %389 = vst.msk [vmem:[#allocation2 + $0x2f0] sm:$0xff] %vm294, -inf
          %390 = vst.msk [vmem:[#allocation2 + $0x2f8] sm:$0xff] %vm294, -inf
          %391 = vst.msk [vmem:[#allocation2 + $0x300] sm:$0xff] %vm294, -inf
          %392 = vst.msk [vmem:[#allocation2 + $0x308] sm:$0xff] %vm294, -inf
          %393 = vst.msk [vmem:[#allocation2 + $0x310] sm:$0xff] %vm294, -inf
          %394 = vst.msk [vmem:[#allocation2 + $0x318] sm:$0xff] %vm294, -inf
          %395 = vst.msk [vmem:[#allocation2 + $0x320] sm:$0xff] %vm294, -inf
          %396 = vst.msk [vmem:[#allocation2 + $0x328] sm:$0xff] %vm294, -inf
          %397 = vst.msk [vmem:[#allocation2 + $0x330] sm:$0xff] %vm294, -inf
          %398 = vst.msk [vmem:[#allocation2 + $0x338] sm:$0xff] %vm294, -inf
          %399 = vst.msk [vmem:[#allocation2 + $0x340] sm:$0xff] %vm294, -inf
          %400 = vst.msk [vmem:[#allocation2 + $0x348] sm:$0xff] %vm294, -inf
          %401 = vst.msk [vmem:[#allocation2 + $0x350] sm:$0xff] %vm294, -inf
          %402 = vst.msk [vmem:[#allocation2 + $0x358] sm:$0xff] %vm294, -inf
          %403 = vst.msk [vmem:[#allocation2 + $0x360] sm:$0xff] %vm294, -inf
          %404 = vst.msk [vmem:[#allocation2 + $0x368] sm:$0xff] %vm294, -inf
          %405 = vst.msk [vmem:[#allocation2 + $0x370] sm:$0xff] %vm294, -inf
          %406 = vst.msk [vmem:[#allocation2 + $0x378] sm:$0xff] %vm294, -inf
          %407 = vst.msk [vmem:[#allocation2 + $0x380] sm:$0xff] %vm294, -inf
          %408 = vst.msk [vmem:[#allocation2 + $0x388] sm:$0xff] %vm294, -inf
          %409 = vst.msk [vmem:[#allocation2 + $0x390] sm:$0xff] %vm294, -inf
          %410 = vst.msk [vmem:[#allocation2 + $0x398] sm:$0xff] %vm294, -inf
          %411 = vst.msk [vmem:[#allocation2 + $0x3a0] sm:$0xff] %vm294, -inf
          %412 = vst.msk [vmem:[#allocation2 + $0x3a8] sm:$0xff] %vm294, -inf
          %413 = vst.msk [vmem:[#allocation2 + $0x3b0] sm:$0xff] %vm294, -inf
          %414 = vst.msk [vmem:[#allocation2 + $0x3b8] sm:$0xff] %vm294, -inf
          %415 = vst.msk [vmem:[#allocation2 + $0x3c0] sm:$0xff] %vm294, -inf
          %416 = vst.msk [vmem:[#allocation2 + $0x3c8] sm:$0xff] %vm294, -inf
          %417 = vst.msk [vmem:[#allocation2 + $0x3d0] sm:$0xff] %vm294, -inf
          %418 = vst.msk [vmem:[#allocation2 + $0x3d8] sm:$0xff] %vm294, -inf
          %419 = vst.msk [vmem:[#allocation2 + $0x3e0] sm:$0xff] %vm294, -inf
          %420 = vst.msk [vmem:[#allocation2 + $0x3e8] sm:$0xff] %vm294, -inf
          %421 = vst.msk [vmem:[#allocation2 + $0x3f0] sm:$0xff] %vm294, -inf
          %422 = vst.msk [vmem:[#allocation2 + $0x3f8] sm:$0xff] %vm294, -inf
        $region52: #{stn3d_forward.2} parent=43 // pred_fallthru
          _
        %v423 = vld [vmem:[%s283] sm:$0xf]
        %v424 = vpack.c.bf16 %v423, %v423
        %v425 = vld [vmem:[%s1] sm:$0xf]
        %v426 = vld [vmem:[%s1 + $0x4] sm:$0xf]
        %v427 = vld [vmem:[%s1 + $0x8] sm:$0xf]
        %v428 = vld [vmem:[%s1 + $0xc] sm:$0xf]
        %v429 = vld [vmem:[%s1 + $0x10] sm:$0xf]
        %v430 = vld [vmem:[%s1 + $0x14] sm:$0xf]
        %v431 = vld [vmem:[%s1 + $0x18] sm:$0xf]
        %v432 = vld [vmem:[%s1 + $0x1c] sm:$0xf]
        %v433 = vld [vmem:[%s2] sm:$0xff]
        %v434 = vld [vmem:[%s2 + $0x8] sm:$0xff]
        %v435 = vld [vmem:[%s2 + $0x10] sm:$0xff]
        %v436 = vld [vmem:[%s2 + $0x18] sm:$0xff]
        %v437 = vld [vmem:[%s2 + $0x20] sm:$0xff]
        %v438 = vld [vmem:[%s2 + $0x28] sm:$0xff]
        %v439 = vld [vmem:[%s2 + $0x30] sm:$0xff]
        %v440 = vld [vmem:[%s2 + $0x38] sm:$0xff]
        %442 = vset.pattern.permute.xlu0 0
        %443 = vperm.xlu0 %442, %v433
        %v444 = vpop.permute.xlu0 %443
        %447 = vset.pattern.permute.xlu0 0
        %448 = vperm.xlu0 %447, %v434
        %v449 = vpop.permute.xlu0 %448
        %452 = vset.pattern.permute.xlu0 0
        %453 = vperm.xlu0 %452, %v435
        %v454 = vpop.permute.xlu0 %453
        %457 = vset.pattern.permute.xlu0 0
        %458 = vperm.xlu0 %457, %v436
        %v459 = vpop.permute.xlu0 %458
        %462 = vset.pattern.permute.xlu0 0
        %463 = vperm.xlu0 %462, %v437
        %v464 = vpop.permute.xlu0 %463
        %467 = vset.pattern.permute.xlu0 0
        %468 = vperm.xlu0 %467, %v438
        %v469 = vpop.permute.xlu0 %468
        %472 = vset.pattern.permute.xlu0 0
        %473 = vperm.xlu0 %472, %v439
        %v474 = vpop.permute.xlu0 %473
        %477 = vset.pattern.permute.xlu0 0
        %478 = vperm.xlu0 %477, %v440
        %v479 = vpop.permute.xlu0 %478
        %v489 = vunpack.c.l.b16 %v425
        %v490 = vunpack.c.l.b16 %v426
        %v491 = vunpack.c.l.b16 %v427
        %v492 = vunpack.c.l.b16 %v428
        %v493 = vunpack.c.l.b16 %v429
        %v494 = vunpack.c.l.b16 %v430
        %v495 = vunpack.c.l.b16 %v431
        %v496 = vunpack.c.l.b16 %v432
        %v497 = vpack.c.b16 %v490, %v489
        %v498 = vpack.c.b16 %v492, %v491
        %v499 = vpack.c.b16 %v494, %v493
        %v500 = vpack.c.b16 %v496, %v495
        %vm501 = vcmask 31744
        %v503 = vsel %vm501, %v497, 0
        %v506 = vsel %vm501, %v498, 0
        %v509 = vsel %vm501, %v499, 0
        %v512 = vsel %vm501, %v500, 0
        %vm514 = vcmask 1041408
        %v516 = vsel %vm514, %v424, 0
        %518 = vmatpush.bf16.msra.mxu0 0
        %519 = vmatpush.bf16.msra.mxu0 0
        %520 = vmatpush.bf16.msra.mxu0 0
        %521 = vmatpush.bf16.msra.mxu0 0
        %522 = vmatpush.bf16.msra.mxu0 0
        %523 = vmatpush.bf16.msra.mxu0 0
        %524 = vmatpush.bf16.msra.mxu0 0
        %525 = vmatpush.bf16.msra.mxu0 %v516
        %526 = vmatmul.bf16.gmra.mxu0 %v503
        %v527 = vpop.f32.mrf.mxu0
        %v528 = vadd.f32 %v444, %v527
        %v529 = vpop.f32.mrf.mxu0
        %v530 = vadd.f32 %v449, %v529
        %531 = vmatmul.bf16.gmra.mxu0 %v506
        %v532 = vpop.f32.mrf.mxu0
        %v533 = vadd.f32 %v454, %v532
        %v534 = vpop.f32.mrf.mxu0
        %v535 = vadd.f32 %v459, %v534
        %536 = vmatmul.bf16.gmra.mxu0 %v509
        %v537 = vpop.f32.mrf.mxu0
        %v538 = vadd.f32 %v464, %v537
        %v539 = vpop.f32.mrf.mxu0
        %v540 = vadd.f32 %v469, %v539
        %541 = vmatmul.bf16.gmra.mxu0 %v512
        %v542 = vpop.f32.mrf.mxu0
        %v543 = vadd.f32 %v474, %v542
        %v544 = vpop.f32.mrf.mxu0
        %v545 = vadd.f32 %v479, %v544
        %546 = vdwg.mxu0
        %v547 = vmax.f32 %v528, 0.0
        %v548 = vmax.f32 %v530, 0.0
        %v549 = vmax.f32 %v533, 0.0
        %v550 = vmax.f32 %v535, 0.0
        %v551 = vmax.f32 %v538, 0.0
        %v552 = vmax.f32 %v540, 0.0
        %v553 = vmax.f32 %v543, 0.0
        %v554 = vmax.f32 %v545, 0.0
        %v555 = vpack.c.bf16 %v548, %v547
        %v556 = vpack.c.bf16 %v550, %v549
        %v557 = vpack.c.bf16 %v552, %v551
        %v558 = vpack.c.bf16 %v554, %v553
        %v559 = vld [vmem:[%s3] sm:$0xf]
        %v560 = vld [vmem:[%s3 + $0x4] sm:$0xf]
        %v561 = vld [vmem:[%s3 + $0x8] sm:$0xf]
        %v562 = vld [vmem:[%s3 + $0xc] sm:$0xf]
        %v563 = vld [vmem:[%s3 + $0x10] sm:$0xf]
        %v564 = vld [vmem:[%s3 + $0x14] sm:$0xf]
        %v565 = vld [vmem:[%s3 + $0x18] sm:$0xf]
        %v566 = vld [vmem:[%s3 + $0x1c] sm:$0xf]
        %v567 = vld [vmem:[%s3 + $0x20] sm:$0xf]
        %v568 = vld [vmem:[%s3 + $0x24] sm:$0xf]
        %v569 = vld [vmem:[%s3 + $0x28] sm:$0xf]
        %v570 = vld [vmem:[%s3 + $0x2c] sm:$0xf]
        %v571 = vld [vmem:[%s3 + $0x30] sm:$0xf]
        %v572 = vld [vmem:[%s3 + $0x34] sm:$0xf]
        %v573 = vld [vmem:[%s3 + $0x38] sm:$0xf]
        %v574 = vld [vmem:[%s3 + $0x3c] sm:$0xf]
        %v575 = vld [vmem:[%s4] sm:$0xff]
        %v576 = vld [vmem:[%s4 + $0x8] sm:$0xff]
        %v577 = vld [vmem:[%s4 + $0x10] sm:$0xff]
        %v578 = vld [vmem:[%s4 + $0x18] sm:$0xff]
        %v579 = vld [vmem:[%s4 + $0x20] sm:$0xff]
        %v580 = vld [vmem:[%s4 + $0x28] sm:$0xff]
        %v581 = vld [vmem:[%s4 + $0x30] sm:$0xff]
        %v582 = vld [vmem:[%s4 + $0x38] sm:$0xff]
        %v583 = vld [vmem:[%s4 + $0x40] sm:$0xff]
        %v584 = vld [vmem:[%s4 + $0x48] sm:$0xff]
        %v585 = vld [vmem:[%s4 + $0x50] sm:$0xff]
        %v586 = vld [vmem:[%s4 + $0x58] sm:$0xff]
        %v587 = vld [vmem:[%s4 + $0x60] sm:$0xff]
        %v588 = vld [vmem:[%s4 + $0x68] sm:$0xff]
        %v589 = vld [vmem:[%s4 + $0x70] sm:$0xff]
        %v590 = vld [vmem:[%s4 + $0x78] sm:$0xff]
        %592 = vset.pattern.permute.xlu0 0
        %593 = vperm.xlu0 %592, %v575
        %v594 = vpop.permute.xlu0 %593
        %597 = vset.pattern.permute.xlu0 0
        %598 = vperm.xlu0 %597, %v576
        %v599 = vpop.permute.xlu0 %598
        %602 = vset.pattern.permute.xlu0 0
        %603 = vperm.xlu0 %602, %v577
        %v604 = vpop.permute.xlu0 %603
        %607 = vset.pattern.permute.xlu0 0
        %608 = vperm.xlu0 %607, %v578
        %v609 = vpop.permute.xlu0 %608
        %612 = vset.pattern.permute.xlu0 0
        %613 = vperm.xlu0 %612, %v579
        %v614 = vpop.permute.xlu0 %613
        %617 = vset.pattern.permute.xlu0 0
        %618 = vperm.xlu0 %617, %v580
        %v619 = vpop.permute.xlu0 %618
        %622 = vset.pattern.permute.xlu0 0
        %623 = vperm.xlu0 %622, %v581
        %v624 = vpop.permute.xlu0 %623
        %627 = vset.pattern.permute.xlu0 0
        %628 = vperm.xlu0 %627, %v582
        %v629 = vpop.permute.xlu0 %628
        %632 = vset.pattern.permute.xlu0 0
        %633 = vperm.xlu0 %632, %v583
        %v634 = vpop.permute.xlu0 %633
        %637 = vset.pattern.permute.xlu0 0
        %638 = vperm.xlu0 %637, %v584
        %v639 = vpop.permute.xlu0 %638
        %642 = vset.pattern.permute.xlu0 0
        %643 = vperm.xlu0 %642, %v585
        %v644 = vpop.permute.xlu0 %643
        %647 = vset.pattern.permute.xlu0 0
        %648 = vperm.xlu0 %647, %v586
        %v649 = vpop.permute.xlu0 %648
        %652 = vset.pattern.permute.xlu0 0
        %653 = vperm.xlu0 %652, %v587
        %v654 = vpop.permute.xlu0 %653
        %657 = vset.pattern.permute.xlu0 0
        %658 = vperm.xlu0 %657, %v588
        %v659 = vpop.permute.xlu0 %658
        %662 = vset.pattern.permute.xlu0 0
        %663 = vperm.xlu0 %662, %v589
        %v664 = vpop.permute.xlu0 %663
        %667 = vset.pattern.permute.xlu0 0
        %668 = vperm.xlu0 %667, %v590
        %v669 = vpop.permute.xlu0 %668
        %v687 = vunpack.c.l.b16 %v559
        %v688 = vunpack.c.l.b16 %v560
        %v689 = vunpack.c.l.b16 %v561
        %v690 = vunpack.c.l.b16 %v562
        %v691 = vunpack.c.l.b16 %v563
        %v692 = vunpack.c.l.b16 %v564
        %v693 = vunpack.c.l.b16 %v565
        %v694 = vunpack.c.l.b16 %v566
        %v695 = vunpack.c.l.b16 %v567
        %v696 = vunpack.c.l.b16 %v568
        %v697 = vunpack.c.l.b16 %v569
        %v698 = vunpack.c.l.b16 %v570
        %v699 = vunpack.c.l.b16 %v571
        %v700 = vunpack.c.l.b16 %v572
        %v701 = vunpack.c.l.b16 %v573
        %v702 = vunpack.c.l.b16 %v574
        %v703 = vpack.c.b16 %v688, %v687
        %v704 = vpack.c.b16 %v690, %v689
        %v705 = vpack.c.b16 %v692, %v691
        %v706 = vpack.c.b16 %v694, %v693
        %v707 = vpack.c.b16 %v696, %v695
        %v708 = vpack.c.b16 %v698, %v697
        %v709 = vpack.c.b16 %v700, %v699
        %v710 = vpack.c.b16 %v702, %v701
        %vm711 = vcmask 523264
        %v713 = vsel %vm711, %v703, 0
        %v716 = vsel %vm711, %v704, 0
        %v719 = vsel %vm711, %v705, 0
        %v722 = vsel %vm711, %v706, 0
        %v725 = vsel %vm711, %v707, 0
        %v728 = vsel %vm711, %v708, 0
        %v731 = vsel %vm711, %v709, 0
        %v734 = vsel %vm711, %v710, 0
        %736 = vmatpush.bf16.msra.mxu0 0
        %737 = vmatpush.bf16.msra.mxu0 0
        %738 = vmatpush.bf16.msra.mxu0 0
        %739 = vmatpush.bf16.msra.mxu0 0
        %740 = vmatpush.bf16.msra.mxu0 %v558
        %741 = vmatpush.bf16.msra.mxu0 %v557
        %742 = vmatpush.bf16.msra.mxu0 %v556
        %743 = vmatpush.bf16.msra.mxu0 %v555
        %744 = vmatmul.bf16.gmra.mxu0 %v713
        %v745 = vpop.f32.mrf.mxu0
        %v746 = vadd.f32 %v594, %v745
        %v747 = vpop.f32.mrf.mxu0
        %v748 = vadd.f32 %v599, %v747
        %749 = vmatmul.bf16.gmra.mxu0 %v716
        %v750 = vpop.f32.mrf.mxu0
        %v751 = vadd.f32 %v604, %v750
        %v752 = vpop.f32.mrf.mxu0
        %v753 = vadd.f32 %v609, %v752
        %754 = vmatmul.bf16.gmra.mxu0 %v719
        %v755 = vpop.f32.mrf.mxu0
        %v756 = vadd.f32 %v614, %v755
        %v757 = vpop.f32.mrf.mxu0
        %v758 = vadd.f32 %v619, %v757
        %759 = vmatmul.bf16.gmra.mxu0 %v722
        %v760 = vpop.f32.mrf.mxu0
        %v761 = vadd.f32 %v624, %v760
        %v762 = vpop.f32.mrf.mxu0
        %v763 = vadd.f32 %v629, %v762
        %764 = vmatmul.bf16.gmra.mxu0 %v725
        %v765 = vpop.f32.mrf.mxu0
        %v766 = vadd.f32 %v634, %v765
        %v767 = vpop.f32.mrf.mxu0
        %v768 = vadd.f32 %v639, %v767
        %769 = vmatmul.bf16.gmra.mxu0 %v728
        %v770 = vpop.f32.mrf.mxu0
        %v771 = vadd.f32 %v644, %v770
        %v772 = vpop.f32.mrf.mxu0
        %v773 = vadd.f32 %v649, %v772
        %774 = vmatmul.bf16.gmra.mxu0 %v731
        %v775 = vpop.f32.mrf.mxu0
        %v776 = vadd.f32 %v654, %v775
        %v777 = vpop.f32.mrf.mxu0
        %v778 = vadd.f32 %v659, %v777
        %779 = vmatmul.bf16.gmra.mxu0 %v734
        %v780 = vpop.f32.mrf.mxu0
        %v781 = vadd.f32 %v664, %v780
        %v782 = vpop.f32.mrf.mxu0
        %v783 = vadd.f32 %v669, %v782
        %784 = vdwg.mxu0
        %v785 = vmax.f32 %v746, 0.0
        %v786 = vmax.f32 %v748, 0.0
        %v787 = vmax.f32 %v751, 0.0
        %v788 = vmax.f32 %v753, 0.0
        %v789 = vmax.f32 %v756, 0.0
        %v790 = vmax.f32 %v758, 0.0
        %v791 = vmax.f32 %v761, 0.0
        %v792 = vmax.f32 %v763, 0.0
        %v793 = vmax.f32 %v766, 0.0
        %v794 = vmax.f32 %v768, 0.0
        %v795 = vmax.f32 %v771, 0.0
        %v796 = vmax.f32 %v773, 0.0
        %v797 = vmax.f32 %v776, 0.0
        %v798 = vmax.f32 %v778, 0.0
        %v799 = vmax.f32 %v781, 0.0
        %v800 = vmax.f32 %v783, 0.0
        %v801 = vpack.c.bf16 %v786, %v785
        %v802 = vpack.c.bf16 %v788, %v787
        %v803 = vpack.c.bf16 %v790, %v789
        %v804 = vpack.c.bf16 %v792, %v791
        %v805 = vpack.c.bf16 %v794, %v793
        %v806 = vpack.c.bf16 %v796, %v795
        %v807 = vpack.c.bf16 %v798, %v797
        %v808 = vpack.c.bf16 %v800, %v799
        %v809 = vld [vmem:[#allocation3] sm:$0xf]
        %v810 = vld [vmem:[#allocation3 + $0x4] sm:$0xf]
        %v811 = vld [vmem:[#allocation3 + $0x8] sm:$0xf]
        %v812 = vld [vmem:[#allocation3 + $0xc] sm:$0xf]
        %v813 = vld [vmem:[#allocation3 + $0x10] sm:$0xf]
        %v814 = vld [vmem:[#allocation3 + $0x14] sm:$0xf]
        %v815 = vld [vmem:[#allocation3 + $0x18] sm:$0xf]
        %v816 = vld [vmem:[#allocation3 + $0x1c] sm:$0xf]
        %v817 = vld [vmem:[#allocation3 + $0x20] sm:$0xf]
        %v818 = vld [vmem:[#allocation3 + $0x24] sm:$0xf]
        %v819 = vld [vmem:[#allocation3 + $0x28] sm:$0xf]
        %v820 = vld [vmem:[#allocation3 + $0x2c] sm:$0xf]
        %v821 = vld [vmem:[#allocation3 + $0x30] sm:$0xf]
        %v822 = vld [vmem:[#allocation3 + $0x34] sm:$0xf]
        %v823 = vld [vmem:[#allocation3 + $0x38] sm:$0xf]
        %v824 = vld [vmem:[#allocation3 + $0x3c] sm:$0xf]
        %v825 = vld [vmem:[#allocation3 + $0x40] sm:$0xf]
        %v826 = vld [vmem:[#allocation3 + $0x44] sm:$0xf]
        %v827 = vld [vmem:[#allocation3 + $0x48] sm:$0xf]
        %v828 = vld [vmem:[#allocation3 + $0x4c] sm:$0xf]
        %v829 = vld [vmem:[#allocation3 + $0x50] sm:$0xf]
        %v830 = vld [vmem:[#allocation3 + $0x54] sm:$0xf]
        %v831 = vld [vmem:[#allocation3 + $0x58] sm:$0xf]
        %v832 = vld [vmem:[#allocation3 + $0x5c] sm:$0xf]
        %v833 = vld [vmem:[#allocation3 + $0x60] sm:$0xf]
        %v834 = vld [vmem:[#allocation3 + $0x64] sm:$0xf]
        %v835 = vld [vmem:[#allocation3 + $0x68] sm:$0xf]
        %v836 = vld [vmem:[#allocation3 + $0x6c] sm:$0xf]
        %v837 = vld [vmem:[#allocation3 + $0x70] sm:$0xf]
        %v838 = vld [vmem:[#allocation3 + $0x74] sm:$0xf]
        %v839 = vld [vmem:[#allocation3 + $0x78] sm:$0xf]
        %v840 = vld [vmem:[#allocation3 + $0x7c] sm:$0xf]
        %v841 = vld [vmem:[#allocation3 + $0x80] sm:$0xf]
        %v842 = vld [vmem:[#allocation3 + $0x84] sm:$0xf]
        %v843 = vld [vmem:[#allocation3 + $0x88] sm:$0xf]
        %v844 = vld [vmem:[#allocation3 + $0x8c] sm:$0xf]
        %v845 = vld [vmem:[#allocation3 + $0x90] sm:$0xf]
        %v846 = vld [vmem:[#allocation3 + $0x94] sm:$0xf]
        %v847 = vld [vmem:[#allocation3 + $0x98] sm:$0xf]
        %v848 = vld [vmem:[#allocation3 + $0x9c] sm:$0xf]
        %v849 = vld [vmem:[#allocation3 + $0xa0] sm:$0xf]
        %v850 = vld [vmem:[#allocation3 + $0xa4] sm:$0xf]
        %v851 = vld [vmem:[#allocation3 + $0xa8] sm:$0xf]
        %v852 = vld [vmem:[#allocation3 + $0xac] sm:$0xf]
        %v853 = vld [vmem:[#allocation3 + $0xb0] sm:$0xf]
        %v854 = vld [vmem:[#allocation3 + $0xb4] sm:$0xf]
        %v855 = vld [vmem:[#allocation3 + $0xb8] sm:$0xf]
        %v856 = vld [vmem:[#allocation3 + $0xbc] sm:$0xf]
        %v857 = vld [vmem:[#allocation3 + $0xc0] sm:$0xf]
        %v858 = vld [vmem:[#allocation3 + $0xc4] sm:$0xf]
        %v859 = vld [vmem:[#allocation3 + $0xc8] sm:$0xf]
        %v860 = vld [vmem:[#allocation3 + $0xcc] sm:$0xf]
        %v861 = vld [vmem:[#allocation3 + $0xd0] sm:$0xf]
        %v862 = vld [vmem:[#allocation3 + $0xd4] sm:$0xf]
        %v863 = vld [vmem:[#allocation3 + $0xd8] sm:$0xf]
        %v864 = vld [vmem:[#allocation3 + $0xdc] sm:$0xf]
        %v865 = vld [vmem:[#allocation3 + $0xe0] sm:$0xf]
        %v866 = vld [vmem:[#allocation3 + $0xe4] sm:$0xf]
        %v867 = vld [vmem:[#allocation3 + $0xe8] sm:$0xf]
        %v868 = vld [vmem:[#allocation3 + $0xec] sm:$0xf]
        %v869 = vld [vmem:[#allocation3 + $0xf0] sm:$0xf]
        %v870 = vld [vmem:[#allocation3 + $0xf4] sm:$0xf]
        %v871 = vld [vmem:[#allocation3 + $0xf8] sm:$0xf]
        %v872 = vld [vmem:[#allocation3 + $0xfc] sm:$0xf]
        %v873 = vld [vmem:[#allocation3 + $0x100] sm:$0xf]
        %v874 = vld [vmem:[#allocation3 + $0x104] sm:$0xf]
        %v875 = vld [vmem:[#allocation3 + $0x108] sm:$0xf]
        %v876 = vld [vmem:[#allocation3 + $0x10c] sm:$0xf]
        %v877 = vld [vmem:[#allocation3 + $0x110] sm:$0xf]
        %v878 = vld [vmem:[#allocation3 + $0x114] sm:$0xf]
        %v879 = vld [vmem:[#allocation3 + $0x118] sm:$0xf]
        %v880 = vld [vmem:[#allocation3 + $0x11c] sm:$0xf]
        %v881 = vld [vmem:[#allocation3 + $0x120] sm:$0xf]
        %v882 = vld [vmem:[#allocation3 + $0x124] sm:$0xf]
        %v883 = vld [vmem:[#allocation3 + $0x128] sm:$0xf]
        %v884 = vld [vmem:[#allocation3 + $0x12c] sm:$0xf]
        %v885 = vld [vmem:[#allocation3 + $0x130] sm:$0xf]
        %v886 = vld [vmem:[#allocation3 + $0x134] sm:$0xf]
        %v887 = vld [vmem:[#allocation3 + $0x138] sm:$0xf]
        %v888 = vld [vmem:[#allocation3 + $0x13c] sm:$0xf]
        %v889 = vld [vmem:[#allocation3 + $0x140] sm:$0xf]
        %v890 = vld [vmem:[#allocation3 + $0x144] sm:$0xf]
        %v891 = vld [vmem:[#allocation3 + $0x148] sm:$0xf]
        %v892 = vld [vmem:[#allocation3 + $0x14c] sm:$0xf]
        %v893 = vld [vmem:[#allocation3 + $0x150] sm:$0xf]
        %v894 = vld [vmem:[#allocation3 + $0x154] sm:$0xf]
        %v895 = vld [vmem:[#allocation3 + $0x158] sm:$0xf]
        %v896 = vld [vmem:[#allocation3 + $0x15c] sm:$0xf]
        %v897 = vld [vmem:[#allocation3 + $0x160] sm:$0xf]
        %v898 = vld [vmem:[#allocation3 + $0x164] sm:$0xf]
        %v899 = vld [vmem:[#allocation3 + $0x168] sm:$0xf]
        %v900 = vld [vmem:[#allocation3 + $0x16c] sm:$0xf]
        %v901 = vld [vmem:[#allocation3 + $0x170] sm:$0xf]
        %v902 = vld [vmem:[#allocation3 + $0x174] sm:$0xf]
        %v903 = vld [vmem:[#allocation3 + $0x178] sm:$0xf]
        %v904 = vld [vmem:[#allocation3 + $0x17c] sm:$0xf]
        %v905 = vld [vmem:[#allocation3 + $0x180] sm:$0xf]
        %v906 = vld [vmem:[#allocation3 + $0x184] sm:$0xf]
        %v907 = vld [vmem:[#allocation3 + $0x188] sm:$0xf]
        %v908 = vld [vmem:[#allocation3 + $0x18c] sm:$0xf]
        %v909 = vld [vmem:[#allocation3 + $0x190] sm:$0xf]
        %v910 = vld [vmem:[#allocation3 + $0x194] sm:$0xf]
        %v911 = vld [vmem:[#allocation3 + $0x198] sm:$0xf]
        %v912 = vld [vmem:[#allocation3 + $0x19c] sm:$0xf]
        %v913 = vld [vmem:[#allocation3 + $0x1a0] sm:$0xf]
        %v914 = vld [vmem:[#allocation3 + $0x1a4] sm:$0xf]
        %v915 = vld [vmem:[#allocation3 + $0x1a8] sm:$0xf]
        %v916 = vld [vmem:[#allocation3 + $0x1ac] sm:$0xf]
        %v917 = vld [vmem:[#allocation3 + $0x1b0] sm:$0xf]
        %v918 = vld [vmem:[#allocation3 + $0x1b4] sm:$0xf]
        %v919 = vld [vmem:[#allocation3 + $0x1b8] sm:$0xf]
        %v920 = vld [vmem:[#allocation3 + $0x1bc] sm:$0xf]
        %v921 = vld [vmem:[#allocation3 + $0x1c0] sm:$0xf]
        %v922 = vld [vmem:[#allocation3 + $0x1c4] sm:$0xf]
        %v923 = vld [vmem:[#allocation3 + $0x1c8] sm:$0xf]
        %v924 = vld [vmem:[#allocation3 + $0x1cc] sm:$0xf]
        %v925 = vld [vmem:[#allocation3 + $0x1d0] sm:$0xf]
        %v926 = vld [vmem:[#allocation3 + $0x1d4] sm:$0xf]
        %v927 = vld [vmem:[#allocation3 + $0x1d8] sm:$0xf]
        %v928 = vld [vmem:[#allocation3 + $0x1dc] sm:$0xf]
        %v929 = vld [vmem:[#allocation3 + $0x1e0] sm:$0xf]
        %v930 = vld [vmem:[#allocation3 + $0x1e4] sm:$0xf]
        %v931 = vld [vmem:[#allocation3 + $0x1e8] sm:$0xf]
        %v932 = vld [vmem:[#allocation3 + $0x1ec] sm:$0xf]
        %v933 = vld [vmem:[#allocation3 + $0x1f0] sm:$0xf]
        %v934 = vld [vmem:[#allocation3 + $0x1f4] sm:$0xf]
        %v935 = vld [vmem:[#allocation3 + $0x1f8] sm:$0xf]
        %v936 = vld [vmem:[#allocation3 + $0x1fc] sm:$0xf]
        %v1065 = vunpack.c.l.b16 %v809
        %v1066 = vunpack.c.l.b16 %v810
        %v1067 = vunpack.c.l.b16 %v811
        %v1068 = vunpack.c.l.b16 %v812
        %v1069 = vunpack.c.l.b16 %v813
        %v1070 = vunpack.c.l.b16 %v814
        %v1071 = vunpack.c.l.b16 %v815
        %v1072 = vunpack.c.l.b16 %v816
        %v1073 = vunpack.c.l.b16 %v817
        %v1074 = vunpack.c.l.b16 %v818
        %v1075 = vunpack.c.l.b16 %v819
        %v1076 = vunpack.c.l.b16 %v820
        %v1077 = vunpack.c.l.b16 %v821
        %v1078 = vunpack.c.l.b16 %v822
        %v1079 = vunpack.c.l.b16 %v823
        %v1080 = vunpack.c.l.b16 %v824
        %v1081 = vunpack.c.l.b16 %v825
        %v1082 = vunpack.c.l.b16 %v826
        %v1083 = vunpack.c.l.b16 %v827
        %v1084 = vunpack.c.l.b16 %v828
        %v1085 = vunpack.c.l.b16 %v829
        %v1086 = vunpack.c.l.b16 %v830
        %v1087 = vunpack.c.l.b16 %v831
        %v1088 = vunpack.c.l.b16 %v832
        %v1089 = vunpack.c.l.b16 %v833
        %v1090 = vunpack.c.l.b16 %v834
        %v1091 = vunpack.c.l.b16 %v835
        %v1092 = vunpack.c.l.b16 %v836
        %v1093 = vunpack.c.l.b16 %v837
        %v1094 = vunpack.c.l.b16 %v838
        %v1095 = vunpack.c.l.b16 %v839
        %v1096 = vunpack.c.l.b16 %v840
        %v1097 = vunpack.c.l.b16 %v841
        %v1098 = vunpack.c.l.b16 %v842
        %v1099 = vunpack.c.l.b16 %v843
        %v1100 = vunpack.c.l.b16 %v844
        %v1101 = vunpack.c.l.b16 %v845
        %v1102 = vunpack.c.l.b16 %v846
        %v1103 = vunpack.c.l.b16 %v847
        %v1104 = vunpack.c.l.b16 %v848
        %v1105 = vunpack.c.l.b16 %v849
        %v1106 = vunpack.c.l.b16 %v850
        %v1107 = vunpack.c.l.b16 %v851
        %v1108 = vunpack.c.l.b16 %v852
        %v1109 = vunpack.c.l.b16 %v853
        %v1110 = vunpack.c.l.b16 %v854
        %v1111 = vunpack.c.l.b16 %v855
        %v1112 = vunpack.c.l.b16 %v856
        %v1113 = vunpack.c.l.b16 %v857
        %v1114 = vunpack.c.l.b16 %v858
        %v1115 = vunpack.c.l.b16 %v859
        %v1116 = vunpack.c.l.b16 %v860
        %v1117 = vunpack.c.l.b16 %v861
        %v1118 = vunpack.c.l.b16 %v862
        %v1119 = vunpack.c.l.b16 %v863
        %v1120 = vunpack.c.l.b16 %v864
        %v1121 = vunpack.c.l.b16 %v865
        %v1122 = vunpack.c.l.b16 %v866
        %v1123 = vunpack.c.l.b16 %v867
        %v1124 = vunpack.c.l.b16 %v868
        %v1125 = vunpack.c.l.b16 %v869
        %v1126 = vunpack.c.l.b16 %v870
        %v1127 = vunpack.c.l.b16 %v871
        %v1128 = vunpack.c.l.b16 %v872
        %v1129 = vunpack.c.l.b16 %v873
        %v1130 = vunpack.c.l.b16 %v874
        %v1131 = vunpack.c.l.b16 %v875
        %v1132 = vunpack.c.l.b16 %v876
        %v1133 = vunpack.c.l.b16 %v877
        %v1134 = vunpack.c.l.b16 %v878
        %v1135 = vunpack.c.l.b16 %v879
        %v1136 = vunpack.c.l.b16 %v880
        %v1137 = vunpack.c.l.b16 %v881
        %v1138 = vunpack.c.l.b16 %v882
        %v1139 = vunpack.c.l.b16 %v883
        %v1140 = vunpack.c.l.b16 %v884
        %v1141 = vunpack.c.l.b16 %v885
        %v1142 = vunpack.c.l.b16 %v886
        %v1143 = vunpack.c.l.b16 %v887
        %v1144 = vunpack.c.l.b16 %v888
        %v1145 = vunpack.c.l.b16 %v889
        %v1146 = vunpack.c.l.b16 %v890
        %v1147 = vunpack.c.l.b16 %v891
        %v1148 = vunpack.c.l.b16 %v892
        %v1149 = vunpack.c.l.b16 %v893
        %v1150 = vunpack.c.l.b16 %v894
        %v1151 = vunpack.c.l.b16 %v895
        %v1152 = vunpack.c.l.b16 %v896
        %v1153 = vunpack.c.l.b16 %v897
        %v1154 = vunpack.c.l.b16 %v898
        %v1155 = vunpack.c.l.b16 %v899
        %v1156 = vunpack.c.l.b16 %v900
        %v1157 = vunpack.c.l.b16 %v901
        %v1158 = vunpack.c.l.b16 %v902
        %v1159 = vunpack.c.l.b16 %v903
        %v1160 = vunpack.c.l.b16 %v904
        %v1161 = vunpack.c.l.b16 %v905
        %v1162 = vunpack.c.l.b16 %v906
        %v1163 = vunpack.c.l.b16 %v907
        %v1164 = vunpack.c.l.b16 %v908
        %v1165 = vunpack.c.l.b16 %v909
        %v1166 = vunpack.c.l.b16 %v910
        %v1167 = vunpack.c.l.b16 %v911
        %v1168 = vunpack.c.l.b16 %v912
        %v1169 = vunpack.c.l.b16 %v913
        %v1170 = vunpack.c.l.b16 %v914
        %v1171 = vunpack.c.l.b16 %v915
        %v1172 = vunpack.c.l.b16 %v916
        %v1173 = vunpack.c.l.b16 %v917
        %v1174 = vunpack.c.l.b16 %v918
        %v1175 = vunpack.c.l.b16 %v919
        %v1176 = vunpack.c.l.b16 %v920
        %v1177 = vunpack.c.l.b16 %v921
        %v1178 = vunpack.c.l.b16 %v922
        %v1179 = vunpack.c.l.b16 %v923
        %v1180 = vunpack.c.l.b16 %v924
        %v1181 = vunpack.c.l.b16 %v925
        %v1182 = vunpack.c.l.b16 %v926
        %v1183 = vunpack.c.l.b16 %v927
        %v1184 = vunpack.c.l.b16 %v928
        %v1185 = vunpack.c.l.b16 %v929
        %v1186 = vunpack.c.l.b16 %v930
        %v1187 = vunpack.c.l.b16 %v931
        %v1188 = vunpack.c.l.b16 %v932
        %v1189 = vunpack.c.l.b16 %v933
        %v1190 = vunpack.c.l.b16 %v934
        %v1191 = vunpack.c.l.b16 %v935
        %v1192 = vunpack.c.l.b16 %v936
        %v1193 = vpack.c.b16 %v1066, %v1065
        %v1194 = vpack.c.b16 %v1068, %v1067
        %v1195 = vpack.c.b16 %v1070, %v1069
        %v1196 = vpack.c.b16 %v1072, %v1071
        %v1197 = vpack.c.b16 %v1074, %v1073
        %v1198 = vpack.c.b16 %v1076, %v1075
        %v1199 = vpack.c.b16 %v1078, %v1077
        %v1200 = vpack.c.b16 %v1080, %v1079
        %v1201 = vpack.c.b16 %v1082, %v1081
        %v1202 = vpack.c.b16 %v1084, %v1083
        %v1203 = vpack.c.b16 %v1086, %v1085
        %v1204 = vpack.c.b16 %v1088, %v1087
        %v1205 = vpack.c.b16 %v1090, %v1089
        %v1206 = vpack.c.b16 %v1092, %v1091
        %v1207 = vpack.c.b16 %v1094, %v1093
        %v1208 = vpack.c.b16 %v1096, %v1095
        %v1209 = vpack.c.b16 %v1098, %v1097
        %v1210 = vpack.c.b16 %v1100, %v1099
        %v1211 = vpack.c.b16 %v1102, %v1101
        %v1212 = vpack.c.b16 %v1104, %v1103
        %v1213 = vpack.c.b16 %v1106, %v1105
        %v1214 = vpack.c.b16 %v1108, %v1107
        %v1215 = vpack.c.b16 %v1110, %v1109
        %v1216 = vpack.c.b16 %v1112, %v1111
        %v1217 = vpack.c.b16 %v1114, %v1113
        %v1218 = vpack.c.b16 %v1116, %v1115
        %v1219 = vpack.c.b16 %v1118, %v1117
        %v1220 = vpack.c.b16 %v1120, %v1119
        %v1221 = vpack.c.b16 %v1122, %v1121
        %v1222 = vpack.c.b16 %v1124, %v1123
        %v1223 = vpack.c.b16 %v1126, %v1125
        %v1224 = vpack.c.b16 %v1128, %v1127
        %v1225 = vpack.c.b16 %v1130, %v1129
        %v1226 = vpack.c.b16 %v1132, %v1131
        %v1227 = vpack.c.b16 %v1134, %v1133
        %v1228 = vpack.c.b16 %v1136, %v1135
        %v1229 = vpack.c.b16 %v1138, %v1137
        %v1230 = vpack.c.b16 %v1140, %v1139
        %v1231 = vpack.c.b16 %v1142, %v1141
        %v1232 = vpack.c.b16 %v1144, %v1143
        %v1233 = vpack.c.b16 %v1146, %v1145
        %v1234 = vpack.c.b16 %v1148, %v1147
        %v1235 = vpack.c.b16 %v1150, %v1149
        %v1236 = vpack.c.b16 %v1152, %v1151
        %v1237 = vpack.c.b16 %v1154, %v1153
        %v1238 = vpack.c.b16 %v1156, %v1155
        %v1239 = vpack.c.b16 %v1158, %v1157
        %v1240 = vpack.c.b16 %v1160, %v1159
        %v1241 = vpack.c.b16 %v1162, %v1161
        %v1242 = vpack.c.b16 %v1164, %v1163
        %v1243 = vpack.c.b16 %v1166, %v1165
        %v1244 = vpack.c.b16 %v1168, %v1167
        %v1245 = vpack.c.b16 %v1170, %v1169
        %v1246 = vpack.c.b16 %v1172, %v1171
        %v1247 = vpack.c.b16 %v1174, %v1173
        %v1248 = vpack.c.b16 %v1176, %v1175
        %v1249 = vpack.c.b16 %v1178, %v1177
        %v1250 = vpack.c.b16 %v1180, %v1179
        %v1251 = vpack.c.b16 %v1182, %v1181
        %v1252 = vpack.c.b16 %v1184, %v1183
        %v1253 = vpack.c.b16 %v1186, %v1185
        %v1254 = vpack.c.b16 %v1188, %v1187
        %v1255 = vpack.c.b16 %v1190, %v1189
        %v1256 = vpack.c.b16 %v1192, %v1191
        %1321 = vmatpush.bf16.msra.mxu0 %v808
        %1322 = vmatpush.bf16.msra.mxu0 %v807
        %1323 = vmatpush.bf16.msra.mxu0 %v806
        %1324 = vmatpush.bf16.msra.mxu0 %v805
        %1325 = vmatpush.bf16.msra.mxu0 %v804
        %1326 = vmatpush.bf16.msra.mxu0 %v803
        %1327 = vmatpush.bf16.msra.mxu0 %v802
        %1328 = vmatpush.bf16.msra.mxu0 %v801
        %1329 = vmatmul.bf16.gmra.mxu0 %v1193
        %v1330 = vpop.f32.mrf.mxu0
        %v1331 = vadd.f32 0.0, %v1330
        %v1332 = vpop.f32.mrf.mxu0
        %v1333 = vadd.f32 0.0, %v1332
        %1334 = vmatmul.bf16.gmra.mxu0 %v1194
        %v1335 = vpop.f32.mrf.mxu0
        %v1336 = vadd.f32 0.0, %v1335
        %v1337 = vpop.f32.mrf.mxu0
        %v1338 = vadd.f32 0.0, %v1337
        %1339 = vmatmul.bf16.gmra.mxu0 %v1195
        %v1340 = vpop.f32.mrf.mxu0
        %v1341 = vadd.f32 0.0, %v1340
        %v1342 = vpop.f32.mrf.mxu0
        %v1343 = vadd.f32 0.0, %v1342
        %1344 = vmatmul.bf16.gmra.mxu0 %v1196
        %v1345 = vpop.f32.mrf.mxu0
        %v1346 = vadd.f32 0.0, %v1345
        %v1347 = vpop.f32.mrf.mxu0
        %v1348 = vadd.f32 0.0, %v1347
        %1349 = vmatmul.bf16.gmra.mxu0 %v1197
        %v1350 = vpop.f32.mrf.mxu0
        %v1351 = vadd.f32 0.0, %v1350
        %v1352 = vpop.f32.mrf.mxu0
        %v1353 = vadd.f32 0.0, %v1352
        %1354 = vmatmul.bf16.gmra.mxu0 %v1198
        %v1355 = vpop.f32.mrf.mxu0
        %v1356 = vadd.f32 0.0, %v1355
        %v1357 = vpop.f32.mrf.mxu0
        %v1358 = vadd.f32 0.0, %v1357
        %1359 = vmatmul.bf16.gmra.mxu0 %v1199
        %v1360 = vpop.f32.mrf.mxu0
        %v1361 = vadd.f32 0.0, %v1360
        %v1362 = vpop.f32.mrf.mxu0
        %v1363 = vadd.f32 0.0, %v1362
        %1364 = vmatmul.bf16.gmra.mxu0 %v1200
        %v1365 = vpop.f32.mrf.mxu0
        %v1366 = vadd.f32 0.0, %v1365
        %v1367 = vpop.f32.mrf.mxu0
        %v1368 = vadd.f32 0.0, %v1367
        %1369 = vmatmul.bf16.gmra.mxu0 %v1201
        %v1370 = vpop.f32.mrf.mxu0
        %v1371 = vadd.f32 0.0, %v1370
        %v1372 = vpop.f32.mrf.mxu0
        %v1373 = vadd.f32 0.0, %v1372
        %1374 = vmatmul.bf16.gmra.mxu0 %v1202
        %v1375 = vpop.f32.mrf.mxu0
        %v1376 = vadd.f32 0.0, %v1375
        %v1377 = vpop.f32.mrf.mxu0
        %v1378 = vadd.f32 0.0, %v1377
        %1379 = vmatmul.bf16.gmra.mxu0 %v1203
        %v1380 = vpop.f32.mrf.mxu0
        %v1381 = vadd.f32 0.0, %v1380
        %v1382 = vpop.f32.mrf.mxu0
        %v1383 = vadd.f32 0.0, %v1382
        %1384 = vmatmul.bf16.gmra.mxu0 %v1204
        %v1385 = vpop.f32.mrf.mxu0
        %v1386 = vadd.f32 0.0, %v1385
        %v1387 = vpop.f32.mrf.mxu0
        %v1388 = vadd.f32 0.0, %v1387
        %1389 = vmatmul.bf16.gmra.mxu0 %v1205
        %v1390 = vpop.f32.mrf.mxu0
        %v1391 = vadd.f32 0.0, %v1390
        %v1392 = vpop.f32.mrf.mxu0
        %v1393 = vadd.f32 0.0, %v1392
        %1394 = vmatmul.bf16.gmra.mxu0 %v1206
        %v1395 = vpop.f32.mrf.mxu0
        %v1396 = vadd.f32 0.0, %v1395
        %v1397 = vpop.f32.mrf.mxu0
        %v1398 = vadd.f32 0.0, %v1397
        %1399 = vmatmul.bf16.gmra.mxu0 %v1207
        %v1400 = vpop.f32.mrf.mxu0
        %v1401 = vadd.f32 0.0, %v1400
        %v1402 = vpop.f32.mrf.mxu0
        %v1403 = vadd.f32 0.0, %v1402
        %1404 = vmatmul.bf16.gmra.mxu0 %v1208
        %v1405 = vpop.f32.mrf.mxu0
        %v1406 = vadd.f32 0.0, %v1405
        %v1407 = vpop.f32.mrf.mxu0
        %v1408 = vadd.f32 0.0, %v1407
        %1409 = vmatmul.bf16.gmra.mxu0 %v1209
        %v1410 = vpop.f32.mrf.mxu0
        %v1411 = vadd.f32 0.0, %v1410
        %v1412 = vpop.f32.mrf.mxu0
        %v1413 = vadd.f32 0.0, %v1412
        %1414 = vmatmul.bf16.gmra.mxu0 %v1210
        %v1415 = vpop.f32.mrf.mxu0
        %v1416 = vadd.f32 0.0, %v1415
        %v1417 = vpop.f32.mrf.mxu0
        %v1418 = vadd.f32 0.0, %v1417
        %1419 = vmatmul.bf16.gmra.mxu0 %v1211
        %v1420 = vpop.f32.mrf.mxu0
        %v1421 = vadd.f32 0.0, %v1420
        %v1422 = vpop.f32.mrf.mxu0
        %v1423 = vadd.f32 0.0, %v1422
        %1424 = vmatmul.bf16.gmra.mxu0 %v1212
        %v1425 = vpop.f32.mrf.mxu0
        %v1426 = vadd.f32 0.0, %v1425
        %v1427 = vpop.f32.mrf.mxu0
        %v1428 = vadd.f32 0.0, %v1427
        %1429 = vmatmul.bf16.gmra.mxu0 %v1213
        %v1430 = vpop.f32.mrf.mxu0
        %v1431 = vadd.f32 0.0, %v1430
        %v1432 = vpop.f32.mrf.mxu0
        %v1433 = vadd.f32 0.0, %v1432
        %1434 = vmatmul.bf16.gmra.mxu0 %v1214
        %v1435 = vpop.f32.mrf.mxu0
        %v1436 = vadd.f32 0.0, %v1435
        %v1437 = vpop.f32.mrf.mxu0
        %v1438 = vadd.f32 0.0, %v1437
        %1439 = vmatmul.bf16.gmra.mxu0 %v1215
        %v1440 = vpop.f32.mrf.mxu0
        %v1441 = vadd.f32 0.0, %v1440
        %v1442 = vpop.f32.mrf.mxu0
        %v1443 = vadd.f32 0.0, %v1442
        %1444 = vmatmul.bf16.gmra.mxu0 %v1216
        %v1445 = vpop.f32.mrf.mxu0
        %v1446 = vadd.f32 0.0, %v1445
        %v1447 = vpop.f32.mrf.mxu0
        %v1448 = vadd.f32 0.0, %v1447
        %1449 = vmatmul.bf16.gmra.mxu0 %v1217
        %v1450 = vpop.f32.mrf.mxu0
        %v1451 = vadd.f32 0.0, %v1450
        %v1452 = vpop.f32.mrf.mxu0
        %v1453 = vadd.f32 0.0, %v1452
        %1454 = vmatmul.bf16.gmra.mxu0 %v1218
        %v1455 = vpop.f32.mrf.mxu0
        %v1456 = vadd.f32 0.0, %v1455
        %v1457 = vpop.f32.mrf.mxu0
        %v1458 = vadd.f32 0.0, %v1457
        %1459 = vmatmul.bf16.gmra.mxu0 %v1219
        %v1460 = vpop.f32.mrf.mxu0
        %v1461 = vadd.f32 0.0, %v1460
        %v1462 = vpop.f32.mrf.mxu0
        %v1463 = vadd.f32 0.0, %v1462
        %1464 = vmatmul.bf16.gmra.mxu0 %v1220
        %v1465 = vpop.f32.mrf.mxu0
        %v1466 = vadd.f32 0.0, %v1465
        %v1467 = vpop.f32.mrf.mxu0
        %v1468 = vadd.f32 0.0, %v1467
        %1469 = vmatmul.bf16.gmra.mxu0 %v1221
        %v1470 = vpop.f32.mrf.mxu0
        %v1471 = vadd.f32 0.0, %v1470
        %v1472 = vpop.f32.mrf.mxu0
        %v1473 = vadd.f32 0.0, %v1472
        %1474 = vmatmul.bf16.gmra.mxu0 %v1222
        %v1475 = vpop.f32.mrf.mxu0
        %v1476 = vadd.f32 0.0, %v1475
        %v1477 = vpop.f32.mrf.mxu0
        %v1478 = vadd.f32 0.0, %v1477
        %1479 = vmatmul.bf16.gmra.mxu0 %v1223
        %v1480 = vpop.f32.mrf.mxu0
        %v1481 = vadd.f32 0.0, %v1480
        %v1482 = vpop.f32.mrf.mxu0
        %v1483 = vadd.f32 0.0, %v1482
        %1484 = vmatmul.bf16.gmra.mxu0 %v1224
        %v1485 = vpop.f32.mrf.mxu0
        %v1486 = vadd.f32 0.0, %v1485
        %v1487 = vpop.f32.mrf.mxu0
        %v1488 = vadd.f32 0.0, %v1487
        %1489 = vmatmul.bf16.gmra.mxu0 %v1225
        %v1490 = vpop.f32.mrf.mxu0
        %v1491 = vadd.f32 0.0, %v1490
        %v1492 = vpop.f32.mrf.mxu0
        %v1493 = vadd.f32 0.0, %v1492
        %1494 = vmatmul.bf16.gmra.mxu0 %v1226
        %v1495 = vpop.f32.mrf.mxu0
        %v1496 = vadd.f32 0.0, %v1495
        %v1497 = vpop.f32.mrf.mxu0
        %v1498 = vadd.f32 0.0, %v1497
        %1499 = vmatmul.bf16.gmra.mxu0 %v1227
        %v1500 = vpop.f32.mrf.mxu0
        %v1501 = vadd.f32 0.0, %v1500
        %v1502 = vpop.f32.mrf.mxu0
        %v1503 = vadd.f32 0.0, %v1502
        %1504 = vmatmul.bf16.gmra.mxu0 %v1228
        %v1505 = vpop.f32.mrf.mxu0
        %v1506 = vadd.f32 0.0, %v1505
        %v1507 = vpop.f32.mrf.mxu0
        %v1508 = vadd.f32 0.0, %v1507
        %1509 = vmatmul.bf16.gmra.mxu0 %v1229
        %v1510 = vpop.f32.mrf.mxu0
        %v1511 = vadd.f32 0.0, %v1510
        %v1512 = vpop.f32.mrf.mxu0
        %v1513 = vadd.f32 0.0, %v1512
        %1514 = vmatmul.bf16.gmra.mxu0 %v1230
        %v1515 = vpop.f32.mrf.mxu0
        %v1516 = vadd.f32 0.0, %v1515
        %v1517 = vpop.f32.mrf.mxu0
        %v1518 = vadd.f32 0.0, %v1517
        %1519 = vmatmul.bf16.gmra.mxu0 %v1231
        %v1520 = vpop.f32.mrf.mxu0
        %v1521 = vadd.f32 0.0, %v1520
        %v1522 = vpop.f32.mrf.mxu0
        %v1523 = vadd.f32 0.0, %v1522
        %1524 = vmatmul.bf16.gmra.mxu0 %v1232
        %v1525 = vpop.f32.mrf.mxu0
        %v1526 = vadd.f32 0.0, %v1525
        %v1527 = vpop.f32.mrf.mxu0
        %v1528 = vadd.f32 0.0, %v1527
        %1529 = vmatmul.bf16.gmra.mxu0 %v1233
        %v1530 = vpop.f32.mrf.mxu0
        %v1531 = vadd.f32 0.0, %v1530
        %v1532 = vpop.f32.mrf.mxu0
        %v1533 = vadd.f32 0.0, %v1532
        %1534 = vmatmul.bf16.gmra.mxu0 %v1234
        %v1535 = vpop.f32.mrf.mxu0
        %v1536 = vadd.f32 0.0, %v1535
        %v1537 = vpop.f32.mrf.mxu0
        %v1538 = vadd.f32 0.0, %v1537
        %1539 = vmatmul.bf16.gmra.mxu0 %v1235
        %v1540 = vpop.f32.mrf.mxu0
        %v1541 = vadd.f32 0.0, %v1540
        %v1542 = vpop.f32.mrf.mxu0
        %v1543 = vadd.f32 0.0, %v1542
        %1544 = vmatmul.bf16.gmra.mxu0 %v1236
        %v1545 = vpop.f32.mrf.mxu0
        %v1546 = vadd.f32 0.0, %v1545
        %v1547 = vpop.f32.mrf.mxu0
        %v1548 = vadd.f32 0.0, %v1547
        %1549 = vmatmul.bf16.gmra.mxu0 %v1237
        %v1550 = vpop.f32.mrf.mxu0
        %v1551 = vadd.f32 0.0, %v1550
        %v1552 = vpop.f32.mrf.mxu0
        %v1553 = vadd.f32 0.0, %v1552
        %1554 = vmatmul.bf16.gmra.mxu0 %v1238
        %v1555 = vpop.f32.mrf.mxu0
        %v1556 = vadd.f32 0.0, %v1555
        %v1557 = vpop.f32.mrf.mxu0
        %v1558 = vadd.f32 0.0, %v1557
        %1559 = vmatmul.bf16.gmra.mxu0 %v1239
        %v1560 = vpop.f32.mrf.mxu0
        %v1561 = vadd.f32 0.0, %v1560
        %v1562 = vpop.f32.mrf.mxu0
        %v1563 = vadd.f32 0.0, %v1562
        %1564 = vmatmul.bf16.gmra.mxu0 %v1240
        %v1565 = vpop.f32.mrf.mxu0
        %v1566 = vadd.f32 0.0, %v1565
        %v1567 = vpop.f32.mrf.mxu0
        %v1568 = vadd.f32 0.0, %v1567
        %1569 = vmatmul.bf16.gmra.mxu0 %v1241
        %v1570 = vpop.f32.mrf.mxu0
        %v1571 = vadd.f32 0.0, %v1570
        %v1572 = vpop.f32.mrf.mxu0
        %v1573 = vadd.f32 0.0, %v1572
        %1574 = vmatmul.bf16.gmra.mxu0 %v1242
        %v1575 = vpop.f32.mrf.mxu0
        %v1576 = vadd.f32 0.0, %v1575
        %v1577 = vpop.f32.mrf.mxu0
        %v1578 = vadd.f32 0.0, %v1577
        %1579 = vmatmul.bf16.gmra.mxu0 %v1243
        %v1580 = vpop.f32.mrf.mxu0
        %v1581 = vadd.f32 0.0, %v1580
        %v1582 = vpop.f32.mrf.mxu0
        %v1583 = vadd.f32 0.0, %v1582
        %1584 = vmatmul.bf16.gmra.mxu0 %v1244
        %v1585 = vpop.f32.mrf.mxu0
        %v1586 = vadd.f32 0.0, %v1585
        %v1587 = vpop.f32.mrf.mxu0
        %v1588 = vadd.f32 0.0, %v1587
        %1589 = vmatmul.bf16.gmra.mxu0 %v1245
        %v1590 = vpop.f32.mrf.mxu0
        %v1591 = vadd.f32 0.0, %v1590
        %v1592 = vpop.f32.mrf.mxu0
        %v1593 = vadd.f32 0.0, %v1592
        %1594 = vmatmul.bf16.gmra.mxu0 %v1246
        %v1595 = vpop.f32.mrf.mxu0
        %v1596 = vadd.f32 0.0, %v1595
        %v1597 = vpop.f32.mrf.mxu0
        %v1598 = vadd.f32 0.0, %v1597
        %1599 = vmatmul.bf16.gmra.mxu0 %v1247
        %v1600 = vpop.f32.mrf.mxu0
        %v1601 = vadd.f32 0.0, %v1600
        %v1602 = vpop.f32.mrf.mxu0
        %v1603 = vadd.f32 0.0, %v1602
        %1604 = vmatmul.bf16.gmra.mxu0 %v1248
        %v1605 = vpop.f32.mrf.mxu0
        %v1606 = vadd.f32 0.0, %v1605
        %v1607 = vpop.f32.mrf.mxu0
        %v1608 = vadd.f32 0.0, %v1607
        %1609 = vmatmul.bf16.gmra.mxu0 %v1249
        %v1610 = vpop.f32.mrf.mxu0
        %v1611 = vadd.f32 0.0, %v1610
        %v1612 = vpop.f32.mrf.mxu0
        %v1613 = vadd.f32 0.0, %v1612
        %1614 = vmatmul.bf16.gmra.mxu0 %v1250
        %v1615 = vpop.f32.mrf.mxu0
        %v1616 = vadd.f32 0.0, %v1615
        %v1617 = vpop.f32.mrf.mxu0
        %v1618 = vadd.f32 0.0, %v1617
        %1619 = vmatmul.bf16.gmra.mxu0 %v1251
        %v1620 = vpop.f32.mrf.mxu0
        %v1621 = vadd.f32 0.0, %v1620
        %v1622 = vpop.f32.mrf.mxu0
        %v1623 = vadd.f32 0.0, %v1622
        %1624 = vmatmul.bf16.gmra.mxu0 %v1252
        %v1625 = vpop.f32.mrf.mxu0
        %v1626 = vadd.f32 0.0, %v1625
        %v1627 = vpop.f32.mrf.mxu0
        %v1628 = vadd.f32 0.0, %v1627
        %1629 = vmatmul.bf16.gmra.mxu0 %v1253
        %v1630 = vpop.f32.mrf.mxu0
        %v1631 = vadd.f32 0.0, %v1630
        %v1632 = vpop.f32.mrf.mxu0
        %v1633 = vadd.f32 0.0, %v1632
        %1634 = vmatmul.bf16.gmra.mxu0 %v1254
        %v1635 = vpop.f32.mrf.mxu0
        %v1636 = vadd.f32 0.0, %v1635
        %v1637 = vpop.f32.mrf.mxu0
        %v1638 = vadd.f32 0.0, %v1637
        %1639 = vmatmul.bf16.gmra.mxu0 %v1255
        %v1640 = vpop.f32.mrf.mxu0
        %v1641 = vadd.f32 0.0, %v1640
        %v1642 = vpop.f32.mrf.mxu0
        %v1643 = vadd.f32 0.0, %v1642
        %1644 = vmatmul.bf16.gmra.mxu0 %v1256
        %v1645 = vpop.f32.mrf.mxu0
        %v1646 = vadd.f32 0.0, %v1645
        %v1647 = vpop.f32.mrf.mxu0
        %v1648 = vadd.f32 0.0, %v1647
        %1649 = vdwg.mxu0
        %v1650 = vld [vmem:[#allocation2] sm:$0xff]
        %v1651 = vld [vmem:[#allocation2 + $0x8] sm:$0xff]
        %v1652 = vld [vmem:[#allocation2 + $0x10] sm:$0xff]
        %v1653 = vld [vmem:[#allocation2 + $0x18] sm:$0xff]
        %v1654 = vld [vmem:[#allocation2 + $0x20] sm:$0xff]
        %v1655 = vld [vmem:[#allocation2 + $0x28] sm:$0xff]
        %v1656 = vld [vmem:[#allocation2 + $0x30] sm:$0xff]
        %v1657 = vld [vmem:[#allocation2 + $0x38] sm:$0xff]
        %v1658 = vld [vmem:[#allocation2 + $0x40] sm:$0xff]
        %v1659 = vld [vmem:[#allocation2 + $0x48] sm:$0xff]
        %v1660 = vld [vmem:[#allocation2 + $0x50] sm:$0xff]
        %v1661 = vld [vmem:[#allocation2 + $0x58] sm:$0xff]
        %v1662 = vld [vmem:[#allocation2 + $0x60] sm:$0xff]
        %v1663 = vld [vmem:[#allocation2 + $0x68] sm:$0xff]
        %v1664 = vld [vmem:[#allocation2 + $0x70] sm:$0xff]
        %v1665 = vld [vmem:[#allocation2 + $0x78] sm:$0xff]
        %v1666 = vld [vmem:[#allocation2 + $0x80] sm:$0xff]
        %v1667 = vld [vmem:[#allocation2 + $0x88] sm:$0xff]
        %v1668 = vld [vmem:[#allocation2 + $0x90] sm:$0xff]
        %v1669 = vld [vmem:[#allocation2 + $0x98] sm:$0xff]
        %v1670 = vld [vmem:[#allocation2 + $0xa0] sm:$0xff]
        %v1671 = vld [vmem:[#allocation2 + $0xa8] sm:$0xff]
        %v1672 = vld [vmem:[#allocation2 + $0xb0] sm:$0xff]
        %v1673 = vld [vmem:[#allocation2 + $0xb8] sm:$0xff]
        %v1674 = vld [vmem:[#allocation2 + $0xc0] sm:$0xff]
        %v1675 = vld [vmem:[#allocation2 + $0xc8] sm:$0xff]
        %v1676 = vld [vmem:[#allocation2 + $0xd0] sm:$0xff]
        %v1677 = vld [vmem:[#allocation2 + $0xd8] sm:$0xff]
        %v1678 = vld [vmem:[#allocation2 + $0xe0] sm:$0xff]
        %v1679 = vld [vmem:[#allocation2 + $0xe8] sm:$0xff]
        %v1680 = vld [vmem:[#allocation2 + $0xf0] sm:$0xff]
        %v1681 = vld [vmem:[#allocation2 + $0xf8] sm:$0xff]
        %v1682 = vld [vmem:[#allocation2 + $0x100] sm:$0xff]
        %v1683 = vld [vmem:[#allocation2 + $0x108] sm:$0xff]
        %v1684 = vld [vmem:[#allocation2 + $0x110] sm:$0xff]
        %v1685 = vld [vmem:[#allocation2 + $0x118] sm:$0xff]
        %v1686 = vld [vmem:[#allocation2 + $0x120] sm:$0xff]
        %v1687 = vld [vmem:[#allocation2 + $0x128] sm:$0xff]
        %v1688 = vld [vmem:[#allocation2 + $0x130] sm:$0xff]
        %v1689 = vld [vmem:[#allocation2 + $0x138] sm:$0xff]
        %v1690 = vld [vmem:[#allocation2 + $0x140] sm:$0xff]
        %v1691 = vld [vmem:[#allocation2 + $0x148] sm:$0xff]
        %v1692 = vld [vmem:[#allocation2 + $0x150] sm:$0xff]
        %v1693 = vld [vmem:[#allocation2 + $0x158] sm:$0xff]
        %v1694 = vld [vmem:[#allocation2 + $0x160] sm:$0xff]
        %v1695 = vld [vmem:[#allocation2 + $0x168] sm:$0xff]
        %v1696 = vld [vmem:[#allocation2 + $0x170] sm:$0xff]
        %v1697 = vld [vmem:[#allocation2 + $0x178] sm:$0xff]
        %v1698 = vld [vmem:[#allocation2 + $0x180] sm:$0xff]
        %v1699 = vld [vmem:[#allocation2 + $0x188] sm:$0xff]
        %v1700 = vld [vmem:[#allocation2 + $0x190] sm:$0xff]
        %v1701 = vld [vmem:[#allocation2 + $0x198] sm:$0xff]
        %v1702 = vld [vmem:[#allocation2 + $0x1a0] sm:$0xff]
        %v1703 = vld [vmem:[#allocation2 + $0x1a8] sm:$0xff]
        %v1704 = vld [vmem:[#allocation2 + $0x1b0] sm:$0xff]
        %v1705 = vld [vmem:[#allocation2 + $0x1b8] sm:$0xff]
        %v1706 = vld [vmem:[#allocation2 + $0x1c0] sm:$0xff]
        %v1707 = vld [vmem:[#allocation2 + $0x1c8] sm:$0xff]
        %v1708 = vld [vmem:[#allocation2 + $0x1d0] sm:$0xff]
        %v1709 = vld [vmem:[#allocation2 + $0x1d8] sm:$0xff]
        %v1710 = vld [vmem:[#allocation2 + $0x1e0] sm:$0xff]
        %v1711 = vld [vmem:[#allocation2 + $0x1e8] sm:$0xff]
        %v1712 = vld [vmem:[#allocation2 + $0x1f0] sm:$0xff]
        %v1713 = vld [vmem:[#allocation2 + $0x1f8] sm:$0xff]
        %v1714 = vld [vmem:[#allocation2 + $0x200] sm:$0xff]
        %v1715 = vld [vmem:[#allocation2 + $0x208] sm:$0xff]
        %v1716 = vld [vmem:[#allocation2 + $0x210] sm:$0xff]
        %v1717 = vld [vmem:[#allocation2 + $0x218] sm:$0xff]
        %v1718 = vld [vmem:[#allocation2 + $0x220] sm:$0xff]
        %v1719 = vld [vmem:[#allocation2 + $0x228] sm:$0xff]
        %v1720 = vld [vmem:[#allocation2 + $0x230] sm:$0xff]
        %v1721 = vld [vmem:[#allocation2 + $0x238] sm:$0xff]
        %v1722 = vld [vmem:[#allocation2 + $0x240] sm:$0xff]
        %v1723 = vld [vmem:[#allocation2 + $0x248] sm:$0xff]
        %v1724 = vld [vmem:[#allocation2 + $0x250] sm:$0xff]
        %v1725 = vld [vmem:[#allocation2 + $0x258] sm:$0xff]
        %v1726 = vld [vmem:[#allocation2 + $0x260] sm:$0xff]
        %v1727 = vld [vmem:[#allocation2 + $0x268] sm:$0xff]
        %v1728 = vld [vmem:[#allocation2 + $0x270] sm:$0xff]
        %v1729 = vld [vmem:[#allocation2 + $0x278] sm:$0xff]
        %v1730 = vld [vmem:[#allocation2 + $0x280] sm:$0xff]
        %v1731 = vld [vmem:[#allocation2 + $0x288] sm:$0xff]
        %v1732 = vld [vmem:[#allocation2 + $0x290] sm:$0xff]
        %v1733 = vld [vmem:[#allocation2 + $0x298] sm:$0xff]
        %v1734 = vld [vmem:[#allocation2 + $0x2a0] sm:$0xff]
        %v1735 = vld [vmem:[#allocation2 + $0x2a8] sm:$0xff]
        %v1736 = vld [vmem:[#allocation2 + $0x2b0] sm:$0xff]
        %v1737 = vld [vmem:[#allocation2 + $0x2b8] sm:$0xff]
        %v1738 = vld [vmem:[#allocation2 + $0x2c0] sm:$0xff]
        %v1739 = vld [vmem:[#allocation2 + $0x2c8] sm:$0xff]
        %v1740 = vld [vmem:[#allocation2 + $0x2d0] sm:$0xff]
        %v1741 = vld [vmem:[#allocation2 + $0x2d8] sm:$0xff]
        %v1742 = vld [vmem:[#allocation2 + $0x2e0] sm:$0xff]
        %v1743 = vld [vmem:[#allocation2 + $0x2e8] sm:$0xff]
        %v1744 = vld [vmem:[#allocation2 + $0x2f0] sm:$0xff]
        %v1745 = vld [vmem:[#allocation2 + $0x2f8] sm:$0xff]
        %v1746 = vld [vmem:[#allocation2 + $0x300] sm:$0xff]
        %v1747 = vld [vmem:[#allocation2 + $0x308] sm:$0xff]
        %v1748 = vld [vmem:[#allocation2 + $0x310] sm:$0xff]
        %v1749 = vld [vmem:[#allocation2 + $0x318] sm:$0xff]
        %v1750 = vld [vmem:[#allocation2 + $0x320] sm:$0xff]
        %v1751 = vld [vmem:[#allocation2 + $0x328] sm:$0xff]
        %v1752 = vld [vmem:[#allocation2 + $0x330] sm:$0xff]
        %v1753 = vld [vmem:[#allocation2 + $0x338] sm:$0xff]
        %v1754 = vld [vmem:[#allocation2 + $0x340] sm:$0xff]
        %v1755 = vld [vmem:[#allocation2 + $0x348] sm:$0xff]
        %v1756 = vld [vmem:[#allocation2 + $0x350] sm:$0xff]
        %v1757 = vld [vmem:[#allocation2 + $0x358] sm:$0xff]
        %v1758 = vld [vmem:[#allocation2 + $0x360] sm:$0xff]
        %v1759 = vld [vmem:[#allocation2 + $0x368] sm:$0xff]
        %v1760 = vld [vmem:[#allocation2 + $0x370] sm:$0xff]
        %v1761 = vld [vmem:[#allocation2 + $0x378] sm:$0xff]
        %v1762 = vld [vmem:[#allocation2 + $0x380] sm:$0xff]
        %v1763 = vld [vmem:[#allocation2 + $0x388] sm:$0xff]
        %v1764 = vld [vmem:[#allocation2 + $0x390] sm:$0xff]
        %v1765 = vld [vmem:[#allocation2 + $0x398] sm:$0xff]
        %v1766 = vld [vmem:[#allocation2 + $0x3a0] sm:$0xff]
        %v1767 = vld [vmem:[#allocation2 + $0x3a8] sm:$0xff]
        %v1768 = vld [vmem:[#allocation2 + $0x3b0] sm:$0xff]
        %v1769 = vld [vmem:[#allocation2 + $0x3b8] sm:$0xff]
        %v1770 = vld [vmem:[#allocation2 + $0x3c0] sm:$0xff]
        %v1771 = vld [vmem:[#allocation2 + $0x3c8] sm:$0xff]
        %v1772 = vld [vmem:[#allocation2 + $0x3d0] sm:$0xff]
        %v1773 = vld [vmem:[#allocation2 + $0x3d8] sm:$0xff]
        %v1774 = vld [vmem:[#allocation2 + $0x3e0] sm:$0xff]
        %v1775 = vld [vmem:[#allocation2 + $0x3e8] sm:$0xff]
        %v1776 = vld [vmem:[#allocation2 + $0x3f0] sm:$0xff]
        %v1777 = vld [vmem:[#allocation2 + $0x3f8] sm:$0xff]
        %v1778 = vmax.f32 %v1650, %v1331
        %v1779 = vmax.f32 %v1651, %v1333
        %v1780 = vmax.f32 %v1652, %v1336
        %v1781 = vmax.f32 %v1653, %v1338
        %v1782 = vmax.f32 %v1654, %v1341
        %v1783 = vmax.f32 %v1655, %v1343
        %v1784 = vmax.f32 %v1656, %v1346
        %v1785 = vmax.f32 %v1657, %v1348
        %v1786 = vmax.f32 %v1658, %v1351
        %v1787 = vmax.f32 %v1659, %v1353
        %v1788 = vmax.f32 %v1660, %v1356
        %v1789 = vmax.f32 %v1661, %v1358
        %v1790 = vmax.f32 %v1662, %v1361
        %v1791 = vmax.f32 %v1663, %v1363
        %v1792 = vmax.f32 %v1664, %v1366
        %v1793 = vmax.f32 %v1665, %v1368
        %v1794 = vmax.f32 %v1666, %v1371
        %v1795 = vmax.f32 %v1667, %v1373
        %v1796 = vmax.f32 %v1668, %v1376
        %v1797 = vmax.f32 %v1669, %v1378
        %v1798 = vmax.f32 %v1670, %v1381
        %v1799 = vmax.f32 %v1671, %v1383
        %v1800 = vmax.f32 %v1672, %v1386
        %v1801 = vmax.f32 %v1673, %v1388
        %v1802 = vmax.f32 %v1674, %v1391
        %v1803 = vmax.f32 %v1675, %v1393
        %v1804 = vmax.f32 %v1676, %v1396
        %v1805 = vmax.f32 %v1677, %v1398
        %v1806 = vmax.f32 %v1678, %v1401
        %v1807 = vmax.f32 %v1679, %v1403
        %v1808 = vmax.f32 %v1680, %v1406
        %v1809 = vmax.f32 %v1681, %v1408
        %v1810 = vmax.f32 %v1682, %v1411
        %v1811 = vmax.f32 %v1683, %v1413
        %v1812 = vmax.f32 %v1684, %v1416
        %v1813 = vmax.f32 %v1685, %v1418
        %v1814 = vmax.f32 %v1686, %v1421
        %v1815 = vmax.f32 %v1687, %v1423
        %v1816 = vmax.f32 %v1688, %v1426
        %v1817 = vmax.f32 %v1689, %v1428
        %v1818 = vmax.f32 %v1690, %v1431
        %v1819 = vmax.f32 %v1691, %v1433
        %v1820 = vmax.f32 %v1692, %v1436
        %v1821 = vmax.f32 %v1693, %v1438
        %v1822 = vmax.f32 %v1694, %v1441
        %v1823 = vmax.f32 %v1695, %v1443
        %v1824 = vmax.f32 %v1696, %v1446
        %v1825 = vmax.f32 %v1697, %v1448
        %v1826 = vmax.f32 %v1698, %v1451
        %v1827 = vmax.f32 %v1699, %v1453
        %v1828 = vmax.f32 %v1700, %v1456
        %v1829 = vmax.f32 %v1701, %v1458
        %v1830 = vmax.f32 %v1702, %v1461
        %v1831 = vmax.f32 %v1703, %v1463
        %v1832 = vmax.f32 %v1704, %v1466
        %v1833 = vmax.f32 %v1705, %v1468
        %v1834 = vmax.f32 %v1706, %v1471
        %v1835 = vmax.f32 %v1707, %v1473
        %v1836 = vmax.f32 %v1708, %v1476
        %v1837 = vmax.f32 %v1709, %v1478
        %v1838 = vmax.f32 %v1710, %v1481
        %v1839 = vmax.f32 %v1711, %v1483
        %v1840 = vmax.f32 %v1712, %v1486
        %v1841 = vmax.f32 %v1713, %v1488
        %v1842 = vmax.f32 %v1714, %v1491
        %v1843 = vmax.f32 %v1715, %v1493
        %v1844 = vmax.f32 %v1716, %v1496
        %v1845 = vmax.f32 %v1717, %v1498
        %v1846 = vmax.f32 %v1718, %v1501
        %v1847 = vmax.f32 %v1719, %v1503
        %v1848 = vmax.f32 %v1720, %v1506
        %v1849 = vmax.f32 %v1721, %v1508
        %v1850 = vmax.f32 %v1722, %v1511
        %v1851 = vmax.f32 %v1723, %v1513
        %v1852 = vmax.f32 %v1724, %v1516
        %v1853 = vmax.f32 %v1725, %v1518
        %v1854 = vmax.f32 %v1726, %v1521
        %v1855 = vmax.f32 %v1727, %v1523
        %v1856 = vmax.f32 %v1728, %v1526
        %v1857 = vmax.f32 %v1729, %v1528
        %v1858 = vmax.f32 %v1730, %v1531
        %v1859 = vmax.f32 %v1731, %v1533
        %v1860 = vmax.f32 %v1732, %v1536
        %v1861 = vmax.f32 %v1733, %v1538
        %v1862 = vmax.f32 %v1734, %v1541
        %v1863 = vmax.f32 %v1735, %v1543
        %v1864 = vmax.f32 %v1736, %v1546
        %v1865 = vmax.f32 %v1737, %v1548
        %v1866 = vmax.f32 %v1738, %v1551
        %v1867 = vmax.f32 %v1739, %v1553
        %v1868 = vmax.f32 %v1740, %v1556
        %v1869 = vmax.f32 %v1741, %v1558
        %v1870 = vmax.f32 %v1742, %v1561
        %v1871 = vmax.f32 %v1743, %v1563
        %v1872 = vmax.f32 %v1744, %v1566
        %v1873 = vmax.f32 %v1745, %v1568
        %v1874 = vmax.f32 %v1746, %v1571
        %v1875 = vmax.f32 %v1747, %v1573
        %v1876 = vmax.f32 %v1748, %v1576
        %v1877 = vmax.f32 %v1749, %v1578
        %v1878 = vmax.f32 %v1750, %v1581
        %v1879 = vmax.f32 %v1751, %v1583
        %v1880 = vmax.f32 %v1752, %v1586
        %v1881 = vmax.f32 %v1753, %v1588
        %v1882 = vmax.f32 %v1754, %v1591
        %v1883 = vmax.f32 %v1755, %v1593
        %v1884 = vmax.f32 %v1756, %v1596
        %v1885 = vmax.f32 %v1757, %v1598
        %v1886 = vmax.f32 %v1758, %v1601
        %v1887 = vmax.f32 %v1759, %v1603
        %v1888 = vmax.f32 %v1760, %v1606
        %v1889 = vmax.f32 %v1761, %v1608
        %v1890 = vmax.f32 %v1762, %v1611
        %v1891 = vmax.f32 %v1763, %v1613
        %v1892 = vmax.f32 %v1764, %v1616
        %v1893 = vmax.f32 %v1765, %v1618
        %v1894 = vmax.f32 %v1766, %v1621
        %v1895 = vmax.f32 %v1767, %v1623
        %v1896 = vmax.f32 %v1768, %v1626
        %v1897 = vmax.f32 %v1769, %v1628
        %v1898 = vmax.f32 %v1770, %v1631
        %v1899 = vmax.f32 %v1771, %v1633
        %v1900 = vmax.f32 %v1772, %v1636
        %v1901 = vmax.f32 %v1773, %v1638
        %v1902 = vmax.f32 %v1774, %v1641
        %v1903 = vmax.f32 %v1775, %v1643
        %v1904 = vmax.f32 %v1776, %v1646
        %v1905 = vmax.f32 %v1777, %v1648
        %vm1906 = vcmask 130048
        %1907 = vst.msk [vmem:[#allocation2] sm:$0xff] %vm1906, %v1778
        %1908 = vst.msk [vmem:[#allocation2 + $0x8] sm:$0xff] %vm1906, %v1779
        %1909 = vst.msk [vmem:[#allocation2 + $0x10] sm:$0xff] %vm1906, %v1780
        %1910 = vst.msk [vmem:[#allocation2 + $0x18] sm:$0xff] %vm1906, %v1781
        %1911 = vst.msk [vmem:[#allocation2 + $0x20] sm:$0xff] %vm1906, %v1782
        %1912 = vst.msk [vmem:[#allocation2 + $0x28] sm:$0xff] %vm1906, %v1783
        %1913 = vst.msk [vmem:[#allocation2 + $0x30] sm:$0xff] %vm1906, %v1784
        %1914 = vst.msk [vmem:[#allocation2 + $0x38] sm:$0xff] %vm1906, %v1785
        %1915 = vst.msk [vmem:[#allocation2 + $0x40] sm:$0xff] %vm1906, %v1786
        %1916 = vst.msk [vmem:[#allocation2 + $0x48] sm:$0xff] %vm1906, %v1787
        %1917 = vst.msk [vmem:[#allocation2 + $0x50] sm:$0xff] %vm1906, %v1788
        %1918 = vst.msk [vmem:[#allocation2 + $0x58] sm:$0xff] %vm1906, %v1789
        %1919 = vst.msk [vmem:[#allocation2 + $0x60] sm:$0xff] %vm1906, %v1790
        %1920 = vst.msk [vmem:[#allocation2 + $0x68] sm:$0xff] %vm1906, %v1791
        %1921 = vst.msk [vmem:[#allocation2 + $0x70] sm:$0xff] %vm1906, %v1792
        %1922 = vst.msk [vmem:[#allocation2 + $0x78] sm:$0xff] %vm1906, %v1793
        %1923 = vst.msk [vmem:[#allocation2 + $0x80] sm:$0xff] %vm1906, %v1794
        %1924 = vst.msk [vmem:[#allocation2 + $0x88] sm:$0xff] %vm1906, %v1795
        %1925 = vst.msk [vmem:[#allocation2 + $0x90] sm:$0xff] %vm1906, %v1796
        %1926 = vst.msk [vmem:[#allocation2 + $0x98] sm:$0xff] %vm1906, %v1797
        %1927 = vst.msk [vmem:[#allocation2 + $0xa0] sm:$0xff] %vm1906, %v1798
        %1928 = vst.msk [vmem:[#allocation2 + $0xa8] sm:$0xff] %vm1906, %v1799
        %1929 = vst.msk [vmem:[#allocation2 + $0xb0] sm:$0xff] %vm1906, %v1800
        %1930 = vst.msk [vmem:[#allocation2 + $0xb8] sm:$0xff] %vm1906, %v1801
        %1931 = vst.msk [vmem:[#allocation2 + $0xc0] sm:$0xff] %vm1906, %v1802
        %1932 = vst.msk [vmem:[#allocation2 + $0xc8] sm:$0xff] %vm1906, %v1803
        %1933 = vst.msk [vmem:[#allocation2 + $0xd0] sm:$0xff] %vm1906, %v1804
        %1934 = vst.msk [vmem:[#allocation2 + $0xd8] sm:$0xff] %vm1906, %v1805
        %1935 = vst.msk [vmem:[#allocation2 + $0xe0] sm:$0xff] %vm1906, %v1806
        %1936 = vst.msk [vmem:[#allocation2 + $0xe8] sm:$0xff] %vm1906, %v1807
        %1937 = vst.msk [vmem:[#allocation2 + $0xf0] sm:$0xff] %vm1906, %v1808
        %1938 = vst.msk [vmem:[#allocation2 + $0xf8] sm:$0xff] %vm1906, %v1809
        %1939 = vst.msk [vmem:[#allocation2 + $0x100] sm:$0xff] %vm1906, %v1810
        %1940 = vst.msk [vmem:[#allocation2 + $0x108] sm:$0xff] %vm1906, %v1811
        %1941 = vst.msk [vmem:[#allocation2 + $0x110] sm:$0xff] %vm1906, %v1812
        %1942 = vst.msk [vmem:[#allocation2 + $0x118] sm:$0xff] %vm1906, %v1813
        %1943 = vst.msk [vmem:[#allocation2 + $0x120] sm:$0xff] %vm1906, %v1814
        %1944 = vst.msk [vmem:[#allocation2 + $0x128] sm:$0xff] %vm1906, %v1815
        %1945 = vst.msk [vmem:[#allocation2 + $0x130] sm:$0xff] %vm1906, %v1816
        %1946 = vst.msk [vmem:[#allocation2 + $0x138] sm:$0xff] %vm1906, %v1817
        %1947 = vst.msk [vmem:[#allocation2 + $0x140] sm:$0xff] %vm1906, %v1818
        %1948 = vst.msk [vmem:[#allocation2 + $0x148] sm:$0xff] %vm1906, %v1819
        %1949 = vst.msk [vmem:[#allocation2 + $0x150] sm:$0xff] %vm1906, %v1820
        %1950 = vst.msk [vmem:[#allocation2 + $0x158] sm:$0xff] %vm1906, %v1821
        %1951 = vst.msk [vmem:[#allocation2 + $0x160] sm:$0xff] %vm1906, %v1822
        %1952 = vst.msk [vmem:[#allocation2 + $0x168] sm:$0xff] %vm1906, %v1823
        %1953 = vst.msk [vmem:[#allocation2 + $0x170] sm:$0xff] %vm1906, %v1824
        %1954 = vst.msk [vmem:[#allocation2 + $0x178] sm:$0xff] %vm1906, %v1825
        %1955 = vst.msk [vmem:[#allocation2 + $0x180] sm:$0xff] %vm1906, %v1826
        %1956 = vst.msk [vmem:[#allocation2 + $0x188] sm:$0xff] %vm1906, %v1827
        %1957 = vst.msk [vmem:[#allocation2 + $0x190] sm:$0xff] %vm1906, %v1828
        %1958 = vst.msk [vmem:[#allocation2 + $0x198] sm:$0xff] %vm1906, %v1829
        %1959 = vst.msk [vmem:[#allocation2 + $0x1a0] sm:$0xff] %vm1906, %v1830
        %1960 = vst.msk [vmem:[#allocation2 + $0x1a8] sm:$0xff] %vm1906, %v1831
        %1961 = vst.msk [vmem:[#allocation2 + $0x1b0] sm:$0xff] %vm1906, %v1832
        %1962 = vst.msk [vmem:[#allocation2 + $0x1b8] sm:$0xff] %vm1906, %v1833
        %1963 = vst.msk [vmem:[#allocation2 + $0x1c0] sm:$0xff] %vm1906, %v1834
        %1964 = vst.msk [vmem:[#allocation2 + $0x1c8] sm:$0xff] %vm1906, %v1835
        %1965 = vst.msk [vmem:[#allocation2 + $0x1d0] sm:$0xff] %vm1906, %v1836
        %1966 = vst.msk [vmem:[#allocation2 + $0x1d8] sm:$0xff] %vm1906, %v1837
        %1967 = vst.msk [vmem:[#allocation2 + $0x1e0] sm:$0xff] %vm1906, %v1838
        %1968 = vst.msk [vmem:[#allocation2 + $0x1e8] sm:$0xff] %vm1906, %v1839
        %1969 = vst.msk [vmem:[#allocation2 + $0x1f0] sm:$0xff] %vm1906, %v1840
        %1970 = vst.msk [vmem:[#allocation2 + $0x1f8] sm:$0xff] %vm1906, %v1841
        %1971 = vst.msk [vmem:[#allocation2 + $0x200] sm:$0xff] %vm1906, %v1842
        %1972 = vst.msk [vmem:[#allocation2 + $0x208] sm:$0xff] %vm1906, %v1843
        %1973 = vst.msk [vmem:[#allocation2 + $0x210] sm:$0xff] %vm1906, %v1844
        %1974 = vst.msk [vmem:[#allocation2 + $0x218] sm:$0xff] %vm1906, %v1845
        %1975 = vst.msk [vmem:[#allocation2 + $0x220] sm:$0xff] %vm1906, %v1846
        %1976 = vst.msk [vmem:[#allocation2 + $0x228] sm:$0xff] %vm1906, %v1847
        %1977 = vst.msk [vmem:[#allocation2 + $0x230] sm:$0xff] %vm1906, %v1848
        %1978 = vst.msk [vmem:[#allocation2 + $0x238] sm:$0xff] %vm1906, %v1849
        %1979 = vst.msk [vmem:[#allocation2 + $0x240] sm:$0xff] %vm1906, %v1850
        %1980 = vst.msk [vmem:[#allocation2 + $0x248] sm:$0xff] %vm1906, %v1851
        %1981 = vst.msk [vmem:[#allocation2 + $0x250] sm:$0xff] %vm1906, %v1852
        %1982 = vst.msk [vmem:[#allocation2 + $0x258] sm:$0xff] %vm1906, %v1853
        %1983 = vst.msk [vmem:[#allocation2 + $0x260] sm:$0xff] %vm1906, %v1854
        %1984 = vst.msk [vmem:[#allocation2 + $0x268] sm:$0xff] %vm1906, %v1855
        %1985 = vst.msk [vmem:[#allocation2 + $0x270] sm:$0xff] %vm1906, %v1856
        %1986 = vst.msk [vmem:[#allocation2 + $0x278] sm:$0xff] %vm1906, %v1857
        %1987 = vst.msk [vmem:[#allocation2 + $0x280] sm:$0xff] %vm1906, %v1858
        %1988 = vst.msk [vmem:[#allocation2 + $0x288] sm:$0xff] %vm1906, %v1859
        %1989 = vst.msk [vmem:[#allocation2 + $0x290] sm:$0xff] %vm1906, %v1860
        %1990 = vst.msk [vmem:[#allocation2 + $0x298] sm:$0xff] %vm1906, %v1861
        %1991 = vst.msk [vmem:[#allocation2 + $0x2a0] sm:$0xff] %vm1906, %v1862
        %1992 = vst.msk [vmem:[#allocation2 + $0x2a8] sm:$0xff] %vm1906, %v1863
        %1993 = vst.msk [vmem:[#allocation2 + $0x2b0] sm:$0xff] %vm1906, %v1864
        %1994 = vst.msk [vmem:[#allocation2 + $0x2b8] sm:$0xff] %vm1906, %v1865
        %1995 = vst.msk [vmem:[#allocation2 + $0x2c0] sm:$0xff] %vm1906, %v1866
        %1996 = vst.msk [vmem:[#allocation2 + $0x2c8] sm:$0xff] %vm1906, %v1867
        %1997 = vst.msk [vmem:[#allocation2 + $0x2d0] sm:$0xff] %vm1906, %v1868
        %1998 = vst.msk [vmem:[#allocation2 + $0x2d8] sm:$0xff] %vm1906, %v1869
        %1999 = vst.msk [vmem:[#allocation2 + $0x2e0] sm:$0xff] %vm1906, %v1870
        %2000 = vst.msk [vmem:[#allocation2 + $0x2e8] sm:$0xff] %vm1906, %v1871
        %2001 = vst.msk [vmem:[#allocation2 + $0x2f0] sm:$0xff] %vm1906, %v1872
        %2002 = vst.msk [vmem:[#allocation2 + $0x2f8] sm:$0xff] %vm1906, %v1873
        %2003 = vst.msk [vmem:[#allocation2 + $0x300] sm:$0xff] %vm1906, %v1874
        %2004 = vst.msk [vmem:[#allocation2 + $0x308] sm:$0xff] %vm1906, %v1875
        %2005 = vst.msk [vmem:[#allocation2 + $0x310] sm:$0xff] %vm1906, %v1876
        %2006 = vst.msk [vmem:[#allocation2 + $0x318] sm:$0xff] %vm1906, %v1877
        %2007 = vst.msk [vmem:[#allocation2 + $0x320] sm:$0xff] %vm1906, %v1878
        %2008 = vst.msk [vmem:[#allocation2 + $0x328] sm:$0xff] %vm1906, %v1879
        %2009 = vst.msk [vmem:[#allocation2 + $0x330] sm:$0xff] %vm1906, %v1880
        %2010 = vst.msk [vmem:[#allocation2 + $0x338] sm:$0xff] %vm1906, %v1881
        %2011 = vst.msk [vmem:[#allocation2 + $0x340] sm:$0xff] %vm1906, %v1882
        %2012 = vst.msk [vmem:[#allocation2 + $0x348] sm:$0xff] %vm1906, %v1883
        %2013 = vst.msk [vmem:[#allocation2 + $0x350] sm:$0xff] %vm1906, %v1884
        %2014 = vst.msk [vmem:[#allocation2 + $0x358] sm:$0xff] %vm1906, %v1885
        %2015 = vst.msk [vmem:[#allocation2 + $0x360] sm:$0xff] %vm1906, %v1886
        %2016 = vst.msk [vmem:[#allocation2 + $0x368] sm:$0xff] %vm1906, %v1887
        %2017 = vst.msk [vmem:[#allocation2 + $0x370] sm:$0xff] %vm1906, %v1888
        %2018 = vst.msk [vmem:[#allocation2 + $0x378] sm:$0xff] %vm1906, %v1889
        %2019 = vst.msk [vmem:[#allocation2 + $0x380] sm:$0xff] %vm1906, %v1890
        %2020 = vst.msk [vmem:[#allocation2 + $0x388] sm:$0xff] %vm1906, %v1891
        %2021 = vst.msk [vmem:[#allocation2 + $0x390] sm:$0xff] %vm1906, %v1892
        %2022 = vst.msk [vmem:[#allocation2 + $0x398] sm:$0xff] %vm1906, %v1893
        %2023 = vst.msk [vmem:[#allocation2 + $0x3a0] sm:$0xff] %vm1906, %v1894
        %2024 = vst.msk [vmem:[#allocation2 + $0x3a8] sm:$0xff] %vm1906, %v1895
        %2025 = vst.msk [vmem:[#allocation2 + $0x3b0] sm:$0xff] %vm1906, %v1896
        %2026 = vst.msk [vmem:[#allocation2 + $0x3b8] sm:$0xff] %vm1906, %v1897
        %2027 = vst.msk [vmem:[#allocation2 + $0x3c0] sm:$0xff] %vm1906, %v1898
        %2028 = vst.msk [vmem:[#allocation2 + $0x3c8] sm:$0xff] %vm1906, %v1899
        %2029 = vst.msk [vmem:[#allocation2 + $0x3d0] sm:$0xff] %vm1906, %v1900
        %2030 = vst.msk [vmem:[#allocation2 + $0x3d8] sm:$0xff] %vm1906, %v1901
        %2031 = vst.msk [vmem:[#allocation2 + $0x3e0] sm:$0xff] %vm1906, %v1902
        %2032 = vst.msk [vmem:[#allocation2 + $0x3e8] sm:$0xff] %vm1906, %v1903
        %2033 = vst.msk [vmem:[#allocation2 + $0x3f0] sm:$0xff] %vm1906, %v1904
        %2034 = vst.msk [vmem:[#allocation2 + $0x3f8] sm:$0xff] %vm1906, %v1905
        // Predicated region
        $region53: #{stn3d_forward.2} parent=43 // pred_check
          %p2035 = pneg %p290
        $region54: #{stn3d_forward.2} parent=43 // pred_check_branch
          %2037 = sbr.rel (%p2035) target = $region56
        $region55: #{stn3d_forward.2} parent=43 // pred_region
          %v2038 = vld [vmem:[#allocation2] sm:$0xff]
          %v2039 = vld [vmem:[#allocation2 + $0x8] sm:$0xff]
          %v2040 = vld [vmem:[#allocation2 + $0x10] sm:$0xff]
          %v2041 = vld [vmem:[#allocation2 + $0x18] sm:$0xff]
          %v2042 = vld [vmem:[#allocation2 + $0x20] sm:$0xff]
          %v2043 = vld [vmem:[#allocation2 + $0x28] sm:$0xff]
          %v2044 = vld [vmem:[#allocation2 + $0x30] sm:$0xff]
          %v2045 = vld [vmem:[#allocation2 + $0x38] sm:$0xff]
          %v2046 = vld [vmem:[#allocation2 + $0x40] sm:$0xff]
          %v2047 = vld [vmem:[#allocation2 + $0x48] sm:$0xff]
          %v2048 = vld [vmem:[#allocation2 + $0x50] sm:$0xff]
          %v2049 = vld [vmem:[#allocation2 + $0x58] sm:$0xff]
          %v2050 = vld [vmem:[#allocation2 + $0x60] sm:$0xff]
          %v2051 = vld [vmem:[#allocation2 + $0x68] sm:$0xff]
          %v2052 = vld [vmem:[#allocation2 + $0x70] sm:$0xff]
          %v2053 = vld [vmem:[#allocation2 + $0x78] sm:$0xff]
          %v2054 = vld [vmem:[#allocation2 + $0x80] sm:$0xff]
          %v2055 = vld [vmem:[#allocation2 + $0x88] sm:$0xff]
          %v2056 = vld [vmem:[#allocation2 + $0x90] sm:$0xff]
          %v2057 = vld [vmem:[#allocation2 + $0x98] sm:$0xff]
          %v2058 = vld [vmem:[#allocation2 + $0xa0] sm:$0xff]
          %v2059 = vld [vmem:[#allocation2 + $0xa8] sm:$0xff]
          %v2060 = vld [vmem:[#allocation2 + $0xb0] sm:$0xff]
          %v2061 = vld [vmem:[#allocation2 + $0xb8] sm:$0xff]
          %v2062 = vld [vmem:[#allocation2 + $0xc0] sm:$0xff]
          %v2063 = vld [vmem:[#allocation2 + $0xc8] sm:$0xff]
          %v2064 = vld [vmem:[#allocation2 + $0xd0] sm:$0xff]
          %v2065 = vld [vmem:[#allocation2 + $0xd8] sm:$0xff]
          %v2066 = vld [vmem:[#allocation2 + $0xe0] sm:$0xff]
          %v2067 = vld [vmem:[#allocation2 + $0xe8] sm:$0xff]
          %v2068 = vld [vmem:[#allocation2 + $0xf0] sm:$0xff]
          %v2069 = vld [vmem:[#allocation2 + $0xf8] sm:$0xff]
          %v2070 = vld [vmem:[#allocation2 + $0x100] sm:$0xff]
          %v2071 = vld [vmem:[#allocation2 + $0x108] sm:$0xff]
          %v2072 = vld [vmem:[#allocation2 + $0x110] sm:$0xff]
          %v2073 = vld [vmem:[#allocation2 + $0x118] sm:$0xff]
          %v2074 = vld [vmem:[#allocation2 + $0x120] sm:$0xff]
          %v2075 = vld [vmem:[#allocation2 + $0x128] sm:$0xff]
          %v2076 = vld [vmem:[#allocation2 + $0x130] sm:$0xff]
          %v2077 = vld [vmem:[#allocation2 + $0x138] sm:$0xff]
          %v2078 = vld [vmem:[#allocation2 + $0x140] sm:$0xff]
          %v2079 = vld [vmem:[#allocation2 + $0x148] sm:$0xff]
          %v2080 = vld [vmem:[#allocation2 + $0x150] sm:$0xff]
          %v2081 = vld [vmem:[#allocation2 + $0x158] sm:$0xff]
          %v2082 = vld [vmem:[#allocation2 + $0x160] sm:$0xff]
          %v2083 = vld [vmem:[#allocation2 + $0x168] sm:$0xff]
          %v2084 = vld [vmem:[#allocation2 + $0x170] sm:$0xff]
          %v2085 = vld [vmem:[#allocation2 + $0x178] sm:$0xff]
          %v2086 = vld [vmem:[#allocation2 + $0x180] sm:$0xff]
          %v2087 = vld [vmem:[#allocation2 + $0x188] sm:$0xff]
          %v2088 = vld [vmem:[#allocation2 + $0x190] sm:$0xff]
          %v2089 = vld [vmem:[#allocation2 + $0x198] sm:$0xff]
          %v2090 = vld [vmem:[#allocation2 + $0x1a0] sm:$0xff]
          %v2091 = vld [vmem:[#allocation2 + $0x1a8] sm:$0xff]
          %v2092 = vld [vmem:[#allocation2 + $0x1b0] sm:$0xff]
          %v2093 = vld [vmem:[#allocation2 + $0x1b8] sm:$0xff]
          %v2094 = vld [vmem:[#allocation2 + $0x1c0] sm:$0xff]
          %v2095 = vld [vmem:[#allocation2 + $0x1c8] sm:$0xff]
          %v2096 = vld [vmem:[#allocation2 + $0x1d0] sm:$0xff]
          %v2097 = vld [vmem:[#allocation2 + $0x1d8] sm:$0xff]
          %v2098 = vld [vmem:[#allocation2 + $0x1e0] sm:$0xff]
          %v2099 = vld [vmem:[#allocation2 + $0x1e8] sm:$0xff]
          %v2100 = vld [vmem:[#allocation2 + $0x1f0] sm:$0xff]
          %v2101 = vld [vmem:[#allocation2 + $0x1f8] sm:$0xff]
          %v2102 = vld [vmem:[#allocation2 + $0x200] sm:$0xff]
          %v2103 = vld [vmem:[#allocation2 + $0x208] sm:$0xff]
          %v2104 = vld [vmem:[#allocation2 + $0x210] sm:$0xff]
          %v2105 = vld [vmem:[#allocation2 + $0x218] sm:$0xff]
          %v2106 = vld [vmem:[#allocation2 + $0x220] sm:$0xff]
          %v2107 = vld [vmem:[#allocation2 + $0x228] sm:$0xff]
          %v2108 = vld [vmem:[#allocation2 + $0x230] sm:$0xff]
          %v2109 = vld [vmem:[#allocation2 + $0x238] sm:$0xff]
          %v2110 = vld [vmem:[#allocation2 + $0x240] sm:$0xff]
          %v2111 = vld [vmem:[#allocation2 + $0x248] sm:$0xff]
          %v2112 = vld [vmem:[#allocation2 + $0x250] sm:$0xff]
          %v2113 = vld [vmem:[#allocation2 + $0x258] sm:$0xff]
          %v2114 = vld [vmem:[#allocation2 + $0x260] sm:$0xff]
          %v2115 = vld [vmem:[#allocation2 + $0x268] sm:$0xff]
          %v2116 = vld [vmem:[#allocation2 + $0x270] sm:$0xff]
          %v2117 = vld [vmem:[#allocation2 + $0x278] sm:$0xff]
          %v2118 = vld [vmem:[#allocation2 + $0x280] sm:$0xff]
          %v2119 = vld [vmem:[#allocation2 + $0x288] sm:$0xff]
          %v2120 = vld [vmem:[#allocation2 + $0x290] sm:$0xff]
          %v2121 = vld [vmem:[#allocation2 + $0x298] sm:$0xff]
          %v2122 = vld [vmem:[#allocation2 + $0x2a0] sm:$0xff]
          %v2123 = vld [vmem:[#allocation2 + $0x2a8] sm:$0xff]
          %v2124 = vld [vmem:[#allocation2 + $0x2b0] sm:$0xff]
          %v2125 = vld [vmem:[#allocation2 + $0x2b8] sm:$0xff]
          %v2126 = vld [vmem:[#allocation2 + $0x2c0] sm:$0xff]
          %v2127 = vld [vmem:[#allocation2 + $0x2c8] sm:$0xff]
          %v2128 = vld [vmem:[#allocation2 + $0x2d0] sm:$0xff]
          %v2129 = vld [vmem:[#allocation2 + $0x2d8] sm:$0xff]
          %v2130 = vld [vmem:[#allocation2 + $0x2e0] sm:$0xff]
          %v2131 = vld [vmem:[#allocation2 + $0x2e8] sm:$0xff]
          %v2132 = vld [vmem:[#allocation2 + $0x2f0] sm:$0xff]
          %v2133 = vld [vmem:[#allocation2 + $0x2f8] sm:$0xff]
          %v2134 = vld [vmem:[#allocation2 + $0x300] sm:$0xff]
          %v2135 = vld [vmem:[#allocation2 + $0x308] sm:$0xff]
          %v2136 = vld [vmem:[#allocation2 + $0x310] sm:$0xff]
          %v2137 = vld [vmem:[#allocation2 + $0x318] sm:$0xff]
          %v2138 = vld [vmem:[#allocation2 + $0x320] sm:$0xff]
          %v2139 = vld [vmem:[#allocation2 + $0x328] sm:$0xff]
          %v2140 = vld [vmem:[#allocation2 + $0x330] sm:$0xff]
          %v2141 = vld [vmem:[#allocation2 + $0x338] sm:$0xff]
          %v2142 = vld [vmem:[#allocation2 + $0x340] sm:$0xff]
          %v2143 = vld [vmem:[#allocation2 + $0x348] sm:$0xff]
          %v2144 = vld [vmem:[#allocation2 + $0x350] sm:$0xff]
          %v2145 = vld [vmem:[#allocation2 + $0x358] sm:$0xff]
          %v2146 = vld [vmem:[#allocation2 + $0x360] sm:$0xff]
          %v2147 = vld [vmem:[#allocation2 + $0x368] sm:$0xff]
          %v2148 = vld [vmem:[#allocation2 + $0x370] sm:$0xff]
          %v2149 = vld [vmem:[#allocation2 + $0x378] sm:$0xff]
          %v2150 = vld [vmem:[#allocation2 + $0x380] sm:$0xff]
          %v2151 = vld [vmem:[#allocation2 + $0x388] sm:$0xff]
          %v2152 = vld [vmem:[#allocation2 + $0x390] sm:$0xff]
          %v2153 = vld [vmem:[#allocation2 + $0x398] sm:$0xff]
          %v2154 = vld [vmem:[#allocation2 + $0x3a0] sm:$0xff]
          %v2155 = vld [vmem:[#allocation2 + $0x3a8] sm:$0xff]
          %v2156 = vld [vmem:[#allocation2 + $0x3b0] sm:$0xff]
          %v2157 = vld [vmem:[#allocation2 + $0x3b8] sm:$0xff]
          %v2158 = vld [vmem:[#allocation2 + $0x3c0] sm:$0xff]
          %v2159 = vld [vmem:[#allocation2 + $0x3c8] sm:$0xff]
          %v2160 = vld [vmem:[#allocation2 + $0x3d0] sm:$0xff]
          %v2161 = vld [vmem:[#allocation2 + $0x3d8] sm:$0xff]
          %v2162 = vld [vmem:[#allocation2 + $0x3e0] sm:$0xff]
          %v2163 = vld [vmem:[#allocation2 + $0x3e8] sm:$0xff]
          %v2164 = vld [vmem:[#allocation2 + $0x3f0] sm:$0xff]
          %v2165 = vld [vmem:[#allocation2 + $0x3f8] sm:$0xff]
          %v2166 = vsel %vm1906, %v2038, -inf
          %2167 = vmax.xlane.f32.xlu0 %v2166
          %v2168 = vpop.xlane.xlu0 %2167
          %v2169 = vsel %vm1906, %v2039, -inf
          %2170 = vmax.xlane.f32.xlu0 %v2169
          %v2171 = vpop.xlane.xlu0 %2170
          %v2172 = vsel %vm1906, %v2040, -inf
          %2173 = vmax.xlane.f32.xlu0 %v2172
          %v2174 = vpop.xlane.xlu0 %2173
          %v2175 = vsel %vm1906, %v2041, -inf
          %2176 = vmax.xlane.f32.xlu0 %v2175
          %v2177 = vpop.xlane.xlu0 %2176
          %v2178 = vsel %vm1906, %v2042, -inf
          %2179 = vmax.xlane.f32.xlu0 %v2178
          %v2180 = vpop.xlane.xlu0 %2179
          %v2181 = vsel %vm1906, %v2043, -inf
          %2182 = vmax.xlane.f32.xlu0 %v2181
          %v2183 = vpop.xlane.xlu0 %2182
          %v2184 = vsel %vm1906, %v2044, -inf
          %2185 = vmax.xlane.f32.xlu0 %v2184
          %v2186 = vpop.xlane.xlu0 %2185
          %v2187 = vsel %vm1906, %v2045, -inf
          %2188 = vmax.xlane.f32.xlu0 %v2187
          %v2189 = vpop.xlane.xlu0 %2188
          %v2190 = vsel %vm1906, %v2046, -inf
          %2191 = vmax.xlane.f32.xlu0 %v2190
          %v2192 = vpop.xlane.xlu0 %2191
          %v2193 = vsel %vm1906, %v2047, -inf
          %2194 = vmax.xlane.f32.xlu0 %v2193
          %v2195 = vpop.xlane.xlu0 %2194
          %v2196 = vsel %vm1906, %v2048, -inf
          %2197 = vmax.xlane.f32.xlu0 %v2196
          %v2198 = vpop.xlane.xlu0 %2197
          %v2199 = vsel %vm1906, %v2049, -inf
          %2200 = vmax.xlane.f32.xlu0 %v2199
          %v2201 = vpop.xlane.xlu0 %2200
          %v2202 = vsel %vm1906, %v2050, -inf
          %2203 = vmax.xlane.f32.xlu0 %v2202
          %v2204 = vpop.xlane.xlu0 %2203
          %v2205 = vsel %vm1906, %v2051, -inf
          %2206 = vmax.xlane.f32.xlu0 %v2205
          %v2207 = vpop.xlane.xlu0 %2206
          %v2208 = vsel %vm1906, %v2052, -inf
          %2209 = vmax.xlane.f32.xlu0 %v2208
          %v2210 = vpop.xlane.xlu0 %2209
          %v2211 = vsel %vm1906, %v2053, -inf
          %2212 = vmax.xlane.f32.xlu0 %v2211
          %v2213 = vpop.xlane.xlu0 %2212
          %v2214 = vsel %vm1906, %v2054, -inf
          %2215 = vmax.xlane.f32.xlu0 %v2214
          %v2216 = vpop.xlane.xlu0 %2215
          %v2217 = vsel %vm1906, %v2055, -inf
          %2218 = vmax.xlane.f32.xlu0 %v2217
          %v2219 = vpop.xlane.xlu0 %2218
          %v2220 = vsel %vm1906, %v2056, -inf
          %2221 = vmax.xlane.f32.xlu0 %v2220
          %v2222 = vpop.xlane.xlu0 %2221
          %v2223 = vsel %vm1906, %v2057, -inf
          %2224 = vmax.xlane.f32.xlu0 %v2223
          %v2225 = vpop.xlane.xlu0 %2224
          %v2226 = vsel %vm1906, %v2058, -inf
          %2227 = vmax.xlane.f32.xlu0 %v2226
          %v2228 = vpop.xlane.xlu0 %2227
          %v2229 = vsel %vm1906, %v2059, -inf
          %2230 = vmax.xlane.f32.xlu0 %v2229
          %v2231 = vpop.xlane.xlu0 %2230
          %v2232 = vsel %vm1906, %v2060, -inf
          %2233 = vmax.xlane.f32.xlu0 %v2232
          %v2234 = vpop.xlane.xlu0 %2233
          %v2235 = vsel %vm1906, %v2061, -inf
          %2236 = vmax.xlane.f32.xlu0 %v2235
          %v2237 = vpop.xlane.xlu0 %2236
          %v2238 = vsel %vm1906, %v2062, -inf
          %2239 = vmax.xlane.f32.xlu0 %v2238
          %v2240 = vpop.xlane.xlu0 %2239
          %v2241 = vsel %vm1906, %v2063, -inf
          %2242 = vmax.xlane.f32.xlu0 %v2241
          %v2243 = vpop.xlane.xlu0 %2242
          %v2244 = vsel %vm1906, %v2064, -inf
          %2245 = vmax.xlane.f32.xlu0 %v2244
          %v2246 = vpop.xlane.xlu0 %2245
          %v2247 = vsel %vm1906, %v2065, -inf
          %2248 = vmax.xlane.f32.xlu0 %v2247
          %v2249 = vpop.xlane.xlu0 %2248
          %v2250 = vsel %vm1906, %v2066, -inf
          %2251 = vmax.xlane.f32.xlu0 %v2250
          %v2252 = vpop.xlane.xlu0 %2251
          %v2253 = vsel %vm1906, %v2067, -inf
          %2254 = vmax.xlane.f32.xlu0 %v2253
          %v2255 = vpop.xlane.xlu0 %2254
          %v2256 = vsel %vm1906, %v2068, -inf
          %2257 = vmax.xlane.f32.xlu0 %v2256
          %v2258 = vpop.xlane.xlu0 %2257
          %v2259 = vsel %vm1906, %v2069, -inf
          %2260 = vmax.xlane.f32.xlu0 %v2259
          %v2261 = vpop.xlane.xlu0 %2260
          %v2262 = vsel %vm1906, %v2070, -inf
          %2263 = vmax.xlane.f32.xlu0 %v2262
          %v2264 = vpop.xlane.xlu0 %2263
          %v2265 = vsel %vm1906, %v2071, -inf
          %2266 = vmax.xlane.f32.xlu0 %v2265
          %v2267 = vpop.xlane.xlu0 %2266
          %v2268 = vsel %vm1906, %v2072, -inf
          %2269 = vmax.xlane.f32.xlu0 %v2268
          %v2270 = vpop.xlane.xlu0 %2269
          %v2271 = vsel %vm1906, %v2073, -inf
          %2272 = vmax.xlane.f32.xlu0 %v2271
          %v2273 = vpop.xlane.xlu0 %2272
          %v2274 = vsel %vm1906, %v2074, -inf
          %2275 = vmax.xlane.f32.xlu0 %v2274
          %v2276 = vpop.xlane.xlu0 %2275
          %v2277 = vsel %vm1906, %v2075, -inf
          %2278 = vmax.xlane.f32.xlu0 %v2277
          %v2279 = vpop.xlane.xlu0 %2278
          %v2280 = vsel %vm1906, %v2076, -inf
          %2281 = vmax.xlane.f32.xlu0 %v2280
          %v2282 = vpop.xlane.xlu0 %2281
          %v2283 = vsel %vm1906, %v2077, -inf
          %2284 = vmax.xlane.f32.xlu0 %v2283
          %v2285 = vpop.xlane.xlu0 %2284
          %v2286 = vsel %vm1906, %v2078, -inf
          %2287 = vmax.xlane.f32.xlu0 %v2286
          %v2288 = vpop.xlane.xlu0 %2287
          %v2289 = vsel %vm1906, %v2079, -inf
          %2290 = vmax.xlane.f32.xlu0 %v2289
          %v2291 = vpop.xlane.xlu0 %2290
          %v2292 = vsel %vm1906, %v2080, -inf
          %2293 = vmax.xlane.f32.xlu0 %v2292
          %v2294 = vpop.xlane.xlu0 %2293
          %v2295 = vsel %vm1906, %v2081, -inf
          %2296 = vmax.xlane.f32.xlu0 %v2295
          %v2297 = vpop.xlane.xlu0 %2296
          %v2298 = vsel %vm1906, %v2082, -inf
          %2299 = vmax.xlane.f32.xlu0 %v2298
          %v2300 = vpop.xlane.xlu0 %2299
          %v2301 = vsel %vm1906, %v2083, -inf
          %2302 = vmax.xlane.f32.xlu0 %v2301
          %v2303 = vpop.xlane.xlu0 %2302
          %v2304 = vsel %vm1906, %v2084, -inf
          %2305 = vmax.xlane.f32.xlu0 %v2304
          %v2306 = vpop.xlane.xlu0 %2305
          %v2307 = vsel %vm1906, %v2085, -inf
          %2308 = vmax.xlane.f32.xlu0 %v2307
          %v2309 = vpop.xlane.xlu0 %2308
          %v2310 = vsel %vm1906, %v2086, -inf
          %2311 = vmax.xlane.f32.xlu0 %v2310
          %v2312 = vpop.xlane.xlu0 %2311
          %v2313 = vsel %vm1906, %v2087, -inf
          %2314 = vmax.xlane.f32.xlu0 %v2313
          %v2315 = vpop.xlane.xlu0 %2314
          %v2316 = vsel %vm1906, %v2088, -inf
          %2317 = vmax.xlane.f32.xlu0 %v2316
          %v2318 = vpop.xlane.xlu0 %2317
          %v2319 = vsel %vm1906, %v2089, -inf
          %2320 = vmax.xlane.f32.xlu0 %v2319
          %v2321 = vpop.xlane.xlu0 %2320
          %v2322 = vsel %vm1906, %v2090, -inf
          %2323 = vmax.xlane.f32.xlu0 %v2322
          %v2324 = vpop.xlane.xlu0 %2323
          %v2325 = vsel %vm1906, %v2091, -inf
          %2326 = vmax.xlane.f32.xlu0 %v2325
          %v2327 = vpop.xlane.xlu0 %2326
          %v2328 = vsel %vm1906, %v2092, -inf
          %2329 = vmax.xlane.f32.xlu0 %v2328
          %v2330 = vpop.xlane.xlu0 %2329
          %v2331 = vsel %vm1906, %v2093, -inf
          %2332 = vmax.xlane.f32.xlu0 %v2331
          %v2333 = vpop.xlane.xlu0 %2332
          %v2334 = vsel %vm1906, %v2094, -inf
          %2335 = vmax.xlane.f32.xlu0 %v2334
          %v2336 = vpop.xlane.xlu0 %2335
          %v2337 = vsel %vm1906, %v2095, -inf
          %2338 = vmax.xlane.f32.xlu0 %v2337
          %v2339 = vpop.xlane.xlu0 %2338
          %v2340 = vsel %vm1906, %v2096, -inf
          %2341 = vmax.xlane.f32.xlu0 %v2340
          %v2342 = vpop.xlane.xlu0 %2341
          %v2343 = vsel %vm1906, %v2097, -inf
          %2344 = vmax.xlane.f32.xlu0 %v2343
          %v2345 = vpop.xlane.xlu0 %2344
          %v2346 = vsel %vm1906, %v2098, -inf
          %2347 = vmax.xlane.f32.xlu0 %v2346
          %v2348 = vpop.xlane.xlu0 %2347
          %v2349 = vsel %vm1906, %v2099, -inf
          %2350 = vmax.xlane.f32.xlu0 %v2349
          %v2351 = vpop.xlane.xlu0 %2350
          %v2352 = vsel %vm1906, %v2100, -inf
          %2353 = vmax.xlane.f32.xlu0 %v2352
          %v2354 = vpop.xlane.xlu0 %2353
          %v2355 = vsel %vm1906, %v2101, -inf
          %2356 = vmax.xlane.f32.xlu0 %v2355
          %v2357 = vpop.xlane.xlu0 %2356
          %v2358 = vsel %vm1906, %v2102, -inf
          %2359 = vmax.xlane.f32.xlu0 %v2358
          %v2360 = vpop.xlane.xlu0 %2359
          %v2361 = vsel %vm1906, %v2103, -inf
          %2362 = vmax.xlane.f32.xlu0 %v2361
          %v2363 = vpop.xlane.xlu0 %2362
          %v2364 = vsel %vm1906, %v2104, -inf
          %2365 = vmax.xlane.f32.xlu0 %v2364
          %v2366 = vpop.xlane.xlu0 %2365
          %v2367 = vsel %vm1906, %v2105, -inf
          %2368 = vmax.xlane.f32.xlu0 %v2367
          %v2369 = vpop.xlane.xlu0 %2368
          %v2370 = vsel %vm1906, %v2106, -inf
          %2371 = vmax.xlane.f32.xlu0 %v2370
          %v2372 = vpop.xlane.xlu0 %2371
          %v2373 = vsel %vm1906, %v2107, -inf
          %2374 = vmax.xlane.f32.xlu0 %v2373
          %v2375 = vpop.xlane.xlu0 %2374
          %v2376 = vsel %vm1906, %v2108, -inf
          %2377 = vmax.xlane.f32.xlu0 %v2376
          %v2378 = vpop.xlane.xlu0 %2377
          %v2379 = vsel %vm1906, %v2109, -inf
          %2380 = vmax.xlane.f32.xlu0 %v2379
          %v2381 = vpop.xlane.xlu0 %2380
          %v2382 = vsel %vm1906, %v2110, -inf
          %2383 = vmax.xlane.f32.xlu0 %v2382
          %v2384 = vpop.xlane.xlu0 %2383
          %v2385 = vsel %vm1906, %v2111, -inf
          %2386 = vmax.xlane.f32.xlu0 %v2385
          %v2387 = vpop.xlane.xlu0 %2386
          %v2388 = vsel %vm1906, %v2112, -inf
          %2389 = vmax.xlane.f32.xlu0 %v2388
          %v2390 = vpop.xlane.xlu0 %2389
          %v2391 = vsel %vm1906, %v2113, -inf
          %2392 = vmax.xlane.f32.xlu0 %v2391
          %v2393 = vpop.xlane.xlu0 %2392
          %v2394 = vsel %vm1906, %v2114, -inf
          %2395 = vmax.xlane.f32.xlu0 %v2394
          %v2396 = vpop.xlane.xlu0 %2395
          %v2397 = vsel %vm1906, %v2115, -inf
          %2398 = vmax.xlane.f32.xlu0 %v2397
          %v2399 = vpop.xlane.xlu0 %2398
          %v2400 = vsel %vm1906, %v2116, -inf
          %2401 = vmax.xlane.f32.xlu0 %v2400
          %v2402 = vpop.xlane.xlu0 %2401
          %v2403 = vsel %vm1906, %v2117, -inf
          %2404 = vmax.xlane.f32.xlu0 %v2403
          %v2405 = vpop.xlane.xlu0 %2404
          %v2406 = vsel %vm1906, %v2118, -inf
          %2407 = vmax.xlane.f32.xlu0 %v2406
          %v2408 = vpop.xlane.xlu0 %2407
          %v2409 = vsel %vm1906, %v2119, -inf
          %2410 = vmax.xlane.f32.xlu0 %v2409
          %v2411 = vpop.xlane.xlu0 %2410
          %v2412 = vsel %vm1906, %v2120, -inf
          %2413 = vmax.xlane.f32.xlu0 %v2412
          %v2414 = vpop.xlane.xlu0 %2413
          %v2415 = vsel %vm1906, %v2121, -inf
          %2416 = vmax.xlane.f32.xlu0 %v2415
          %v2417 = vpop.xlane.xlu0 %2416
          %v2418 = vsel %vm1906, %v2122, -inf
          %2419 = vmax.xlane.f32.xlu0 %v2418
          %v2420 = vpop.xlane.xlu0 %2419
          %v2421 = vsel %vm1906, %v2123, -inf
          %2422 = vmax.xlane.f32.xlu0 %v2421
          %v2423 = vpop.xlane.xlu0 %2422
          %v2424 = vsel %vm1906, %v2124, -inf
          %2425 = vmax.xlane.f32.xlu0 %v2424
          %v2426 = vpop.xlane.xlu0 %2425
          %v2427 = vsel %vm1906, %v2125, -inf
          %2428 = vmax.xlane.f32.xlu0 %v2427
          %v2429 = vpop.xlane.xlu0 %2428
          %v2430 = vsel %vm1906, %v2126, -inf
          %2431 = vmax.xlane.f32.xlu0 %v2430
          %v2432 = vpop.xlane.xlu0 %2431
          %v2433 = vsel %vm1906, %v2127, -inf
          %2434 = vmax.xlane.f32.xlu0 %v2433
          %v2435 = vpop.xlane.xlu0 %2434
          %v2436 = vsel %vm1906, %v2128, -inf
          %2437 = vmax.xlane.f32.xlu0 %v2436
          %v2438 = vpop.xlane.xlu0 %2437
          %v2439 = vsel %vm1906, %v2129, -inf
          %2440 = vmax.xlane.f32.xlu0 %v2439
          %v2441 = vpop.xlane.xlu0 %2440
          %v2442 = vsel %vm1906, %v2130, -inf
          %2443 = vmax.xlane.f32.xlu0 %v2442
          %v2444 = vpop.xlane.xlu0 %2443
          %v2445 = vsel %vm1906, %v2131, -inf
          %2446 = vmax.xlane.f32.xlu0 %v2445
          %v2447 = vpop.xlane.xlu0 %2446
          %v2448 = vsel %vm1906, %v2132, -inf
          %2449 = vmax.xlane.f32.xlu0 %v2448
          %v2450 = vpop.xlane.xlu0 %2449
          %v2451 = vsel %vm1906, %v2133, -inf
          %2452 = vmax.xlane.f32.xlu0 %v2451
          %v2453 = vpop.xlane.xlu0 %2452
          %v2454 = vsel %vm1906, %v2134, -inf
          %2455 = vmax.xlane.f32.xlu0 %v2454
          %v2456 = vpop.xlane.xlu0 %2455
          %v2457 = vsel %vm1906, %v2135, -inf
          %2458 = vmax.xlane.f32.xlu0 %v2457
          %v2459 = vpop.xlane.xlu0 %2458
          %v2460 = vsel %vm1906, %v2136, -inf
          %2461 = vmax.xlane.f32.xlu0 %v2460
          %v2462 = vpop.xlane.xlu0 %2461
          %v2463 = vsel %vm1906, %v2137, -inf
          %2464 = vmax.xlane.f32.xlu0 %v2463
          %v2465 = vpop.xlane.xlu0 %2464
          %v2466 = vsel %vm1906, %v2138, -inf
          %2467 = vmax.xlane.f32.xlu0 %v2466
          %v2468 = vpop.xlane.xlu0 %2467
          %v2469 = vsel %vm1906, %v2139, -inf
          %2470 = vmax.xlane.f32.xlu0 %v2469
          %v2471 = vpop.xlane.xlu0 %2470
          %v2472 = vsel %vm1906, %v2140, -inf
          %2473 = vmax.xlane.f32.xlu0 %v2472
          %v2474 = vpop.xlane.xlu0 %2473
          %v2475 = vsel %vm1906, %v2141, -inf
          %2476 = vmax.xlane.f32.xlu0 %v2475
          %v2477 = vpop.xlane.xlu0 %2476
          %v2478 = vsel %vm1906, %v2142, -inf
          %2479 = vmax.xlane.f32.xlu0 %v2478
          %v2480 = vpop.xlane.xlu0 %2479
          %v2481 = vsel %vm1906, %v2143, -inf
          %2482 = vmax.xlane.f32.xlu0 %v2481
          %v2483 = vpop.xlane.xlu0 %2482
          %v2484 = vsel %vm1906, %v2144, -inf
          %2485 = vmax.xlane.f32.xlu0 %v2484
          %v2486 = vpop.xlane.xlu0 %2485
          %v2487 = vsel %vm1906, %v2145, -inf
          %2488 = vmax.xlane.f32.xlu0 %v2487
          %v2489 = vpop.xlane.xlu0 %2488
          %v2490 = vsel %vm1906, %v2146, -inf
          %2491 = vmax.xlane.f32.xlu0 %v2490
          %v2492 = vpop.xlane.xlu0 %2491
          %v2493 = vsel %vm1906, %v2147, -inf
          %2494 = vmax.xlane.f32.xlu0 %v2493
          %v2495 = vpop.xlane.xlu0 %2494
          %v2496 = vsel %vm1906, %v2148, -inf
          %2497 = vmax.xlane.f32.xlu0 %v2496
          %v2498 = vpop.xlane.xlu0 %2497
          %v2499 = vsel %vm1906, %v2149, -inf
          %2500 = vmax.xlane.f32.xlu0 %v2499
          %v2501 = vpop.xlane.xlu0 %2500
          %v2502 = vsel %vm1906, %v2150, -inf
          %2503 = vmax.xlane.f32.xlu0 %v2502
          %v2504 = vpop.xlane.xlu0 %2503
          %v2505 = vsel %vm1906, %v2151, -inf
          %2506 = vmax.xlane.f32.xlu0 %v2505
          %v2507 = vpop.xlane.xlu0 %2506
          %v2508 = vsel %vm1906, %v2152, -inf
          %2509 = vmax.xlane.f32.xlu0 %v2508
          %v2510 = vpop.xlane.xlu0 %2509
          %v2511 = vsel %vm1906, %v2153, -inf
          %2512 = vmax.xlane.f32.xlu0 %v2511
          %v2513 = vpop.xlane.xlu0 %2512
          %v2514 = vsel %vm1906, %v2154, -inf
          %2515 = vmax.xlane.f32.xlu0 %v2514
          %v2516 = vpop.xlane.xlu0 %2515
          %v2517 = vsel %vm1906, %v2155, -inf
          %2518 = vmax.xlane.f32.xlu0 %v2517
          %v2519 = vpop.xlane.xlu0 %2518
          %v2520 = vsel %vm1906, %v2156, -inf
          %2521 = vmax.xlane.f32.xlu0 %v2520
          %v2522 = vpop.xlane.xlu0 %2521
          %v2523 = vsel %vm1906, %v2157, -inf
          %2524 = vmax.xlane.f32.xlu0 %v2523
          %v2525 = vpop.xlane.xlu0 %2524
          %v2526 = vsel %vm1906, %v2158, -inf
          %2527 = vmax.xlane.f32.xlu0 %v2526
          %v2528 = vpop.xlane.xlu0 %2527
          %v2529 = vsel %vm1906, %v2159, -inf
          %2530 = vmax.xlane.f32.xlu0 %v2529
          %v2531 = vpop.xlane.xlu0 %2530
          %v2532 = vsel %vm1906, %v2160, -inf
          %2533 = vmax.xlane.f32.xlu0 %v2532
          %v2534 = vpop.xlane.xlu0 %2533
          %v2535 = vsel %vm1906, %v2161, -inf
          %2536 = vmax.xlane.f32.xlu0 %v2535
          %v2537 = vpop.xlane.xlu0 %2536
          %v2538 = vsel %vm1906, %v2162, -inf
          %2539 = vmax.xlane.f32.xlu0 %v2538
          %v2540 = vpop.xlane.xlu0 %2539
          %v2541 = vsel %vm1906, %v2163, -inf
          %2542 = vmax.xlane.f32.xlu0 %v2541
          %v2543 = vpop.xlane.xlu0 %2542
          %v2544 = vsel %vm1906, %v2164, -inf
          %2545 = vmax.xlane.f32.xlu0 %v2544
          %v2546 = vpop.xlane.xlu0 %2545
          %v2547 = vsel %vm1906, %v2165, -inf
          %2548 = vmax.xlane.f32.xlu0 %v2547
          %v2549 = vpop.xlane.xlu0 %2548
          %vm2550 = vcmask 7168
          %2551 = vst.msk [vmem:[%s288] sm:$0xff] %vm2550, %v2168
          %2552 = vst.msk [vmem:[%s288 + $0x8] sm:$0xff] %vm2550, %v2171
          %2553 = vst.msk [vmem:[%s288 + $0x10] sm:$0xff] %vm2550, %v2174
          %2554 = vst.msk [vmem:[%s288 + $0x18] sm:$0xff] %vm2550, %v2177
          %2555 = vst.msk [vmem:[%s288 + $0x20] sm:$0xff] %vm2550, %v2180
          %2556 = vst.msk [vmem:[%s288 + $0x28] sm:$0xff] %vm2550, %v2183
          %2557 = vst.msk [vmem:[%s288 + $0x30] sm:$0xff] %vm2550, %v2186
          %2558 = vst.msk [vmem:[%s288 + $0x38] sm:$0xff] %vm2550, %v2189
          %2559 = vst.msk [vmem:[%s288 + $0x40] sm:$0xff] %vm2550, %v2192
          %2560 = vst.msk [vmem:[%s288 + $0x48] sm:$0xff] %vm2550, %v2195
          %2561 = vst.msk [vmem:[%s288 + $0x50] sm:$0xff] %vm2550, %v2198
          %2562 = vst.msk [vmem:[%s288 + $0x58] sm:$0xff] %vm2550, %v2201
          %2563 = vst.msk [vmem:[%s288 + $0x60] sm:$0xff] %vm2550, %v2204
          %2564 = vst.msk [vmem:[%s288 + $0x68] sm:$0xff] %vm2550, %v2207
          %2565 = vst.msk [vmem:[%s288 + $0x70] sm:$0xff] %vm2550, %v2210
          %2566 = vst.msk [vmem:[%s288 + $0x78] sm:$0xff] %vm2550, %v2213
          %2567 = vst.msk [vmem:[%s288 + $0x80] sm:$0xff] %vm2550, %v2216
          %2568 = vst.msk [vmem:[%s288 + $0x88] sm:$0xff] %vm2550, %v2219
          %2569 = vst.msk [vmem:[%s288 + $0x90] sm:$0xff] %vm2550, %v2222
          %2570 = vst.msk [vmem:[%s288 + $0x98] sm:$0xff] %vm2550, %v2225
          %2571 = vst.msk [vmem:[%s288 + $0xa0] sm:$0xff] %vm2550, %v2228
          %2572 = vst.msk [vmem:[%s288 + $0xa8] sm:$0xff] %vm2550, %v2231
          %2573 = vst.msk [vmem:[%s288 + $0xb0] sm:$0xff] %vm2550, %v2234
          %2574 = vst.msk [vmem:[%s288 + $0xb8] sm:$0xff] %vm2550, %v2237
          %2575 = vst.msk [vmem:[%s288 + $0xc0] sm:$0xff] %vm2550, %v2240
          %2576 = vst.msk [vmem:[%s288 + $0xc8] sm:$0xff] %vm2550, %v2243
          %2577 = vst.msk [vmem:[%s288 + $0xd0] sm:$0xff] %vm2550, %v2246
          %2578 = vst.msk [vmem:[%s288 + $0xd8] sm:$0xff] %vm2550, %v2249
          %2579 = vst.msk [vmem:[%s288 + $0xe0] sm:$0xff] %vm2550, %v2252
          %2580 = vst.msk [vmem:[%s288 + $0xe8] sm:$0xff] %vm2550, %v2255
          %2581 = vst.msk [vmem:[%s288 + $0xf0] sm:$0xff] %vm2550, %v2258
          %2582 = vst.msk [vmem:[%s288 + $0xf8] sm:$0xff] %vm2550, %v2261
          %2583 = vst.msk [vmem:[%s288 + $0x100] sm:$0xff] %vm2550, %v2264
          %2584 = vst.msk [vmem:[%s288 + $0x108] sm:$0xff] %vm2550, %v2267
          %2585 = vst.msk [vmem:[%s288 + $0x110] sm:$0xff] %vm2550, %v2270
          %2586 = vst.msk [vmem:[%s288 + $0x118] sm:$0xff] %vm2550, %v2273
          %2587 = vst.msk [vmem:[%s288 + $0x120] sm:$0xff] %vm2550, %v2276
          %2588 = vst.msk [vmem:[%s288 + $0x128] sm:$0xff] %vm2550, %v2279
          %2589 = vst.msk [vmem:[%s288 + $0x130] sm:$0xff] %vm2550, %v2282
          %2590 = vst.msk [vmem:[%s288 + $0x138] sm:$0xff] %vm2550, %v2285
          %2591 = vst.msk [vmem:[%s288 + $0x140] sm:$0xff] %vm2550, %v2288
          %2592 = vst.msk [vmem:[%s288 + $0x148] sm:$0xff] %vm2550, %v2291
          %2593 = vst.msk [vmem:[%s288 + $0x150] sm:$0xff] %vm2550, %v2294
          %2594 = vst.msk [vmem:[%s288 + $0x158] sm:$0xff] %vm2550, %v2297
          %2595 = vst.msk [vmem:[%s288 + $0x160] sm:$0xff] %vm2550, %v2300
          %2596 = vst.msk [vmem:[%s288 + $0x168] sm:$0xff] %vm2550, %v2303
          %2597 = vst.msk [vmem:[%s288 + $0x170] sm:$0xff] %vm2550, %v2306
          %2598 = vst.msk [vmem:[%s288 + $0x178] sm:$0xff] %vm2550, %v2309
          %2599 = vst.msk [vmem:[%s288 + $0x180] sm:$0xff] %vm2550, %v2312
          %2600 = vst.msk [vmem:[%s288 + $0x188] sm:$0xff] %vm2550, %v2315
          %2601 = vst.msk [vmem:[%s288 + $0x190] sm:$0xff] %vm2550, %v2318
          %2602 = vst.msk [vmem:[%s288 + $0x198] sm:$0xff] %vm2550, %v2321
          %2603 = vst.msk [vmem:[%s288 + $0x1a0] sm:$0xff] %vm2550, %v2324
          %2604 = vst.msk [vmem:[%s288 + $0x1a8] sm:$0xff] %vm2550, %v2327
          %2605 = vst.msk [vmem:[%s288 + $0x1b0] sm:$0xff] %vm2550, %v2330
          %2606 = vst.msk [vmem:[%s288 + $0x1b8] sm:$0xff] %vm2550, %v2333
          %2607 = vst.msk [vmem:[%s288 + $0x1c0] sm:$0xff] %vm2550, %v2336
          %2608 = vst.msk [vmem:[%s288 + $0x1c8] sm:$0xff] %vm2550, %v2339
          %2609 = vst.msk [vmem:[%s288 + $0x1d0] sm:$0xff] %vm2550, %v2342
          %2610 = vst.msk [vmem:[%s288 + $0x1d8] sm:$0xff] %vm2550, %v2345
          %2611 = vst.msk [vmem:[%s288 + $0x1e0] sm:$0xff] %vm2550, %v2348
          %2612 = vst.msk [vmem:[%s288 + $0x1e8] sm:$0xff] %vm2550, %v2351
          %2613 = vst.msk [vmem:[%s288 + $0x1f0] sm:$0xff] %vm2550, %v2354
          %2614 = vst.msk [vmem:[%s288 + $0x1f8] sm:$0xff] %vm2550, %v2357
          %2615 = vst.msk [vmem:[%s288 + $0x200] sm:$0xff] %vm2550, %v2360
          %2616 = vst.msk [vmem:[%s288 + $0x208] sm:$0xff] %vm2550, %v2363
          %2617 = vst.msk [vmem:[%s288 + $0x210] sm:$0xff] %vm2550, %v2366
          %2618 = vst.msk [vmem:[%s288 + $0x218] sm:$0xff] %vm2550, %v2369
          %2619 = vst.msk [vmem:[%s288 + $0x220] sm:$0xff] %vm2550, %v2372
          %2620 = vst.msk [vmem:[%s288 + $0x228] sm:$0xff] %vm2550, %v2375
          %2621 = vst.msk [vmem:[%s288 + $0x230] sm:$0xff] %vm2550, %v2378
          %2622 = vst.msk [vmem:[%s288 + $0x238] sm:$0xff] %vm2550, %v2381
          %2623 = vst.msk [vmem:[%s288 + $0x240] sm:$0xff] %vm2550, %v2384
          %2624 = vst.msk [vmem:[%s288 + $0x248] sm:$0xff] %vm2550, %v2387
          %2625 = vst.msk [vmem:[%s288 + $0x250] sm:$0xff] %vm2550, %v2390
          %2626 = vst.msk [vmem:[%s288 + $0x258] sm:$0xff] %vm2550, %v2393
          %2627 = vst.msk [vmem:[%s288 + $0x260] sm:$0xff] %vm2550, %v2396
          %2628 = vst.msk [vmem:[%s288 + $0x268] sm:$0xff] %vm2550, %v2399
          %2629 = vst.msk [vmem:[%s288 + $0x270] sm:$0xff] %vm2550, %v2402
          %2630 = vst.msk [vmem:[%s288 + $0x278] sm:$0xff] %vm2550, %v2405
          %2631 = vst.msk [vmem:[%s288 + $0x280] sm:$0xff] %vm2550, %v2408
          %2632 = vst.msk [vmem:[%s288 + $0x288] sm:$0xff] %vm2550, %v2411
          %2633 = vst.msk [vmem:[%s288 + $0x290] sm:$0xff] %vm2550, %v2414
          %2634 = vst.msk [vmem:[%s288 + $0x298] sm:$0xff] %vm2550, %v2417
          %2635 = vst.msk [vmem:[%s288 + $0x2a0] sm:$0xff] %vm2550, %v2420
          %2636 = vst.msk [vmem:[%s288 + $0x2a8] sm:$0xff] %vm2550, %v2423
          %2637 = vst.msk [vmem:[%s288 + $0x2b0] sm:$0xff] %vm2550, %v2426
          %2638 = vst.msk [vmem:[%s288 + $0x2b8] sm:$0xff] %vm2550, %v2429
          %2639 = vst.msk [vmem:[%s288 + $0x2c0] sm:$0xff] %vm2550, %v2432
          %2640 = vst.msk [vmem:[%s288 + $0x2c8] sm:$0xff] %vm2550, %v2435
          %2641 = vst.msk [vmem:[%s288 + $0x2d0] sm:$0xff] %vm2550, %v2438
          %2642 = vst.msk [vmem:[%s288 + $0x2d8] sm:$0xff] %vm2550, %v2441
          %2643 = vst.msk [vmem:[%s288 + $0x2e0] sm:$0xff] %vm2550, %v2444
          %2644 = vst.msk [vmem:[%s288 + $0x2e8] sm:$0xff] %vm2550, %v2447
          %2645 = vst.msk [vmem:[%s288 + $0x2f0] sm:$0xff] %vm2550, %v2450
          %2646 = vst.msk [vmem:[%s288 + $0x2f8] sm:$0xff] %vm2550, %v2453
          %2647 = vst.msk [vmem:[%s288 + $0x300] sm:$0xff] %vm2550, %v2456
          %2648 = vst.msk [vmem:[%s288 + $0x308] sm:$0xff] %vm2550, %v2459
          %2649 = vst.msk [vmem:[%s288 + $0x310] sm:$0xff] %vm2550, %v2462
          %2650 = vst.msk [vmem:[%s288 + $0x318] sm:$0xff] %vm2550, %v2465
          %2651 = vst.msk [vmem:[%s288 + $0x320] sm:$0xff] %vm2550, %v2468
          %2652 = vst.msk [vmem:[%s288 + $0x328] sm:$0xff] %vm2550, %v2471
          %2653 = vst.msk [vmem:[%s288 + $0x330] sm:$0xff] %vm2550, %v2474
          %2654 = vst.msk [vmem:[%s288 + $0x338] sm:$0xff] %vm2550, %v2477
          %2655 = vst.msk [vmem:[%s288 + $0x340] sm:$0xff] %vm2550, %v2480
          %2656 = vst.msk [vmem:[%s288 + $0x348] sm:$0xff] %vm2550, %v2483
          %2657 = vst.msk [vmem:[%s288 + $0x350] sm:$0xff] %vm2550, %v2486
          %2658 = vst.msk [vmem:[%s288 + $0x358] sm:$0xff] %vm2550, %v2489
          %2659 = vst.msk [vmem:[%s288 + $0x360] sm:$0xff] %vm2550, %v2492
          %2660 = vst.msk [vmem:[%s288 + $0x368] sm:$0xff] %vm2550, %v2495
          %2661 = vst.msk [vmem:[%s288 + $0x370] sm:$0xff] %vm2550, %v2498
          %2662 = vst.msk [vmem:[%s288 + $0x378] sm:$0xff] %vm2550, %v2501
          %2663 = vst.msk [vmem:[%s288 + $0x380] sm:$0xff] %vm2550, %v2504
          %2664 = vst.msk [vmem:[%s288 + $0x388] sm:$0xff] %vm2550, %v2507
          %2665 = vst.msk [vmem:[%s288 + $0x390] sm:$0xff] %vm2550, %v2510
          %2666 = vst.msk [vmem:[%s288 + $0x398] sm:$0xff] %vm2550, %v2513
          %2667 = vst.msk [vmem:[%s288 + $0x3a0] sm:$0xff] %vm2550, %v2516
          %2668 = vst.msk [vmem:[%s288 + $0x3a8] sm:$0xff] %vm2550, %v2519
          %2669 = vst.msk [vmem:[%s288 + $0x3b0] sm:$0xff] %vm2550, %v2522
          %2670 = vst.msk [vmem:[%s288 + $0x3b8] sm:$0xff] %vm2550, %v2525
          %2671 = vst.msk [vmem:[%s288 + $0x3c0] sm:$0xff] %vm2550, %v2528
          %2672 = vst.msk [vmem:[%s288 + $0x3c8] sm:$0xff] %vm2550, %v2531
          %2673 = vst.msk [vmem:[%s288 + $0x3d0] sm:$0xff] %vm2550, %v2534
          %2674 = vst.msk [vmem:[%s288 + $0x3d8] sm:$0xff] %vm2550, %v2537
          %2675 = vst.msk [vmem:[%s288 + $0x3e0] sm:$0xff] %vm2550, %v2540
          %2676 = vst.msk [vmem:[%s288 + $0x3e8] sm:$0xff] %vm2550, %v2543
          %2677 = vst.msk [vmem:[%s288 + $0x3f0] sm:$0xff] %vm2550, %v2546
          %2678 = vst.msk [vmem:[%s288 + $0x3f8] sm:$0xff] %vm2550, %v2549
        $region56: #{stn3d_forward.2} parent=43 // pred_fallthru
          _
        %p2679 = scmp.lt.s32.totalorder %s22, 1
        %s2680 = scalar_select %p2679, %s22, 1
        %s2681 = smul.addr %s2680, 128
        %s2682 = smul.addr %s2681, 8
        %s2683 = scalar_lea.vmem %s6, %s2682
        // Predicated region
        $region57: #{stn3d_forward.2} parent=43 // pred_check
          %p2684 = pneg %p181
        $region58: #{stn3d_forward.2} parent=43 // pred_check_branch
          %2686 = sbr.rel (%p2684) target = $region60
        $region59: #{stn3d_forward.2} parent=43 // pred_region
          _
        $region60: #{stn3d_forward.2} parent=43 // pred_fallthru
          _
      $region44: #{stn3d_forward.2} parent=5 // pred_fallthru
        _
      %p2687 = scmp.le.s32.totalorder 2, %s13
      // Predicated region
      $region61: #{stn3d_forward.2} parent=5 // pred_check
        %p2688 = pneg %p2687
      $region62: #{stn3d_forward.2} parent=5 // pred_check_branch
        %2690 = sbr.rel (%p2688) target = $region64
      $region63: #{stn3d_forward.2} parent=5 // pred_region
        %s2691 = ssub.s32 %s13, 2
        // Predicated region
        $region65: #{stn3d_forward.2} parent=63 // pred_check
          %p2692 = pneg %p187
        $region66: #{stn3d_forward.2} parent=63 // pred_check_branch
          %2694 = sbr.rel (%p2692) target = $region68
        $region67: #{stn3d_forward.2} parent=63 // pred_region
          %p2695 = scmp.lt.s32.totalorder %s24, 1
          %s2696 = scalar_select %p2695, %s24, 1
          %s2697 = smul.addr %s2696, 128
          %s2698 = smul.addr %s2697, 8
          %s2699 = scalar_lea.vmem %s6, %s2698
        $region68: #{stn3d_forward.2} parent=63 // pred_fallthru
          _
      $region64: #{stn3d_forward.2} parent=5 // pred_fallthru
        _
    $region6: #{stn3d_forward.2} parent=1 // loop_footer
      %s17 = sadd.s32 1, %s13
    $region7: #{stn3d_forward.2} parent=1 // loop_footer_branch
      %12 = sbr.rel target = $region3
    $region8: #{stn3d_forward.2} parent=1 // loop_exit
      _
    %2700 = vsyncpa [#allocation4], 1
    %s2701 = scalar_lea.sflag [#allocation4], 1
    %2702 = vsyncpa %s2701, 1

// kernel: stn3d_forward.3
$region0: #{stn3d_forward.3}
  #allocation0 [shape = 'u32[]', space=smem, size = 0x4, offset = 0x4, fixed_abs, tag = 'smem constant byte address 0x4 - core index']
  #allocation1 [shape = 'u32[72,128]{1,0:T(1,128)}', space=vmem, size = 0x9000, scoped, tag = 'internal scratch']
  %s0 = inlined_call_operand.vmem [shape: f32[2,1024], index: 0, kind: input, shape index: {}]
  %s1 = inlined_call_operand.vmem [shape: f32[1,1024], index: 1, kind: input, shape index: {}]
  %s2 = inlined_call_operand.vmem [shape: bf16[1024,512], index: 2, kind: input, shape index: {}]
  %s3 = inlined_call_operand.vmem [shape: f32[1,512], index: 3, kind: input, shape index: {}]
  %s4 = inlined_call_operand.vmem [shape: bf16[512,256], index: 4, kind: input, shape index: {}]
  %s5 = inlined_call_operand.vmem [shape: f32[1,256], index: 5, kind: input, shape index: {}]
  %s6 = inlined_call_operand.vmem [shape: bf16[256,9], index: 6, kind: input, shape index: {}]
  %s7 = inlined_call_operand.vmem [shape: f32[1,9], index: 7, kind: input, shape index: {}]
  %s8 = inlined_call_operand.vmem [shape: f32[2,9], index: 8, kind: output, shape index: {}]
  %s9 = sld [smem:[#allocation0]]
  $region42: #{stn3d_forward.3} parent=0
    _
  %s11 = ssub.s32 1, %s9
  %s12 = scalar_select 0, %s11, %s9
  // Predicated region
  $region2: #{stn3d_forward.3} parent=0 // pred_check
    _
  $region3: #{stn3d_forward.3} parent=0 // pred_check_branch
    %14 = sbr.rel (0) target = $region5
  $region4: #{stn3d_forward.3} parent=0 // pred_region
    _
  $region5: #{stn3d_forward.3} parent=0 // pred_fallthru
    _
  // Predicated region
  $region6: #{stn3d_forward.3} parent=0 // pred_check
    _
  $region7: #{stn3d_forward.3} parent=0 // pred_check_branch
    %16 = sbr.rel (0) target = $region9
  $region8: #{stn3d_forward.3} parent=0 // pred_region
    _
  $region9: #{stn3d_forward.3} parent=0 // pred_fallthru
    _
  // Predicated region
  $region10: #{stn3d_forward.3} parent=0 // pred_check
    _
  $region11: #{stn3d_forward.3} parent=0 // pred_check_branch
    %18 = sbr.rel (0) target = $region13
  $region12: #{stn3d_forward.3} parent=0 // pred_region
    _
  $region13: #{stn3d_forward.3} parent=0 // pred_fallthru
    _
  // Predicated region
  $region14: #{stn3d_forward.3} parent=0 // pred_check
    _
  $region15: #{stn3d_forward.3} parent=0 // pred_check_branch
    %20 = sbr.rel (0) target = $region17
  $region16: #{stn3d_forward.3} parent=0 // pred_region
    _
  $region17: #{stn3d_forward.3} parent=0 // pred_fallthru
    _
  // Predicated region
  $region18: #{stn3d_forward.3} parent=0 // pred_check
    _
  $region19: #{stn3d_forward.3} parent=0 // pred_check_branch
    %22 = sbr.rel (0) target = $region21
  $region20: #{stn3d_forward.3} parent=0 // pred_region
    _
  $region21: #{stn3d_forward.3} parent=0 // pred_fallthru
    _
  // Predicated region
  $region22: #{stn3d_forward.3} parent=0 // pred_check
    _
  $region23: #{stn3d_forward.3} parent=0 // pred_check_branch
    %24 = sbr.rel (0) target = $region25
  $region24: #{stn3d_forward.3} parent=0 // pred_region
    _
  $region25: #{stn3d_forward.3} parent=0 // pred_fallthru
    _
  // Predicated region
  $region26: #{stn3d_forward.3} parent=0 // pred_check
    _
  $region27: #{stn3d_forward.3} parent=0 // pred_check_branch
    %26 = sbr.rel (0) target = $region29
  $region28: #{stn3d_forward.3} parent=0 // pred_region
    _
  $region29: #{stn3d_forward.3} parent=0 // pred_fallthru
    _
  // Predicated region
  $region30: #{stn3d_forward.3} parent=0 // pred_check
    _
  $region31: #{stn3d_forward.3} parent=0 // pred_check_branch
    %28 = sbr.rel (0) target = $region33
  $region32: #{stn3d_forward.3} parent=0 // pred_region
    _
  $region33: #{stn3d_forward.3} parent=0 // pred_fallthru
    _
  %v29 = vld [vmem:[%s0] sm:$0xff]
  %v30 = vld [vmem:[%s0 + $0x8] sm:$0xff]
  %v31 = vld [vmem:[%s1] sm:$0xff]
  %v33 = vperm.slane %v31, 0
  %v34 = vperm.slane %v31, 1
  %v35 = vperm.slane %v31, 2
  %v36 = vperm.slane %v31, 3
  %v37 = vperm.slane %v31, 4
  %v38 = vperm.slane %v31, 5
  %v39 = vperm.slane %v31, 6
  %v40 = vperm.slane %v31, 7
  %v41 = vrot.slane %v34, 6
  %v42 = vrot.slane %v35, 4
  %v43 = vrot.slane %v36, 2
  %v44 = vrot.slane %v38, 6
  %v45 = vrot.slane %v39, 4
  %v46 = vrot.slane %v40, 2
  %vm47 = vcmask 1041408
  %v48 = vsel %vm47, %v33, %v41
  %vm49 = vcmask 1045508
  %v50 = vsel %vm49, %v42, %v43
  %vm51 = vcmask 1043456
  %v52 = vsel %vm51, %v48, %v50
  %v53 = vsel %vm47, %v37, %v44
  %v54 = vsel %vm49, %v45, %v46
  %v55 = vsel %vm51, %v53, %v54
  %v58 = vadd.f32 %v29, %v52
  %v59 = vadd.f32 %v30, %v55
  %v60 = vmax.f32 %v58, 0.0
  %v61 = vmax.f32 %v59, 0.0
  %64 = vst [vmem:[#allocation1] ss:$4 sm:$0xff] %v60
  %s65 = scalar_lea.vmem [#allocation1], 32
  %66 = vst [vmem:[%s65] ss:$4 sm:$0xff] %v61
  %v67 = vld.sshfl [vmem:[#allocation1] sm:$0xff pattern:$0x73625140]
  %v68 = vld.sshfl [vmem:[#allocation1 + $0x8] sm:$0xff pattern:$0x73625140]
  %v69 = vld.sshfl [vmem:[#allocation1 + $0x10] sm:$0xff pattern:$0x73625140]
  %v70 = vld.sshfl [vmem:[#allocation1 + $0x18] sm:$0xff pattern:$0x73625140]
  %v71 = vld.sshfl [vmem:[#allocation1 + $0x20] sm:$0xff pattern:$0x73625140]
  %v72 = vld.sshfl [vmem:[#allocation1 + $0x28] sm:$0xff pattern:$0x73625140]
  %v73 = vld.sshfl [vmem:[#allocation1 + $0x30] sm:$0xff pattern:$0x73625140]
  %v74 = vld.sshfl [vmem:[#allocation1 + $0x38] sm:$0xff pattern:$0x73625140]
  %v83 = vpack.c.bf16 %v67, %v67
  %v84 = vpack.c.bf16 %v68, %v68
  %v85 = vpack.c.bf16 %v69, %v69
  %v86 = vpack.c.bf16 %v70, %v70
  %v87 = vpack.c.bf16 %v71, %v71
  %v88 = vpack.c.bf16 %v72, %v72
  %v89 = vpack.c.bf16 %v73, %v73
  %v90 = vpack.c.bf16 %v74, %v74
  %v91 = vld [vmem:[%s2] sm:$0xff]
  %v92 = vld [vmem:[%s2 + $0x8] sm:$0xff]
  %v93 = vld [vmem:[%s2 + $0x10] sm:$0xff]
  %v94 = vld [vmem:[%s2 + $0x18] sm:$0xff]
  %v95 = vld [vmem:[%s2 + $0x20] sm:$0xff]
  %v96 = vld [vmem:[%s2 + $0x28] sm:$0xff]
  %v97 = vld [vmem:[%s2 + $0x30] sm:$0xff]
  %v98 = vld [vmem:[%s2 + $0x38] sm:$0xff]
  %v99 = vld [vmem:[%s2 + $0x40] sm:$0xff]
  %v100 = vld [vmem:[%s2 + $0x48] sm:$0xff]
  %v101 = vld [vmem:[%s2 + $0x50] sm:$0xff]
  %v102 = vld [vmem:[%s2 + $0x58] sm:$0xff]
  %v103 = vld [vmem:[%s2 + $0x60] sm:$0xff]
  %v104 = vld [vmem:[%s2 + $0x68] sm:$0xff]
  %v105 = vld [vmem:[%s2 + $0x70] sm:$0xff]
  %v106 = vld [vmem:[%s2 + $0x78] sm:$0xff]
  %v107 = vld [vmem:[%s2 + $0x80] sm:$0xff]
  %v108 = vld [vmem:[%s2 + $0x88] sm:$0xff]
  %v109 = vld [vmem:[%s2 + $0x90] sm:$0xff]
  %v110 = vld [vmem:[%s2 + $0x98] sm:$0xff]
  %v111 = vld [vmem:[%s2 + $0xa0] sm:$0xff]
  %v112 = vld [vmem:[%s2 + $0xa8] sm:$0xff]
  %v113 = vld [vmem:[%s2 + $0xb0] sm:$0xff]
  %v114 = vld [vmem:[%s2 + $0xb8] sm:$0xff]
  %v115 = vld [vmem:[%s2 + $0xc0] sm:$0xff]
  %v116 = vld [vmem:[%s2 + $0xc8] sm:$0xff]
  %v117 = vld [vmem:[%s2 + $0xd0] sm:$0xff]
  %v118 = vld [vmem:[%s2 + $0xd8] sm:$0xff]
  %v119 = vld [vmem:[%s2 + $0xe0] sm:$0xff]
  %v120 = vld [vmem:[%s2 + $0xe8] sm:$0xff]
  %v121 = vld [vmem:[%s2 + $0xf0] sm:$0xff]
  %v122 = vld [vmem:[%s2 + $0xf8] sm:$0xff]
  %v123 = vld [vmem:[%s2 + $0x100] sm:$0xff]
  %v124 = vld [vmem:[%s2 + $0x108] sm:$0xff]
  %v125 = vld [vmem:[%s2 + $0x110] sm:$0xff]
  %v126 = vld [vmem:[%s2 + $0x118] sm:$0xff]
  %v127 = vld [vmem:[%s2 + $0x120] sm:$0xff]
  %v128 = vld [vmem:[%s2 + $0x128] sm:$0xff]
  %v129 = vld [vmem:[%s2 + $0x130] sm:$0xff]
  %v130 = vld [vmem:[%s2 + $0x138] sm:$0xff]
  %v131 = vld [vmem:[%s2 + $0x140] sm:$0xff]
  %v132 = vld [vmem:[%s2 + $0x148] sm:$0xff]
  %v133 = vld [vmem:[%s2 + $0x150] sm:$0xff]
  %v134 = vld [vmem:[%s2 + $0x158] sm:$0xff]
  %v135 = vld [vmem:[%s2 + $0x160] sm:$0xff]
  %v136 = vld [vmem:[%s2 + $0x168] sm:$0xff]
  %v137 = vld [vmem:[%s2 + $0x170] sm:$0xff]
  %v138 = vld [vmem:[%s2 + $0x178] sm:$0xff]
  %v139 = vld [vmem:[%s2 + $0x180] sm:$0xff]
  %v140 = vld [vmem:[%s2 + $0x188] sm:$0xff]
  %v141 = vld [vmem:[%s2 + $0x190] sm:$0xff]
  %v142 = vld [vmem:[%s2 + $0x198] sm:$0xff]
  %v143 = vld [vmem:[%s2 + $0x1a0] sm:$0xff]
  %v144 = vld [vmem:[%s2 + $0x1a8] sm:$0xff]
  %v145 = vld [vmem:[%s2 + $0x1b0] sm:$0xff]
  %v146 = vld [vmem:[%s2 + $0x1b8] sm:$0xff]
  %v147 = vld [vmem:[%s2 + $0x1c0] sm:$0xff]
  %v148 = vld [vmem:[%s2 + $0x1c8] sm:$0xff]
  %v149 = vld [vmem:[%s2 + $0x1d0] sm:$0xff]
  %v150 = vld [vmem:[%s2 + $0x1d8] sm:$0xff]
  %v151 = vld [vmem:[%s2 + $0x1e0] sm:$0xff]
  %v152 = vld [vmem:[%s2 + $0x1e8] sm:$0xff]
  %v153 = vld [vmem:[%s2 + $0x1f0] sm:$0xff]
  %v154 = vld [vmem:[%s2 + $0x1f8] sm:$0xff]
  %v155 = vld [vmem:[%s2 + $0x200] sm:$0xff]
  %v156 = vld [vmem:[%s2 + $0x208] sm:$0xff]
  %v157 = vld [vmem:[%s2 + $0x210] sm:$0xff]
  %v158 = vld [vmem:[%s2 + $0x218] sm:$0xff]
  %v159 = vld [vmem:[%s2 + $0x220] sm:$0xff]
  %v160 = vld [vmem:[%s2 + $0x228] sm:$0xff]
  %v161 = vld [vmem:[%s2 + $0x230] sm:$0xff]
  %v162 = vld [vmem:[%s2 + $0x238] sm:$0xff]
  %v163 = vld [vmem:[%s2 + $0x240] sm:$0xff]
  %v164 = vld [vmem:[%s2 + $0x248] sm:$0xff]
  %v165 = vld [vmem:[%s2 + $0x250] sm:$0xff]
  %v166 = vld [vmem:[%s2 + $0x258] sm:$0xff]
  %v167 = vld [vmem:[%s2 + $0x260] sm:$0xff]
  %v168 = vld [vmem:[%s2 + $0x268] sm:$0xff]
  %v169 = vld [vmem:[%s2 + $0x270] sm:$0xff]
  %v170 = vld [vmem:[%s2 + $0x278] sm:$0xff]
  %v171 = vld [vmem:[%s2 + $0x280] sm:$0xff]
  %v172 = vld [vmem:[%s2 + $0x288] sm:$0xff]
  %v173 = vld [vmem:[%s2 + $0x290] sm:$0xff]
  %v174 = vld [vmem:[%s2 + $0x298] sm:$0xff]
  %v175 = vld [vmem:[%s2 + $0x2a0] sm:$0xff]
  %v176 = vld [vmem:[%s2 + $0x2a8] sm:$0xff]
  %v177 = vld [vmem:[%s2 + $0x2b0] sm:$0xff]
  %v178 = vld [vmem:[%s2 + $0x2b8] sm:$0xff]
  %v179 = vld [vmem:[%s2 + $0x2c0] sm:$0xff]
  %v180 = vld [vmem:[%s2 + $0x2c8] sm:$0xff]
  %v181 = vld [vmem:[%s2 + $0x2d0] sm:$0xff]
  %v182 = vld [vmem:[%s2 + $0x2d8] sm:$0xff]
  %v183 = vld [vmem:[%s2 + $0x2e0] sm:$0xff]
  %v184 = vld [vmem:[%s2 + $0x2e8] sm:$0xff]
  %v185 = vld [vmem:[%s2 + $0x2f0] sm:$0xff]
  %v186 = vld [vmem:[%s2 + $0x2f8] sm:$0xff]
  %v187 = vld [vmem:[%s2 + $0x300] sm:$0xff]
  %v188 = vld [vmem:[%s2 + $0x308] sm:$0xff]
  %v189 = vld [vmem:[%s2 + $0x310] sm:$0xff]
  %v190 = vld [vmem:[%s2 + $0x318] sm:$0xff]
  %v191 = vld [vmem:[%s2 + $0x320] sm:$0xff]
  %v192 = vld [vmem:[%s2 + $0x328] sm:$0xff]
  %v193 = vld [vmem:[%s2 + $0x330] sm:$0xff]
  %v194 = vld [vmem:[%s2 + $0x338] sm:$0xff]
  %v195 = vld [vmem:[%s2 + $0x340] sm:$0xff]
  %v196 = vld [vmem:[%s2 + $0x348] sm:$0xff]
  %v197 = vld [vmem:[%s2 + $0x350] sm:$0xff]
  %v198 = vld [vmem:[%s2 + $0x358] sm:$0xff]
  %v199 = vld [vmem:[%s2 + $0x360] sm:$0xff]
  %v200 = vld [vmem:[%s2 + $0x368] sm:$0xff]
  %v201 = vld [vmem:[%s2 + $0x370] sm:$0xff]
  %v202 = vld [vmem:[%s2 + $0x378] sm:$0xff]
  %v203 = vld [vmem:[%s2 + $0x380] sm:$0xff]
  %v204 = vld [vmem:[%s2 + $0x388] sm:$0xff]
  %v205 = vld [vmem:[%s2 + $0x390] sm:$0xff]
  %v206 = vld [vmem:[%s2 + $0x398] sm:$0xff]
  %v207 = vld [vmem:[%s2 + $0x3a0] sm:$0xff]
  %v208 = vld [vmem:[%s2 + $0x3a8] sm:$0xff]
  %v209 = vld [vmem:[%s2 + $0x3b0] sm:$0xff]
  %v210 = vld [vmem:[%s2 + $0x3b8] sm:$0xff]
  %v211 = vld [vmem:[%s2 + $0x3c0] sm:$0xff]
  %v212 = vld [vmem:[%s2 + $0x3c8] sm:$0xff]
  %v213 = vld [vmem:[%s2 + $0x3d0] sm:$0xff]
  %v214 = vld [vmem:[%s2 + $0x3d8] sm:$0xff]
  %v215 = vld [vmem:[%s2 + $0x3e0] sm:$0xff]
  %v216 = vld [vmem:[%s2 + $0x3e8] sm:$0xff]
  %v217 = vld [vmem:[%s2 + $0x3f0] sm:$0xff]
  %v218 = vld [vmem:[%s2 + $0x3f8] sm:$0xff]
  %v219 = vld [vmem:[%s2 + $0x400] sm:$0xff]
  %v220 = vld [vmem:[%s2 + $0x408] sm:$0xff]
  %v221 = vld [vmem:[%s2 + $0x410] sm:$0xff]
  %v222 = vld [vmem:[%s2 + $0x418] sm:$0xff]
  %v223 = vld [vmem:[%s2 + $0x420] sm:$0xff]
  %v224 = vld [vmem:[%s2 + $0x428] sm:$0xff]
  %v225 = vld [vmem:[%s2 + $0x430] sm:$0xff]
  %v226 = vld [vmem:[%s2 + $0x438] sm:$0xff]
  %v227 = vld [vmem:[%s2 + $0x440] sm:$0xff]
  %v228 = vld [vmem:[%s2 + $0x448] sm:$0xff]
  %v229 = vld [vmem:[%s2 + $0x450] sm:$0xff]
  %v230 = vld [vmem:[%s2 + $0x458] sm:$0xff]
  %v231 = vld [vmem:[%s2 + $0x460] sm:$0xff]
  %v232 = vld [vmem:[%s2 + $0x468] sm:$0xff]
  %v233 = vld [vmem:[%s2 + $0x470] sm:$0xff]
  %v234 = vld [vmem:[%s2 + $0x478] sm:$0xff]
  %v235 = vld [vmem:[%s2 + $0x480] sm:$0xff]
  %v236 = vld [vmem:[%s2 + $0x488] sm:$0xff]
  %v237 = vld [vmem:[%s2 + $0x490] sm:$0xff]
  %v238 = vld [vmem:[%s2 + $0x498] sm:$0xff]
  %v239 = vld [vmem:[%s2 + $0x4a0] sm:$0xff]
  %v240 = vld [vmem:[%s2 + $0x4a8] sm:$0xff]
  %v241 = vld [vmem:[%s2 + $0x4b0] sm:$0xff]
  %v242 = vld [vmem:[%s2 + $0x4b8] sm:$0xff]
  %v243 = vld [vmem:[%s2 + $0x4c0] sm:$0xff]
  %v244 = vld [vmem:[%s2 + $0x4c8] sm:$0xff]
  %v245 = vld [vmem:[%s2 + $0x4d0] sm:$0xff]
  %v246 = vld [vmem:[%s2 + $0x4d8] sm:$0xff]
  %v247 = vld [vmem:[%s2 + $0x4e0] sm:$0xff]
  %v248 = vld [vmem:[%s2 + $0x4e8] sm:$0xff]
  %v249 = vld [vmem:[%s2 + $0x4f0] sm:$0xff]
  %v250 = vld [vmem:[%s2 + $0x4f8] sm:$0xff]
  %v251 = vld [vmem:[%s2 + $0x500] sm:$0xff]
  %v252 = vld [vmem:[%s2 + $0x508] sm:$0xff]
  %v253 = vld [vmem:[%s2 + $0x510] sm:$0xff]
  %v254 = vld [vmem:[%s2 + $0x518] sm:$0xff]
  %v255 = vld [vmem:[%s2 + $0x520] sm:$0xff]
  %v256 = vld [vmem:[%s2 + $0x528] sm:$0xff]
  %v257 = vld [vmem:[%s2 + $0x530] sm:$0xff]
  %v258 = vld [vmem:[%s2 + $0x538] sm:$0xff]
  %v259 = vld [vmem:[%s2 + $0x540] sm:$0xff]
  %v260 = vld [vmem:[%s2 + $0x548] sm:$0xff]
  %v261 = vld [vmem:[%s2 + $0x550] sm:$0xff]
  %v262 = vld [vmem:[%s2 + $0x558] sm:$0xff]
  %v263 = vld [vmem:[%s2 + $0x560] sm:$0xff]
  %v264 = vld [vmem:[%s2 + $0x568] sm:$0xff]
  %v265 = vld [vmem:[%s2 + $0x570] sm:$0xff]
  %v266 = vld [vmem:[%s2 + $0x578] sm:$0xff]
  %v267 = vld [vmem:[%s2 + $0x580] sm:$0xff]
  %v268 = vld [vmem:[%s2 + $0x588] sm:$0xff]
  %v269 = vld [vmem:[%s2 + $0x590] sm:$0xff]
  %v270 = vld [vmem:[%s2 + $0x598] sm:$0xff]
  %v271 = vld [vmem:[%s2 + $0x5a0] sm:$0xff]
  %v272 = vld [vmem:[%s2 + $0x5a8] sm:$0xff]
  %v273 = vld [vmem:[%s2 + $0x5b0] sm:$0xff]
  %v274 = vld [vmem:[%s2 + $0x5b8] sm:$0xff]
  %v275 = vld [vmem:[%s2 + $0x5c0] sm:$0xff]
  %v276 = vld [vmem:[%s2 + $0x5c8] sm:$0xff]
  %v277 = vld [vmem:[%s2 + $0x5d0] sm:$0xff]
  %v278 = vld [vmem:[%s2 + $0x5d8] sm:$0xff]
  %v279 = vld [vmem:[%s2 + $0x5e0] sm:$0xff]
  %v280 = vld [vmem:[%s2 + $0x5e8] sm:$0xff]
  %v281 = vld [vmem:[%s2 + $0x5f0] sm:$0xff]
  %v282 = vld [vmem:[%s2 + $0x5f8] sm:$0xff]
  %v283 = vld [vmem:[%s2 + $0x600] sm:$0xff]
  %v284 = vld [vmem:[%s2 + $0x608] sm:$0xff]
  %v285 = vld [vmem:[%s2 + $0x610] sm:$0xff]
  %v286 = vld [vmem:[%s2 + $0x618] sm:$0xff]
  %v287 = vld [vmem:[%s2 + $0x620] sm:$0xff]
  %v288 = vld [vmem:[%s2 + $0x628] sm:$0xff]
  %v289 = vld [vmem:[%s2 + $0x630] sm:$0xff]
  %v290 = vld [vmem:[%s2 + $0x638] sm:$0xff]
  %v291 = vld [vmem:[%s2 + $0x640] sm:$0xff]
  %v292 = vld [vmem:[%s2 + $0x648] sm:$0xff]
  %v293 = vld [vmem:[%s2 + $0x650] sm:$0xff]
  %v294 = vld [vmem:[%s2 + $0x658] sm:$0xff]
  %v295 = vld [vmem:[%s2 + $0x660] sm:$0xff]
  %v296 = vld [vmem:[%s2 + $0x668] sm:$0xff]
  %v297 = vld [vmem:[%s2 + $0x670] sm:$0xff]
  %v298 = vld [vmem:[%s2 + $0x678] sm:$0xff]
  %v299 = vld [vmem:[%s2 + $0x680] sm:$0xff]
  %v300 = vld [vmem:[%s2 + $0x688] sm:$0xff]
  %v301 = vld [vmem:[%s2 + $0x690] sm:$0xff]
  %v302 = vld [vmem:[%s2 + $0x698] sm:$0xff]
  %v303 = vld [vmem:[%s2 + $0x6a0] sm:$0xff]
  %v304 = vld [vmem:[%s2 + $0x6a8] sm:$0xff]
  %v305 = vld [vmem:[%s2 + $0x6b0] sm:$0xff]
  %v306 = vld [vmem:[%s2 + $0x6b8] sm:$0xff]
  %v307 = vld [vmem:[%s2 + $0x6c0] sm:$0xff]
  %v308 = vld [vmem:[%s2 + $0x6c8] sm:$0xff]
  %v309 = vld [vmem:[%s2 + $0x6d0] sm:$0xff]
  %v310 = vld [vmem:[%s2 + $0x6d8] sm:$0xff]
  %v311 = vld [vmem:[%s2 + $0x6e0] sm:$0xff]
  %v312 = vld [vmem:[%s2 + $0x6e8] sm:$0xff]
  %v313 = vld [vmem:[%s2 + $0x6f0] sm:$0xff]
  %v314 = vld [vmem:[%s2 + $0x6f8] sm:$0xff]
  %v315 = vld [vmem:[%s2 + $0x700] sm:$0xff]
  %v316 = vld [vmem:[%s2 + $0x708] sm:$0xff]
  %v317 = vld [vmem:[%s2 + $0x710] sm:$0xff]
  %v318 = vld [vmem:[%s2 + $0x718] sm:$0xff]
  %v319 = vld [vmem:[%s2 + $0x720] sm:$0xff]
  %v320 = vld [vmem:[%s2 + $0x728] sm:$0xff]
  %v321 = vld [vmem:[%s2 + $0x730] sm:$0xff]
  %v322 = vld [vmem:[%s2 + $0x738] sm:$0xff]
  %v323 = vld [vmem:[%s2 + $0x740] sm:$0xff]
  %v324 = vld [vmem:[%s2 + $0x748] sm:$0xff]
  %v325 = vld [vmem:[%s2 + $0x750] sm:$0xff]
  %v326 = vld [vmem:[%s2 + $0x758] sm:$0xff]
  %v327 = vld [vmem:[%s2 + $0x760] sm:$0xff]
  %v328 = vld [vmem:[%s2 + $0x768] sm:$0xff]
  %v329 = vld [vmem:[%s2 + $0x770] sm:$0xff]
  %v330 = vld [vmem:[%s2 + $0x778] sm:$0xff]
  %v331 = vld [vmem:[%s2 + $0x780] sm:$0xff]
  %v332 = vld [vmem:[%s2 + $0x788] sm:$0xff]
  %v333 = vld [vmem:[%s2 + $0x790] sm:$0xff]
  %v334 = vld [vmem:[%s2 + $0x798] sm:$0xff]
  %v335 = vld [vmem:[%s2 + $0x7a0] sm:$0xff]
  %v336 = vld [vmem:[%s2 + $0x7a8] sm:$0xff]
  %v337 = vld [vmem:[%s2 + $0x7b0] sm:$0xff]
  %v338 = vld [vmem:[%s2 + $0x7b8] sm:$0xff]
  %v339 = vld [vmem:[%s2 + $0x7c0] sm:$0xff]
  %v340 = vld [vmem:[%s2 + $0x7c8] sm:$0xff]
  %v341 = vld [vmem:[%s2 + $0x7d0] sm:$0xff]
  %v342 = vld [vmem:[%s2 + $0x7d8] sm:$0xff]
  %v343 = vld [vmem:[%s2 + $0x7e0] sm:$0xff]
  %v344 = vld [vmem:[%s2 + $0x7e8] sm:$0xff]
  %v345 = vld [vmem:[%s2 + $0x7f0] sm:$0xff]
  %v346 = vld [vmem:[%s2 + $0x7f8] sm:$0xff]
  %v347 = vld [vmem:[%s3] sm:$0xf]
  %v349 = vperm.slane %v347, 0
  %v350 = vperm.slane %v347, 1
  %v351 = vperm.slane %v347, 2
  %v352 = vperm.slane %v347, 3
  %v613 = vunpack.c.l.b16 %v91
  %v614 = vunpack.c.h.b16 %v91
  %v615 = vunpack.c.l.b16 %v92
  %v616 = vunpack.c.h.b16 %v92
  %v617 = vunpack.c.l.b16 %v93
  %v618 = vunpack.c.h.b16 %v93
  %v619 = vunpack.c.l.b16 %v94
  %v620 = vunpack.c.h.b16 %v94
  %v621 = vunpack.c.l.b16 %v95
  %v622 = vunpack.c.h.b16 %v95
  %v623 = vunpack.c.l.b16 %v96
  %v624 = vunpack.c.h.b16 %v96
  %v625 = vunpack.c.l.b16 %v97
  %v626 = vunpack.c.h.b16 %v97
  %v627 = vunpack.c.l.b16 %v98
  %v628 = vunpack.c.h.b16 %v98
  %v629 = vunpack.c.l.b16 %v99
  %v630 = vunpack.c.h.b16 %v99
  %v631 = vunpack.c.l.b16 %v100
  %v632 = vunpack.c.h.b16 %v100
  %v633 = vunpack.c.l.b16 %v101
  %v634 = vunpack.c.h.b16 %v101
  %v635 = vunpack.c.l.b16 %v102
  %v636 = vunpack.c.h.b16 %v102
  %v637 = vunpack.c.l.b16 %v103
  %v638 = vunpack.c.h.b16 %v103
  %v639 = vunpack.c.l.b16 %v104
  %v640 = vunpack.c.h.b16 %v104
  %v641 = vunpack.c.l.b16 %v105
  %v642 = vunpack.c.h.b16 %v105
  %v643 = vunpack.c.l.b16 %v106
  %v644 = vunpack.c.h.b16 %v106
  %v645 = vunpack.c.l.b16 %v107
  %v646 = vunpack.c.h.b16 %v107
  %v647 = vunpack.c.l.b16 %v108
  %v648 = vunpack.c.h.b16 %v108
  %v649 = vunpack.c.l.b16 %v109
  %v650 = vunpack.c.h.b16 %v109
  %v651 = vunpack.c.l.b16 %v110
  %v652 = vunpack.c.h.b16 %v110
  %v653 = vunpack.c.l.b16 %v111
  %v654 = vunpack.c.h.b16 %v111
  %v655 = vunpack.c.l.b16 %v112
  %v656 = vunpack.c.h.b16 %v112
  %v657 = vunpack.c.l.b16 %v113
  %v658 = vunpack.c.h.b16 %v113
  %v659 = vunpack.c.l.b16 %v114
  %v660 = vunpack.c.h.b16 %v114
  %v661 = vunpack.c.l.b16 %v115
  %v662 = vunpack.c.h.b16 %v115
  %v663 = vunpack.c.l.b16 %v116
  %v664 = vunpack.c.h.b16 %v116
  %v665 = vunpack.c.l.b16 %v117
  %v666 = vunpack.c.h.b16 %v117
  %v667 = vunpack.c.l.b16 %v118
  %v668 = vunpack.c.h.b16 %v118
  %v669 = vunpack.c.l.b16 %v119
  %v670 = vunpack.c.h.b16 %v119
  %v671 = vunpack.c.l.b16 %v120
  %v672 = vunpack.c.h.b16 %v120
  %v673 = vunpack.c.l.b16 %v121
  %v674 = vunpack.c.h.b16 %v121
  %v675 = vunpack.c.l.b16 %v122
  %v676 = vunpack.c.h.b16 %v122
  %v677 = vunpack.c.l.b16 %v123
  %v678 = vunpack.c.h.b16 %v123
  %v679 = vunpack.c.l.b16 %v124
  %v680 = vunpack.c.h.b16 %v124
  %v681 = vunpack.c.l.b16 %v125
  %v682 = vunpack.c.h.b16 %v125
  %v683 = vunpack.c.l.b16 %v126
  %v684 = vunpack.c.h.b16 %v126
  %v685 = vunpack.c.l.b16 %v127
  %v686 = vunpack.c.h.b16 %v127
  %v687 = vunpack.c.l.b16 %v128
  %v688 = vunpack.c.h.b16 %v128
  %v689 = vunpack.c.l.b16 %v129
  %v690 = vunpack.c.h.b16 %v129
  %v691 = vunpack.c.l.b16 %v130
  %v692 = vunpack.c.h.b16 %v130
  %v693 = vunpack.c.l.b16 %v131
  %v694 = vunpack.c.h.b16 %v131
  %v695 = vunpack.c.l.b16 %v132
  %v696 = vunpack.c.h.b16 %v132
  %v697 = vunpack.c.l.b16 %v133
  %v698 = vunpack.c.h.b16 %v133
  %v699 = vunpack.c.l.b16 %v134
  %v700 = vunpack.c.h.b16 %v134
  %v701 = vunpack.c.l.b16 %v135
  %v702 = vunpack.c.h.b16 %v135
  %v703 = vunpack.c.l.b16 %v136
  %v704 = vunpack.c.h.b16 %v136
  %v705 = vunpack.c.l.b16 %v137
  %v706 = vunpack.c.h.b16 %v137
  %v707 = vunpack.c.l.b16 %v138
  %v708 = vunpack.c.h.b16 %v138
  %v709 = vunpack.c.l.b16 %v139
  %v710 = vunpack.c.h.b16 %v139
  %v711 = vunpack.c.l.b16 %v140
  %v712 = vunpack.c.h.b16 %v140
  %v713 = vunpack.c.l.b16 %v141
  %v714 = vunpack.c.h.b16 %v141
  %v715 = vunpack.c.l.b16 %v142
  %v716 = vunpack.c.h.b16 %v142
  %v717 = vunpack.c.l.b16 %v143
  %v718 = vunpack.c.h.b16 %v143
  %v719 = vunpack.c.l.b16 %v144
  %v720 = vunpack.c.h.b16 %v144
  %v721 = vunpack.c.l.b16 %v145
  %v722 = vunpack.c.h.b16 %v145
  %v723 = vunpack.c.l.b16 %v146
  %v724 = vunpack.c.h.b16 %v146
  %v725 = vunpack.c.l.b16 %v147
  %v726 = vunpack.c.h.b16 %v147
  %v727 = vunpack.c.l.b16 %v148
  %v728 = vunpack.c.h.b16 %v148
  %v729 = vunpack.c.l.b16 %v149
  %v730 = vunpack.c.h.b16 %v149
  %v731 = vunpack.c.l.b16 %v150
  %v732 = vunpack.c.h.b16 %v150
  %v733 = vunpack.c.l.b16 %v151
  %v734 = vunpack.c.h.b16 %v151
  %v735 = vunpack.c.l.b16 %v152
  %v736 = vunpack.c.h.b16 %v152
  %v737 = vunpack.c.l.b16 %v153
  %v738 = vunpack.c.h.b16 %v153
  %v739 = vunpack.c.l.b16 %v154
  %v740 = vunpack.c.h.b16 %v154
  %v741 = vunpack.c.l.b16 %v155
  %v742 = vunpack.c.h.b16 %v155
  %v743 = vunpack.c.l.b16 %v156
  %v744 = vunpack.c.h.b16 %v156
  %v745 = vunpack.c.l.b16 %v157
  %v746 = vunpack.c.h.b16 %v157
  %v747 = vunpack.c.l.b16 %v158
  %v748 = vunpack.c.h.b16 %v158
  %v749 = vunpack.c.l.b16 %v159
  %v750 = vunpack.c.h.b16 %v159
  %v751 = vunpack.c.l.b16 %v160
  %v752 = vunpack.c.h.b16 %v160
  %v753 = vunpack.c.l.b16 %v161
  %v754 = vunpack.c.h.b16 %v161
  %v755 = vunpack.c.l.b16 %v162
  %v756 = vunpack.c.h.b16 %v162
  %v757 = vunpack.c.l.b16 %v163
  %v758 = vunpack.c.h.b16 %v163
  %v759 = vunpack.c.l.b16 %v164
  %v760 = vunpack.c.h.b16 %v164
  %v761 = vunpack.c.l.b16 %v165
  %v762 = vunpack.c.h.b16 %v165
  %v763 = vunpack.c.l.b16 %v166
  %v764 = vunpack.c.h.b16 %v166
  %v765 = vunpack.c.l.b16 %v167
  %v766 = vunpack.c.h.b16 %v167
  %v767 = vunpack.c.l.b16 %v168
  %v768 = vunpack.c.h.b16 %v168
  %v769 = vunpack.c.l.b16 %v169
  %v770 = vunpack.c.h.b16 %v169
  %v771 = vunpack.c.l.b16 %v170
  %v772 = vunpack.c.h.b16 %v170
  %v773 = vunpack.c.l.b16 %v171
  %v774 = vunpack.c.h.b16 %v171
  %v775 = vunpack.c.l.b16 %v172
  %v776 = vunpack.c.h.b16 %v172
  %v777 = vunpack.c.l.b16 %v173
  %v778 = vunpack.c.h.b16 %v173
  %v779 = vunpack.c.l.b16 %v174
  %v780 = vunpack.c.h.b16 %v174
  %v781 = vunpack.c.l.b16 %v175
  %v782 = vunpack.c.h.b16 %v175
  %v783 = vunpack.c.l.b16 %v176
  %v784 = vunpack.c.h.b16 %v176
  %v785 = vunpack.c.l.b16 %v177
  %v786 = vunpack.c.h.b16 %v177
  %v787 = vunpack.c.l.b16 %v178
  %v788 = vunpack.c.h.b16 %v178
  %v789 = vunpack.c.l.b16 %v179
  %v790 = vunpack.c.h.b16 %v179
  %v791 = vunpack.c.l.b16 %v180
  %v792 = vunpack.c.h.b16 %v180
  %v793 = vunpack.c.l.b16 %v181
  %v794 = vunpack.c.h.b16 %v181
  %v795 = vunpack.c.l.b16 %v182
  %v796 = vunpack.c.h.b16 %v182
  %v797 = vunpack.c.l.b16 %v183
  %v798 = vunpack.c.h.b16 %v183
  %v799 = vunpack.c.l.b16 %v184
  %v800 = vunpack.c.h.b16 %v184
  %v801 = vunpack.c.l.b16 %v185
  %v802 = vunpack.c.h.b16 %v185
  %v803 = vunpack.c.l.b16 %v186
  %v804 = vunpack.c.h.b16 %v186
  %v805 = vunpack.c.l.b16 %v187
  %v806 = vunpack.c.h.b16 %v187
  %v807 = vunpack.c.l.b16 %v188
  %v808 = vunpack.c.h.b16 %v188
  %v809 = vunpack.c.l.b16 %v189
  %v810 = vunpack.c.h.b16 %v189
  %v811 = vunpack.c.l.b16 %v190
  %v812 = vunpack.c.h.b16 %v190
  %v813 = vunpack.c.l.b16 %v191
  %v814 = vunpack.c.h.b16 %v191
  %v815 = vunpack.c.l.b16 %v192
  %v816 = vunpack.c.h.b16 %v192
  %v817 = vunpack.c.l.b16 %v193
  %v818 = vunpack.c.h.b16 %v193
  %v819 = vunpack.c.l.b16 %v194
  %v820 = vunpack.c.h.b16 %v194
  %v821 = vunpack.c.l.b16 %v195
  %v822 = vunpack.c.h.b16 %v195
  %v823 = vunpack.c.l.b16 %v196
  %v824 = vunpack.c.h.b16 %v196
  %v825 = vunpack.c.l.b16 %v197
  %v826 = vunpack.c.h.b16 %v197
  %v827 = vunpack.c.l.b16 %v198
  %v828 = vunpack.c.h.b16 %v198
  %v829 = vunpack.c.l.b16 %v199
  %v830 = vunpack.c.h.b16 %v199
  %v831 = vunpack.c.l.b16 %v200
  %v832 = vunpack.c.h.b16 %v200
  %v833 = vunpack.c.l.b16 %v201
  %v834 = vunpack.c.h.b16 %v201
  %v835 = vunpack.c.l.b16 %v202
  %v836 = vunpack.c.h.b16 %v202
  %v837 = vunpack.c.l.b16 %v203
  %v838 = vunpack.c.h.b16 %v203
  %v839 = vunpack.c.l.b16 %v204
  %v840 = vunpack.c.h.b16 %v204
  %v841 = vunpack.c.l.b16 %v205
  %v842 = vunpack.c.h.b16 %v205
  %v843 = vunpack.c.l.b16 %v206
  %v844 = vunpack.c.h.b16 %v206
  %v845 = vunpack.c.l.b16 %v207
  %v846 = vunpack.c.h.b16 %v207
  %v847 = vunpack.c.l.b16 %v208
  %v848 = vunpack.c.h.b16 %v208
  %v849 = vunpack.c.l.b16 %v209
  %v850 = vunpack.c.h.b16 %v209
  %v851 = vunpack.c.l.b16 %v210
  %v852 = vunpack.c.h.b16 %v210
  %v853 = vunpack.c.l.b16 %v211
  %v854 = vunpack.c.h.b16 %v211
  %v855 = vunpack.c.l.b16 %v212
  %v856 = vunpack.c.h.b16 %v212
  %v857 = vunpack.c.l.b16 %v213
  %v858 = vunpack.c.h.b16 %v213
  %v859 = vunpack.c.l.b16 %v214
  %v860 = vunpack.c.h.b16 %v214
  %v861 = vunpack.c.l.b16 %v215
  %v862 = vunpack.c.h.b16 %v215
  %v863 = vunpack.c.l.b16 %v216
  %v864 = vunpack.c.h.b16 %v216
  %v865 = vunpack.c.l.b16 %v217
  %v866 = vunpack.c.h.b16 %v217
  %v867 = vunpack.c.l.b16 %v218
  %v868 = vunpack.c.h.b16 %v218
  %v869 = vunpack.c.l.b16 %v219
  %v870 = vunpack.c.h.b16 %v219
  %v871 = vunpack.c.l.b16 %v220
  %v872 = vunpack.c.h.b16 %v220
  %v873 = vunpack.c.l.b16 %v221
  %v874 = vunpack.c.h.b16 %v221
  %v875 = vunpack.c.l.b16 %v222
  %v876 = vunpack.c.h.b16 %v222
  %v877 = vunpack.c.l.b16 %v223
  %v878 = vunpack.c.h.b16 %v223
  %v879 = vunpack.c.l.b16 %v224
  %v880 = vunpack.c.h.b16 %v224
  %v881 = vunpack.c.l.b16 %v225
  %v882 = vunpack.c.h.b16 %v225
  %v883 = vunpack.c.l.b16 %v226
  %v884 = vunpack.c.h.b16 %v226
  %v885 = vunpack.c.l.b16 %v227
  %v886 = vunpack.c.h.b16 %v227
  %v887 = vunpack.c.l.b16 %v228
  %v888 = vunpack.c.h.b16 %v228
  %v889 = vunpack.c.l.b16 %v229
  %v890 = vunpack.c.h.b16 %v229
  %v891 = vunpack.c.l.b16 %v230
  %v892 = vunpack.c.h.b16 %v230
  %v893 = vunpack.c.l.b16 %v231
  %v894 = vunpack.c.h.b16 %v231
  %v895 = vunpack.c.l.b16 %v232
  %v896 = vunpack.c.h.b16 %v232
  %v897 = vunpack.c.l.b16 %v233
  %v898 = vunpack.c.h.b16 %v233
  %v899 = vunpack.c.l.b16 %v234
  %v900 = vunpack.c.h.b16 %v234
  %v901 = vunpack.c.l.b16 %v235
  %v902 = vunpack.c.h.b16 %v235
  %v903 = vunpack.c.l.b16 %v236
  %v904 = vunpack.c.h.b16 %v236
  %v905 = vunpack.c.l.b16 %v237
  %v906 = vunpack.c.h.b16 %v237
  %v907 = vunpack.c.l.b16 %v238
  %v908 = vunpack.c.h.b16 %v238
  %v909 = vunpack.c.l.b16 %v239
  %v910 = vunpack.c.h.b16 %v239
  %v911 = vunpack.c.l.b16 %v240
  %v912 = vunpack.c.h.b16 %v240
  %v913 = vunpack.c.l.b16 %v241
  %v914 = vunpack.c.h.b16 %v241
  %v915 = vunpack.c.l.b16 %v242
  %v916 = vunpack.c.h.b16 %v242
  %v917 = vunpack.c.l.b16 %v243
  %v918 = vunpack.c.h.b16 %v243
  %v919 = vunpack.c.l.b16 %v244
  %v920 = vunpack.c.h.b16 %v244
  %v921 = vunpack.c.l.b16 %v245
  %v922 = vunpack.c.h.b16 %v245
  %v923 = vunpack.c.l.b16 %v246
  %v924 = vunpack.c.h.b16 %v246
  %v925 = vunpack.c.l.b16 %v247
  %v926 = vunpack.c.h.b16 %v247
  %v927 = vunpack.c.l.b16 %v248
  %v928 = vunpack.c.h.b16 %v248
  %v929 = vunpack.c.l.b16 %v249
  %v930 = vunpack.c.h.b16 %v249
  %v931 = vunpack.c.l.b16 %v250
  %v932 = vunpack.c.h.b16 %v250
  %v933 = vunpack.c.l.b16 %v251
  %v934 = vunpack.c.h.b16 %v251
  %v935 = vunpack.c.l.b16 %v252
  %v936 = vunpack.c.h.b16 %v252
  %v937 = vunpack.c.l.b16 %v253
  %v938 = vunpack.c.h.b16 %v253
  %v939 = vunpack.c.l.b16 %v254
  %v940 = vunpack.c.h.b16 %v254
  %v941 = vunpack.c.l.b16 %v255
  %v942 = vunpack.c.h.b16 %v255
  %v943 = vunpack.c.l.b16 %v256
  %v944 = vunpack.c.h.b16 %v256
  %v945 = vunpack.c.l.b16 %v257
  %v946 = vunpack.c.h.b16 %v257
  %v947 = vunpack.c.l.b16 %v258
  %v948 = vunpack.c.h.b16 %v258
  %v949 = vunpack.c.l.b16 %v259
  %v950 = vunpack.c.h.b16 %v259
  %v951 = vunpack.c.l.b16 %v260
  %v952 = vunpack.c.h.b16 %v260
  %v953 = vunpack.c.l.b16 %v261
  %v954 = vunpack.c.h.b16 %v261
  %v955 = vunpack.c.l.b16 %v262
  %v956 = vunpack.c.h.b16 %v262
  %v957 = vunpack.c.l.b16 %v263
  %v958 = vunpack.c.h.b16 %v263
  %v959 = vunpack.c.l.b16 %v264
  %v960 = vunpack.c.h.b16 %v264
  %v961 = vunpack.c.l.b16 %v265
  %v962 = vunpack.c.h.b16 %v265
  %v963 = vunpack.c.l.b16 %v266
  %v964 = vunpack.c.h.b16 %v266
  %v965 = vunpack.c.l.b16 %v267
  %v966 = vunpack.c.h.b16 %v267
  %v967 = vunpack.c.l.b16 %v268
  %v968 = vunpack.c.h.b16 %v268
  %v969 = vunpack.c.l.b16 %v269
  %v970 = vunpack.c.h.b16 %v269
  %v971 = vunpack.c.l.b16 %v270
  %v972 = vunpack.c.h.b16 %v270
  %v973 = vunpack.c.l.b16 %v271
  %v974 = vunpack.c.h.b16 %v271
  %v975 = vunpack.c.l.b16 %v272
  %v976 = vunpack.c.h.b16 %v272
  %v977 = vunpack.c.l.b16 %v273
  %v978 = vunpack.c.h.b16 %v273
  %v979 = vunpack.c.l.b16 %v274
  %v980 = vunpack.c.h.b16 %v274
  %v981 = vunpack.c.l.b16 %v275
  %v982 = vunpack.c.h.b16 %v275
  %v983 = vunpack.c.l.b16 %v276
  %v984 = vunpack.c.h.b16 %v276
  %v985 = vunpack.c.l.b16 %v277
  %v986 = vunpack.c.h.b16 %v277
  %v987 = vunpack.c.l.b16 %v278
  %v988 = vunpack.c.h.b16 %v278
  %v989 = vunpack.c.l.b16 %v279
  %v990 = vunpack.c.h.b16 %v279
  %v991 = vunpack.c.l.b16 %v280
  %v992 = vunpack.c.h.b16 %v280
  %v993 = vunpack.c.l.b16 %v281
  %v994 = vunpack.c.h.b16 %v281
  %v995 = vunpack.c.l.b16 %v282
  %v996 = vunpack.c.h.b16 %v282
  %v997 = vunpack.c.l.b16 %v283
  %v998 = vunpack.c.h.b16 %v283
  %v999 = vunpack.c.l.b16 %v284
  %v1000 = vunpack.c.h.b16 %v284
  %v1001 = vunpack.c.l.b16 %v285
  %v1002 = vunpack.c.h.b16 %v285
  %v1003 = vunpack.c.l.b16 %v286
  %v1004 = vunpack.c.h.b16 %v286
  %v1005 = vunpack.c.l.b16 %v287
  %v1006 = vunpack.c.h.b16 %v287
  %v1007 = vunpack.c.l.b16 %v288
  %v1008 = vunpack.c.h.b16 %v288
  %v1009 = vunpack.c.l.b16 %v289
  %v1010 = vunpack.c.h.b16 %v289
  %v1011 = vunpack.c.l.b16 %v290
  %v1012 = vunpack.c.h.b16 %v290
  %v1013 = vunpack.c.l.b16 %v291
  %v1014 = vunpack.c.h.b16 %v291
  %v1015 = vunpack.c.l.b16 %v292
  %v1016 = vunpack.c.h.b16 %v292
  %v1017 = vunpack.c.l.b16 %v293
  %v1018 = vunpack.c.h.b16 %v293
  %v1019 = vunpack.c.l.b16 %v294
  %v1020 = vunpack.c.h.b16 %v294
  %v1021 = vunpack.c.l.b16 %v295
  %v1022 = vunpack.c.h.b16 %v295
  %v1023 = vunpack.c.l.b16 %v296
  %v1024 = vunpack.c.h.b16 %v296
  %v1025 = vunpack.c.l.b16 %v297
  %v1026 = vunpack.c.h.b16 %v297
  %v1027 = vunpack.c.l.b16 %v298
  %v1028 = vunpack.c.h.b16 %v298
  %v1029 = vunpack.c.l.b16 %v299
  %v1030 = vunpack.c.h.b16 %v299
  %v1031 = vunpack.c.l.b16 %v300
  %v1032 = vunpack.c.h.b16 %v300
  %v1033 = vunpack.c.l.b16 %v301
  %v1034 = vunpack.c.h.b16 %v301
  %v1035 = vunpack.c.l.b16 %v302
  %v1036 = vunpack.c.h.b16 %v302
  %v1037 = vunpack.c.l.b16 %v303
  %v1038 = vunpack.c.h.b16 %v303
  %v1039 = vunpack.c.l.b16 %v304
  %v1040 = vunpack.c.h.b16 %v304
  %v1041 = vunpack.c.l.b16 %v305
  %v1042 = vunpack.c.h.b16 %v305
  %v1043 = vunpack.c.l.b16 %v306
  %v1044 = vunpack.c.h.b16 %v306
  %v1045 = vunpack.c.l.b16 %v307
  %v1046 = vunpack.c.h.b16 %v307
  %v1047 = vunpack.c.l.b16 %v308
  %v1048 = vunpack.c.h.b16 %v308
  %v1049 = vunpack.c.l.b16 %v309
  %v1050 = vunpack.c.h.b16 %v309
  %v1051 = vunpack.c.l.b16 %v310
  %v1052 = vunpack.c.h.b16 %v310
  %v1053 = vunpack.c.l.b16 %v311
  %v1054 = vunpack.c.h.b16 %v311
  %v1055 = vunpack.c.l.b16 %v312
  %v1056 = vunpack.c.h.b16 %v312
  %v1057 = vunpack.c.l.b16 %v313
  %v1058 = vunpack.c.h.b16 %v313
  %v1059 = vunpack.c.l.b16 %v314
  %v1060 = vunpack.c.h.b16 %v314
  %v1061 = vunpack.c.l.b16 %v315
  %v1062 = vunpack.c.h.b16 %v315
  %v1063 = vunpack.c.l.b16 %v316
  %v1064 = vunpack.c.h.b16 %v316
  %v1065 = vunpack.c.l.b16 %v317
  %v1066 = vunpack.c.h.b16 %v317
  %v1067 = vunpack.c.l.b16 %v318
  %v1068 = vunpack.c.h.b16 %v318
  %v1069 = vunpack.c.l.b16 %v319
  %v1070 = vunpack.c.h.b16 %v319
  %v1071 = vunpack.c.l.b16 %v320
  %v1072 = vunpack.c.h.b16 %v320
  %v1073 = vunpack.c.l.b16 %v321
  %v1074 = vunpack.c.h.b16 %v321
  %v1075 = vunpack.c.l.b16 %v322
  %v1076 = vunpack.c.h.b16 %v322
  %v1077 = vunpack.c.l.b16 %v323
  %v1078 = vunpack.c.h.b16 %v323
  %v1079 = vunpack.c.l.b16 %v324
  %v1080 = vunpack.c.h.b16 %v324
  %v1081 = vunpack.c.l.b16 %v325
  %v1082 = vunpack.c.h.b16 %v325
  %v1083 = vunpack.c.l.b16 %v326
  %v1084 = vunpack.c.h.b16 %v326
  %v1085 = vunpack.c.l.b16 %v327
  %v1086 = vunpack.c.h.b16 %v327
  %v1087 = vunpack.c.l.b16 %v328
  %v1088 = vunpack.c.h.b16 %v328
  %v1089 = vunpack.c.l.b16 %v329
  %v1090 = vunpack.c.h.b16 %v329
  %v1091 = vunpack.c.l.b16 %v330
  %v1092 = vunpack.c.h.b16 %v330
  %v1093 = vunpack.c.l.b16 %v331
  %v1094 = vunpack.c.h.b16 %v331
  %v1095 = vunpack.c.l.b16 %v332
  %v1096 = vunpack.c.h.b16 %v332
  %v1097 = vunpack.c.l.b16 %v333
  %v1098 = vunpack.c.h.b16 %v333
  %v1099 = vunpack.c.l.b16 %v334
  %v1100 = vunpack.c.h.b16 %v334
  %v1101 = vunpack.c.l.b16 %v335
  %v1102 = vunpack.c.h.b16 %v335
  %v1103 = vunpack.c.l.b16 %v336
  %v1104 = vunpack.c.h.b16 %v336
  %v1105 = vunpack.c.l.b16 %v337
  %v1106 = vunpack.c.h.b16 %v337
  %v1107 = vunpack.c.l.b16 %v338
  %v1108 = vunpack.c.h.b16 %v338
  %v1109 = vunpack.c.l.b16 %v339
  %v1110 = vunpack.c.h.b16 %v339
  %v1111 = vunpack.c.l.b16 %v340
  %v1112 = vunpack.c.h.b16 %v340
  %v1113 = vunpack.c.l.b16 %v341
  %v1114 = vunpack.c.h.b16 %v341
  %v1115 = vunpack.c.l.b16 %v342
  %v1116 = vunpack.c.h.b16 %v342
  %v1117 = vunpack.c.l.b16 %v343
  %v1118 = vunpack.c.h.b16 %v343
  %v1119 = vunpack.c.l.b16 %v344
  %v1120 = vunpack.c.h.b16 %v344
  %v1121 = vunpack.c.l.b16 %v345
  %v1122 = vunpack.c.h.b16 %v345
  %v1123 = vunpack.c.l.b16 %v346
  %v1124 = vunpack.c.h.b16 %v346
  %v1125 = vpack.c.b16 %v617, %v613
  %v1126 = vpack.c.b16 %v618, %v614
  %v1127 = vpack.c.b16 %v619, %v615
  %v1128 = vpack.c.b16 %v620, %v616
  %v1129 = vpack.c.b16 %v625, %v621
  %v1130 = vpack.c.b16 %v626, %v622
  %v1131 = vpack.c.b16 %v627, %v623
  %v1132 = vpack.c.b16 %v628, %v624
  %v1133 = vpack.c.b16 %v633, %v629
  %v1134 = vpack.c.b16 %v634, %v630
  %v1135 = vpack.c.b16 %v635, %v631
  %v1136 = vpack.c.b16 %v636, %v632
  %v1137 = vpack.c.b16 %v641, %v637
  %v1138 = vpack.c.b16 %v642, %v638
  %v1139 = vpack.c.b16 %v643, %v639
  %v1140 = vpack.c.b16 %v644, %v640
  %v1141 = vpack.c.b16 %v649, %v645
  %v1142 = vpack.c.b16 %v650, %v646
  %v1143 = vpack.c.b16 %v651, %v647
  %v1144 = vpack.c.b16 %v652, %v648
  %v1145 = vpack.c.b16 %v657, %v653
  %v1146 = vpack.c.b16 %v658, %v654
  %v1147 = vpack.c.b16 %v659, %v655
  %v1148 = vpack.c.b16 %v660, %v656
  %v1149 = vpack.c.b16 %v665, %v661
  %v1150 = vpack.c.b16 %v666, %v662
  %v1151 = vpack.c.b16 %v667, %v663
  %v1152 = vpack.c.b16 %v668, %v664
  %v1153 = vpack.c.b16 %v673, %v669
  %v1154 = vpack.c.b16 %v674, %v670
  %v1155 = vpack.c.b16 %v675, %v671
  %v1156 = vpack.c.b16 %v676, %v672
  %v1157 = vpack.c.b16 %v681, %v677
  %v1158 = vpack.c.b16 %v682, %v678
  %v1159 = vpack.c.b16 %v683, %v679
  %v1160 = vpack.c.b16 %v684, %v680
  %v1161 = vpack.c.b16 %v689, %v685
  %v1162 = vpack.c.b16 %v690, %v686
  %v1163 = vpack.c.b16 %v691, %v687
  %v1164 = vpack.c.b16 %v692, %v688
  %v1165 = vpack.c.b16 %v697, %v693
  %v1166 = vpack.c.b16 %v698, %v694
  %v1167 = vpack.c.b16 %v699, %v695
  %v1168 = vpack.c.b16 %v700, %v696
  %v1169 = vpack.c.b16 %v705, %v701
  %v1170 = vpack.c.b16 %v706, %v702
  %v1171 = vpack.c.b16 %v707, %v703
  %v1172 = vpack.c.b16 %v708, %v704
  %v1173 = vpack.c.b16 %v713, %v709
  %v1174 = vpack.c.b16 %v714, %v710
  %v1175 = vpack.c.b16 %v715, %v711
  %v1176 = vpack.c.b16 %v716, %v712
  %v1177 = vpack.c.b16 %v721, %v717
  %v1178 = vpack.c.b16 %v722, %v718
  %v1179 = vpack.c.b16 %v723, %v719
  %v1180 = vpack.c.b16 %v724, %v720
  %v1181 = vpack.c.b16 %v729, %v725
  %v1182 = vpack.c.b16 %v730, %v726
  %v1183 = vpack.c.b16 %v731, %v727
  %v1184 = vpack.c.b16 %v732, %v728
  %v1185 = vpack.c.b16 %v737, %v733
  %v1186 = vpack.c.b16 %v738, %v734
  %v1187 = vpack.c.b16 %v739, %v735
  %v1188 = vpack.c.b16 %v740, %v736
  %v1189 = vpack.c.b16 %v745, %v741
  %v1190 = vpack.c.b16 %v746, %v742
  %v1191 = vpack.c.b16 %v747, %v743
  %v1192 = vpack.c.b16 %v748, %v744
  %v1193 = vpack.c.b16 %v753, %v749
  %v1194 = vpack.c.b16 %v754, %v750
  %v1195 = vpack.c.b16 %v755, %v751
  %v1196 = vpack.c.b16 %v756, %v752
  %v1197 = vpack.c.b16 %v761, %v757
  %v1198 = vpack.c.b16 %v762, %v758
  %v1199 = vpack.c.b16 %v763, %v759
  %v1200 = vpack.c.b16 %v764, %v760
  %v1201 = vpack.c.b16 %v769, %v765
  %v1202 = vpack.c.b16 %v770, %v766
  %v1203 = vpack.c.b16 %v771, %v767
  %v1204 = vpack.c.b16 %v772, %v768
  %v1205 = vpack.c.b16 %v777, %v773
  %v1206 = vpack.c.b16 %v778, %v774
  %v1207 = vpack.c.b16 %v779, %v775
  %v1208 = vpack.c.b16 %v780, %v776
  %v1209 = vpack.c.b16 %v785, %v781
  %v1210 = vpack.c.b16 %v786, %v782
  %v1211 = vpack.c.b16 %v787, %v783
  %v1212 = vpack.c.b16 %v788, %v784
  %v1213 = vpack.c.b16 %v793, %v789
  %v1214 = vpack.c.b16 %v794, %v790
  %v1215 = vpack.c.b16 %v795, %v791
  %v1216 = vpack.c.b16 %v796, %v792
  %v1217 = vpack.c.b16 %v801, %v797
  %v1218 = vpack.c.b16 %v802, %v798
  %v1219 = vpack.c.b16 %v803, %v799
  %v1220 = vpack.c.b16 %v804, %v800
  %v1221 = vpack.c.b16 %v809, %v805
  %v1222 = vpack.c.b16 %v810, %v806
  %v1223 = vpack.c.b16 %v811, %v807
  %v1224 = vpack.c.b16 %v812, %v808
  %v1225 = vpack.c.b16 %v817, %v813
  %v1226 = vpack.c.b16 %v818, %v814
  %v1227 = vpack.c.b16 %v819, %v815
  %v1228 = vpack.c.b16 %v820, %v816
  %v1229 = vpack.c.b16 %v825, %v821
  %v1230 = vpack.c.b16 %v826, %v822
  %v1231 = vpack.c.b16 %v827, %v823
  %v1232 = vpack.c.b16 %v828, %v824
  %v1233 = vpack.c.b16 %v833, %v829
  %v1234 = vpack.c.b16 %v834, %v830
  %v1235 = vpack.c.b16 %v835, %v831
  %v1236 = vpack.c.b16 %v836, %v832
  %v1237 = vpack.c.b16 %v841, %v837
  %v1238 = vpack.c.b16 %v842, %v838
  %v1239 = vpack.c.b16 %v843, %v839
  %v1240 = vpack.c.b16 %v844, %v840
  %v1241 = vpack.c.b16 %v849, %v845
  %v1242 = vpack.c.b16 %v850, %v846
  %v1243 = vpack.c.b16 %v851, %v847
  %v1244 = vpack.c.b16 %v852, %v848
  %v1245 = vpack.c.b16 %v857, %v853
  %v1246 = vpack.c.b16 %v858, %v854
  %v1247 = vpack.c.b16 %v859, %v855
  %v1248 = vpack.c.b16 %v860, %v856
  %v1249 = vpack.c.b16 %v865, %v861
  %v1250 = vpack.c.b16 %v866, %v862
  %v1251 = vpack.c.b16 %v867, %v863
  %v1252 = vpack.c.b16 %v868, %v864
  %v1253 = vpack.c.b16 %v873, %v869
  %v1254 = vpack.c.b16 %v874, %v870
  %v1255 = vpack.c.b16 %v875, %v871
  %v1256 = vpack.c.b16 %v876, %v872
  %v1257 = vpack.c.b16 %v881, %v877
  %v1258 = vpack.c.b16 %v882, %v878
  %v1259 = vpack.c.b16 %v883, %v879
  %v1260 = vpack.c.b16 %v884, %v880
  %v1261 = vpack.c.b16 %v889, %v885
  %v1262 = vpack.c.b16 %v890, %v886
  %v1263 = vpack.c.b16 %v891, %v887
  %v1264 = vpack.c.b16 %v892, %v888
  %v1265 = vpack.c.b16 %v897, %v893
  %v1266 = vpack.c.b16 %v898, %v894
  %v1267 = vpack.c.b16 %v899, %v895
  %v1268 = vpack.c.b16 %v900, %v896
  %v1269 = vpack.c.b16 %v905, %v901
  %v1270 = vpack.c.b16 %v906, %v902
  %v1271 = vpack.c.b16 %v907, %v903
  %v1272 = vpack.c.b16 %v908, %v904
  %v1273 = vpack.c.b16 %v913, %v909
  %v1274 = vpack.c.b16 %v914, %v910
  %v1275 = vpack.c.b16 %v915, %v911
  %v1276 = vpack.c.b16 %v916, %v912
  %v1277 = vpack.c.b16 %v921, %v917
  %v1278 = vpack.c.b16 %v922, %v918
  %v1279 = vpack.c.b16 %v923, %v919
  %v1280 = vpack.c.b16 %v924, %v920
  %v1281 = vpack.c.b16 %v929, %v925
  %v1282 = vpack.c.b16 %v930, %v926
  %v1283 = vpack.c.b16 %v931, %v927
  %v1284 = vpack.c.b16 %v932, %v928
  %v1285 = vpack.c.b16 %v937, %v933
  %v1286 = vpack.c.b16 %v938, %v934
  %v1287 = vpack.c.b16 %v939, %v935
  %v1288 = vpack.c.b16 %v940, %v936
  %v1289 = vpack.c.b16 %v945, %v941
  %v1290 = vpack.c.b16 %v946, %v942
  %v1291 = vpack.c.b16 %v947, %v943
  %v1292 = vpack.c.b16 %v948, %v944
  %v1293 = vpack.c.b16 %v953, %v949
  %v1294 = vpack.c.b16 %v954, %v950
  %v1295 = vpack.c.b16 %v955, %v951
  %v1296 = vpack.c.b16 %v956, %v952
  %v1297 = vpack.c.b16 %v961, %v957
  %v1298 = vpack.c.b16 %v962, %v958
  %v1299 = vpack.c.b16 %v963, %v959
  %v1300 = vpack.c.b16 %v964, %v960
  %v1301 = vpack.c.b16 %v969, %v965
  %v1302 = vpack.c.b16 %v970, %v966
  %v1303 = vpack.c.b16 %v971, %v967
  %v1304 = vpack.c.b16 %v972, %v968
  %v1305 = vpack.c.b16 %v977, %v973
  %v1306 = vpack.c.b16 %v978, %v974
  %v1307 = vpack.c.b16 %v979, %v975
  %v1308 = vpack.c.b16 %v980, %v976
  %v1309 = vpack.c.b16 %v985, %v981
  %v1310 = vpack.c.b16 %v986, %v982
  %v1311 = vpack.c.b16 %v987, %v983
  %v1312 = vpack.c.b16 %v988, %v984
  %v1313 = vpack.c.b16 %v993, %v989
  %v1314 = vpack.c.b16 %v994, %v990
  %v1315 = vpack.c.b16 %v995, %v991
  %v1316 = vpack.c.b16 %v996, %v992
  %v1317 = vpack.c.b16 %v1001, %v997
  %v1318 = vpack.c.b16 %v1002, %v998
  %v1319 = vpack.c.b16 %v1003, %v999
  %v1320 = vpack.c.b16 %v1004, %v1000
  %v1321 = vpack.c.b16 %v1009, %v1005
  %v1322 = vpack.c.b16 %v1010, %v1006
  %v1323 = vpack.c.b16 %v1011, %v1007
  %v1324 = vpack.c.b16 %v1012, %v1008
  %v1325 = vpack.c.b16 %v1017, %v1013
  %v1326 = vpack.c.b16 %v1018, %v1014
  %v1327 = vpack.c.b16 %v1019, %v1015
  %v1328 = vpack.c.b16 %v1020, %v1016
  %v1329 = vpack.c.b16 %v1025, %v1021
  %v1330 = vpack.c.b16 %v1026, %v1022
  %v1331 = vpack.c.b16 %v1027, %v1023
  %v1332 = vpack.c.b16 %v1028, %v1024
  %v1333 = vpack.c.b16 %v1033, %v1029
  %v1334 = vpack.c.b16 %v1034, %v1030
  %v1335 = vpack.c.b16 %v1035, %v1031
  %v1336 = vpack.c.b16 %v1036, %v1032
  %v1337 = vpack.c.b16 %v1041, %v1037
  %v1338 = vpack.c.b16 %v1042, %v1038
  %v1339 = vpack.c.b16 %v1043, %v1039
  %v1340 = vpack.c.b16 %v1044, %v1040
  %v1341 = vpack.c.b16 %v1049, %v1045
  %v1342 = vpack.c.b16 %v1050, %v1046
  %v1343 = vpack.c.b16 %v1051, %v1047
  %v1344 = vpack.c.b16 %v1052, %v1048
  %v1345 = vpack.c.b16 %v1057, %v1053
  %v1346 = vpack.c.b16 %v1058, %v1054
  %v1347 = vpack.c.b16 %v1059, %v1055
  %v1348 = vpack.c.b16 %v1060, %v1056
  %v1349 = vpack.c.b16 %v1065, %v1061
  %v1350 = vpack.c.b16 %v1066, %v1062
  %v1351 = vpack.c.b16 %v1067, %v1063
  %v1352 = vpack.c.b16 %v1068, %v1064
  %v1353 = vpack.c.b16 %v1073, %v1069
  %v1354 = vpack.c.b16 %v1074, %v1070
  %v1355 = vpack.c.b16 %v1075, %v1071
  %v1356 = vpack.c.b16 %v1076, %v1072
  %v1357 = vpack.c.b16 %v1081, %v1077
  %v1358 = vpack.c.b16 %v1082, %v1078
  %v1359 = vpack.c.b16 %v1083, %v1079
  %v1360 = vpack.c.b16 %v1084, %v1080
  %v1361 = vpack.c.b16 %v1089, %v1085
  %v1362 = vpack.c.b16 %v1090, %v1086
  %v1363 = vpack.c.b16 %v1091, %v1087
  %v1364 = vpack.c.b16 %v1092, %v1088
  %v1365 = vpack.c.b16 %v1097, %v1093
  %v1366 = vpack.c.b16 %v1098, %v1094
  %v1367 = vpack.c.b16 %v1099, %v1095
  %v1368 = vpack.c.b16 %v1100, %v1096
  %v1369 = vpack.c.b16 %v1105, %v1101
  %v1370 = vpack.c.b16 %v1106, %v1102
  %v1371 = vpack.c.b16 %v1107, %v1103
  %v1372 = vpack.c.b16 %v1108, %v1104
  %v1373 = vpack.c.b16 %v1113, %v1109
  %v1374 = vpack.c.b16 %v1114, %v1110
  %v1375 = vpack.c.b16 %v1115, %v1111
  %v1376 = vpack.c.b16 %v1116, %v1112
  %v1377 = vpack.c.b16 %v1121, %v1117
  %v1378 = vpack.c.b16 %v1122, %v1118
  %v1379 = vpack.c.b16 %v1123, %v1119
  %v1380 = vpack.c.b16 %v1124, %v1120
  %1637 = vmatpush.bf16.msra.mxu0 %v1153
  %1638 = vmatpush.bf16.msra.mxu0 %v1149
  %1639 = vmatpush.bf16.msra.mxu0 %v1145
  %1640 = vmatpush.bf16.msra.mxu0 %v1141
  %1641 = vmatpush.bf16.msra.mxu0 %v1137
  %1642 = vmatpush.bf16.msra.mxu0 %v1133
  %1643 = vmatpush.bf16.msra.mxu0 %v1129
  %1644 = vmatpush.bf16.msra.mxu0 %v1125
  %1645 = vmatmul.bf16.gmra.mxu0 %v83
  %v1646 = vpop.f32.mrf.mxu0
  %v1647 = vadd.f32 %v349, %v1646
  %v1648 = vpop.f32.mrf.mxu0
  %1649 = vdwg.mxu0
  %1650 = vmatpush.bf16.msra.mxu0 %v1185
  %1651 = vmatpush.bf16.msra.mxu0 %v1181
  %1652 = vmatpush.bf16.msra.mxu0 %v1177
  %1653 = vmatpush.bf16.msra.mxu0 %v1173
  %1654 = vmatpush.bf16.msra.mxu0 %v1169
  %1655 = vmatpush.bf16.msra.mxu0 %v1165
  %1656 = vmatpush.bf16.msra.mxu0 %v1161
  %1657 = vmatpush.bf16.msra.mxu0 %v1157
  %1658 = vmatmul.bf16.gmra.mxu0 %v84
  %v1659 = vpop.f32.mrf.mxu0
  %v1660 = vadd.f32 %v1647, %v1659
  %v1661 = vpop.f32.mrf.mxu0
  %1662 = vdwg.mxu0
  %1663 = vmatpush.bf16.msra.mxu0 %v1217
  %1664 = vmatpush.bf16.msra.mxu0 %v1213
  %1665 = vmatpush.bf16.msra.mxu0 %v1209
  %1666 = vmatpush.bf16.msra.mxu0 %v1205
  %1667 = vmatpush.bf16.msra.mxu0 %v1201
  %1668 = vmatpush.bf16.msra.mxu0 %v1197
  %1669 = vmatpush.bf16.msra.mxu0 %v1193
  %1670 = vmatpush.bf16.msra.mxu0 %v1189
  %1671 = vmatmul.bf16.gmra.mxu0 %v85
  %v1672 = vpop.f32.mrf.mxu0
  %v1673 = vadd.f32 %v1660, %v1672
  %v1674 = vpop.f32.mrf.mxu0
  %1675 = vdwg.mxu0
  %1676 = vmatpush.bf16.msra.mxu0 %v1249
  %1677 = vmatpush.bf16.msra.mxu0 %v1245
  %1678 = vmatpush.bf16.msra.mxu0 %v1241
  %1679 = vmatpush.bf16.msra.mxu0 %v1237
  %1680 = vmatpush.bf16.msra.mxu0 %v1233
  %1681 = vmatpush.bf16.msra.mxu0 %v1229
  %1682 = vmatpush.bf16.msra.mxu0 %v1225
  %1683 = vmatpush.bf16.msra.mxu0 %v1221
  %1684 = vmatmul.bf16.gmra.mxu0 %v86
  %v1685 = vpop.f32.mrf.mxu0
  %v1686 = vadd.f32 %v1673, %v1685
  %v1687 = vpop.f32.mrf.mxu0
  %1688 = vdwg.mxu0
  %1689 = vmatpush.bf16.msra.mxu0 %v1281
  %1690 = vmatpush.bf16.msra.mxu0 %v1277
  %1691 = vmatpush.bf16.msra.mxu0 %v1273
  %1692 = vmatpush.bf16.msra.mxu0 %v1269
  %1693 = vmatpush.bf16.msra.mxu0 %v1265
  %1694 = vmatpush.bf16.msra.mxu0 %v1261
  %1695 = vmatpush.bf16.msra.mxu0 %v1257
  %1696 = vmatpush.bf16.msra.mxu0 %v1253
  %1697 = vmatmul.bf16.gmra.mxu0 %v87
  %v1698 = vpop.f32.mrf.mxu0
  %v1699 = vadd.f32 %v1686, %v1698
  %v1700 = vpop.f32.mrf.mxu0
  %1701 = vdwg.mxu0
  %1702 = vmatpush.bf16.msra.mxu0 %v1313
  %1703 = vmatpush.bf16.msra.mxu0 %v1309
  %1704 = vmatpush.bf16.msra.mxu0 %v1305
  %1705 = vmatpush.bf16.msra.mxu0 %v1301
  %1706 = vmatpush.bf16.msra.mxu0 %v1297
  %1707 = vmatpush.bf16.msra.mxu0 %v1293
  %1708 = vmatpush.bf16.msra.mxu0 %v1289
  %1709 = vmatpush.bf16.msra.mxu0 %v1285
  %1710 = vmatmul.bf16.gmra.mxu0 %v88
  %v1711 = vpop.f32.mrf.mxu0
  %v1712 = vadd.f32 %v1699, %v1711
  %v1713 = vpop.f32.mrf.mxu0
  %1714 = vdwg.mxu0
  %1715 = vmatpush.bf16.msra.mxu0 %v1345
  %1716 = vmatpush.bf16.msra.mxu0 %v1341
  %1717 = vmatpush.bf16.msra.mxu0 %v1337
  %1718 = vmatpush.bf16.msra.mxu0 %v1333
  %1719 = vmatpush.bf16.msra.mxu0 %v1329
  %1720 = vmatpush.bf16.msra.mxu0 %v1325
  %1721 = vmatpush.bf16.msra.mxu0 %v1321
  %1722 = vmatpush.bf16.msra.mxu0 %v1317
  %1723 = vmatmul.bf16.gmra.mxu0 %v89
  %v1724 = vpop.f32.mrf.mxu0
  %v1725 = vadd.f32 %v1712, %v1724
  %v1726 = vpop.f32.mrf.mxu0
  %1727 = vdwg.mxu0
  %1728 = vmatpush.bf16.msra.mxu0 %v1377
  %1729 = vmatpush.bf16.msra.mxu0 %v1373
  %1730 = vmatpush.bf16.msra.mxu0 %v1369
  %1731 = vmatpush.bf16.msra.mxu0 %v1365
  %1732 = vmatpush.bf16.msra.mxu0 %v1361
  %1733 = vmatpush.bf16.msra.mxu0 %v1357
  %1734 = vmatpush.bf16.msra.mxu0 %v1353
  %1735 = vmatpush.bf16.msra.mxu0 %v1349
  %1736 = vmatmul.bf16.gmra.mxu0 %v90
  %v1737 = vpop.f32.mrf.mxu0
  %v1738 = vadd.f32 %v1725, %v1737
  %v1739 = vpop.f32.mrf.mxu0
  %1740 = vdwg.mxu0
  %1741 = vmatpush.bf16.msra.mxu0 %v1154
  %1742 = vmatpush.bf16.msra.mxu0 %v1150
  %1743 = vmatpush.bf16.msra.mxu0 %v1146
  %1744 = vmatpush.bf16.msra.mxu0 %v1142
  %1745 = vmatpush.bf16.msra.mxu0 %v1138
  %1746 = vmatpush.bf16.msra.mxu0 %v1134
  %1747 = vmatpush.bf16.msra.mxu0 %v1130
  %1748 = vmatpush.bf16.msra.mxu0 %v1126
  %1749 = vmatmul.bf16.gmra.mxu0 %v83
  %v1750 = vpop.f32.mrf.mxu0
  %v1751 = vadd.f32 %v350, %v1750
  %v1752 = vpop.f32.mrf.mxu0
  %1753 = vdwg.mxu0
  %1754 = vmatpush.bf16.msra.mxu0 %v1186
  %1755 = vmatpush.bf16.msra.mxu0 %v1182
  %1756 = vmatpush.bf16.msra.mxu0 %v1178
  %1757 = vmatpush.bf16.msra.mxu0 %v1174
  %1758 = vmatpush.bf16.msra.mxu0 %v1170
  %1759 = vmatpush.bf16.msra.mxu0 %v1166
  %1760 = vmatpush.bf16.msra.mxu0 %v1162
  %1761 = vmatpush.bf16.msra.mxu0 %v1158
  %1762 = vmatmul.bf16.gmra.mxu0 %v84
  %v1763 = vpop.f32.mrf.mxu0
  %v1764 = vadd.f32 %v1751, %v1763
  %v1765 = vpop.f32.mrf.mxu0
  %1766 = vdwg.mxu0
  %1767 = vmatpush.bf16.msra.mxu0 %v1218
  %1768 = vmatpush.bf16.msra.mxu0 %v1214
  %1769 = vmatpush.bf16.msra.mxu0 %v1210
  %1770 = vmatpush.bf16.msra.mxu0 %v1206
  %1771 = vmatpush.bf16.msra.mxu0 %v1202
  %1772 = vmatpush.bf16.msra.mxu0 %v1198
  %1773 = vmatpush.bf16.msra.mxu0 %v1194
  %1774 = vmatpush.bf16.msra.mxu0 %v1190
  %1775 = vmatmul.bf16.gmra.mxu0 %v85
  %v1776 = vpop.f32.mrf.mxu0
  %v1777 = vadd.f32 %v1764, %v1776
  %v1778 = vpop.f32.mrf.mxu0
  %1779 = vdwg.mxu0
  %1780 = vmatpush.bf16.msra.mxu0 %v1250
  %1781 = vmatpush.bf16.msra.mxu0 %v1246
  %1782 = vmatpush.bf16.msra.mxu0 %v1242
  %1783 = vmatpush.bf16.msra.mxu0 %v1238
  %1784 = vmatpush.bf16.msra.mxu0 %v1234
  %1785 = vmatpush.bf16.msra.mxu0 %v1230
  %1786 = vmatpush.bf16.msra.mxu0 %v1226
  %1787 = vmatpush.bf16.msra.mxu0 %v1222
  %1788 = vmatmul.bf16.gmra.mxu0 %v86
  %v1789 = vpop.f32.mrf.mxu0
  %v1790 = vadd.f32 %v1777, %v1789
  %v1791 = vpop.f32.mrf.mxu0
  %1792 = vdwg.mxu0
  %1793 = vmatpush.bf16.msra.mxu0 %v1282
  %1794 = vmatpush.bf16.msra.mxu0 %v1278
  %1795 = vmatpush.bf16.msra.mxu0 %v1274
  %1796 = vmatpush.bf16.msra.mxu0 %v1270
  %1797 = vmatpush.bf16.msra.mxu0 %v1266
  %1798 = vmatpush.bf16.msra.mxu0 %v1262
  %1799 = vmatpush.bf16.msra.mxu0 %v1258
  %1800 = vmatpush.bf16.msra.mxu0 %v1254
  %1801 = vmatmul.bf16.gmra.mxu0 %v87
  %v1802 = vpop.f32.mrf.mxu0
  %v1803 = vadd.f32 %v1790, %v1802
  %v1804 = vpop.f32.mrf.mxu0
  %1805 = vdwg.mxu0
  %1806 = vmatpush.bf16.msra.mxu0 %v1314
  %1807 = vmatpush.bf16.msra.mxu0 %v1310
  %1808 = vmatpush.bf16.msra.mxu0 %v1306
  %1809 = vmatpush.bf16.msra.mxu0 %v1302
  %1810 = vmatpush.bf16.msra.mxu0 %v1298
  %1811 = vmatpush.bf16.msra.mxu0 %v1294
  %1812 = vmatpush.bf16.msra.mxu0 %v1290
  %1813 = vmatpush.bf16.msra.mxu0 %v1286
  %1814 = vmatmul.bf16.gmra.mxu0 %v88
  %v1815 = vpop.f32.mrf.mxu0
  %v1816 = vadd.f32 %v1803, %v1815
  %v1817 = vpop.f32.mrf.mxu0
  %1818 = vdwg.mxu0
  %1819 = vmatpush.bf16.msra.mxu0 %v1346
  %1820 = vmatpush.bf16.msra.mxu0 %v1342
  %1821 = vmatpush.bf16.msra.mxu0 %v1338
  %1822 = vmatpush.bf16.msra.mxu0 %v1334
  %1823 = vmatpush.bf16.msra.mxu0 %v1330
  %1824 = vmatpush.bf16.msra.mxu0 %v1326
  %1825 = vmatpush.bf16.msra.mxu0 %v1322
  %1826 = vmatpush.bf16.msra.mxu0 %v1318
  %1827 = vmatmul.bf16.gmra.mxu0 %v89
  %v1828 = vpop.f32.mrf.mxu0
  %v1829 = vadd.f32 %v1816, %v1828
  %v1830 = vpop.f32.mrf.mxu0
  %1831 = vdwg.mxu0
  %1832 = vmatpush.bf16.msra.mxu0 %v1378
  %1833 = vmatpush.bf16.msra.mxu0 %v1374
  %1834 = vmatpush.bf16.msra.mxu0 %v1370
  %1835 = vmatpush.bf16.msra.mxu0 %v1366
  %1836 = vmatpush.bf16.msra.mxu0 %v1362
  %1837 = vmatpush.bf16.msra.mxu0 %v1358
  %1838 = vmatpush.bf16.msra.mxu0 %v1354
  %1839 = vmatpush.bf16.msra.mxu0 %v1350
  %1840 = vmatmul.bf16.gmra.mxu0 %v90
  %v1841 = vpop.f32.mrf.mxu0
  %v1842 = vadd.f32 %v1829, %v1841
  %v1843 = vpop.f32.mrf.mxu0
  %1844 = vdwg.mxu0
  %1845 = vmatpush.bf16.msra.mxu0 %v1155
  %1846 = vmatpush.bf16.msra.mxu0 %v1151
  %1847 = vmatpush.bf16.msra.mxu0 %v1147
  %1848 = vmatpush.bf16.msra.mxu0 %v1143
  %1849 = vmatpush.bf16.msra.mxu0 %v1139
  %1850 = vmatpush.bf16.msra.mxu0 %v1135
  %1851 = vmatpush.bf16.msra.mxu0 %v1131
  %1852 = vmatpush.bf16.msra.mxu0 %v1127
  %1853 = vmatmul.bf16.gmra.mxu0 %v83
  %v1854 = vpop.f32.mrf.mxu0
  %v1855 = vadd.f32 %v351, %v1854
  %v1856 = vpop.f32.mrf.mxu0
  %1857 = vdwg.mxu0
  %1858 = vmatpush.bf16.msra.mxu0 %v1187
  %1859 = vmatpush.bf16.msra.mxu0 %v1183
  %1860 = vmatpush.bf16.msra.mxu0 %v1179
  %1861 = vmatpush.bf16.msra.mxu0 %v1175
  %1862 = vmatpush.bf16.msra.mxu0 %v1171
  %1863 = vmatpush.bf16.msra.mxu0 %v1167
  %1864 = vmatpush.bf16.msra.mxu0 %v1163
  %1865 = vmatpush.bf16.msra.mxu0 %v1159
  %1866 = vmatmul.bf16.gmra.mxu0 %v84
  %v1867 = vpop.f32.mrf.mxu0
  %v1868 = vadd.f32 %v1855, %v1867
  %v1869 = vpop.f32.mrf.mxu0
  %1870 = vdwg.mxu0
  %1871 = vmatpush.bf16.msra.mxu0 %v1219
  %1872 = vmatpush.bf16.msra.mxu0 %v1215
  %1873 = vmatpush.bf16.msra.mxu0 %v1211
  %1874 = vmatpush.bf16.msra.mxu0 %v1207
  %1875 = vmatpush.bf16.msra.mxu0 %v1203
  %1876 = vmatpush.bf16.msra.mxu0 %v1199
  %1877 = vmatpush.bf16.msra.mxu0 %v1195
  %1878 = vmatpush.bf16.msra.mxu0 %v1191
  %1879 = vmatmul.bf16.gmra.mxu0 %v85
  %v1880 = vpop.f32.mrf.mxu0
  %v1881 = vadd.f32 %v1868, %v1880
  %v1882 = vpop.f32.mrf.mxu0
  %1883 = vdwg.mxu0
  %1884 = vmatpush.bf16.msra.mxu0 %v1251
  %1885 = vmatpush.bf16.msra.mxu0 %v1247
  %1886 = vmatpush.bf16.msra.mxu0 %v1243
  %1887 = vmatpush.bf16.msra.mxu0 %v1239
  %1888 = vmatpush.bf16.msra.mxu0 %v1235
  %1889 = vmatpush.bf16.msra.mxu0 %v1231
  %1890 = vmatpush.bf16.msra.mxu0 %v1227
  %1891 = vmatpush.bf16.msra.mxu0 %v1223
  %1892 = vmatmul.bf16.gmra.mxu0 %v86
  %v1893 = vpop.f32.mrf.mxu0
  %v1894 = vadd.f32 %v1881, %v1893
  %v1895 = vpop.f32.mrf.mxu0
  %1896 = vdwg.mxu0
  %1897 = vmatpush.bf16.msra.mxu0 %v1283
  %1898 = vmatpush.bf16.msra.mxu0 %v1279
  %1899 = vmatpush.bf16.msra.mxu0 %v1275
  %1900 = vmatpush.bf16.msra.mxu0 %v1271
  %1901 = vmatpush.bf16.msra.mxu0 %v1267
  %1902 = vmatpush.bf16.msra.mxu0 %v1263
  %1903 = vmatpush.bf16.msra.mxu0 %v1259
  %1904 = vmatpush.bf16.msra.mxu0 %v1255
  %1905 = vmatmul.bf16.gmra.mxu0 %v87
  %v1906 = vpop.f32.mrf.mxu0
  %v1907 = vadd.f32 %v1894, %v1906
  %v1908 = vpop.f32.mrf.mxu0
  %1909 = vdwg.mxu0
  %1910 = vmatpush.bf16.msra.mxu0 %v1315
  %1911 = vmatpush.bf16.msra.mxu0 %v1311
  %1912 = vmatpush.bf16.msra.mxu0 %v1307
  %1913 = vmatpush.bf16.msra.mxu0 %v1303
  %1914 = vmatpush.bf16.msra.mxu0 %v1299
  %1915 = vmatpush.bf16.msra.mxu0 %v1295
  %1916 = vmatpush.bf16.msra.mxu0 %v1291
  %1917 = vmatpush.bf16.msra.mxu0 %v1287
  %1918 = vmatmul.bf16.gmra.mxu0 %v88
  %v1919 = vpop.f32.mrf.mxu0
  %v1920 = vadd.f32 %v1907, %v1919
  %v1921 = vpop.f32.mrf.mxu0
  %1922 = vdwg.mxu0
  %1923 = vmatpush.bf16.msra.mxu0 %v1347
  %1924 = vmatpush.bf16.msra.mxu0 %v1343
  %1925 = vmatpush.bf16.msra.mxu0 %v1339
  %1926 = vmatpush.bf16.msra.mxu0 %v1335
  %1927 = vmatpush.bf16.msra.mxu0 %v1331
  %1928 = vmatpush.bf16.msra.mxu0 %v1327
  %1929 = vmatpush.bf16.msra.mxu0 %v1323
  %1930 = vmatpush.bf16.msra.mxu0 %v1319
  %1931 = vmatmul.bf16.gmra.mxu0 %v89
  %v1932 = vpop.f32.mrf.mxu0
  %v1933 = vadd.f32 %v1920, %v1932
  %v1934 = vpop.f32.mrf.mxu0
  %1935 = vdwg.mxu0
  %1936 = vmatpush.bf16.msra.mxu0 %v1379
  %1937 = vmatpush.bf16.msra.mxu0 %v1375
  %1938 = vmatpush.bf16.msra.mxu0 %v1371
  %1939 = vmatpush.bf16.msra.mxu0 %v1367
  %1940 = vmatpush.bf16.msra.mxu0 %v1363
  %1941 = vmatpush.bf16.msra.mxu0 %v1359
  %1942 = vmatpush.bf16.msra.mxu0 %v1355
  %1943 = vmatpush.bf16.msra.mxu0 %v1351
  %1944 = vmatmul.bf16.gmra.mxu0 %v90
  %v1945 = vpop.f32.mrf.mxu0
  %v1946 = vadd.f32 %v1933, %v1945
  %v1947 = vpop.f32.mrf.mxu0
  %1948 = vdwg.mxu0
  %1949 = vmatpush.bf16.msra.mxu0 %v1156
  %1950 = vmatpush.bf16.msra.mxu0 %v1152
  %1951 = vmatpush.bf16.msra.mxu0 %v1148
  %1952 = vmatpush.bf16.msra.mxu0 %v1144
  %1953 = vmatpush.bf16.msra.mxu0 %v1140
  %1954 = vmatpush.bf16.msra.mxu0 %v1136
  %1955 = vmatpush.bf16.msra.mxu0 %v1132
  %1956 = vmatpush.bf16.msra.mxu0 %v1128
  %1957 = vmatmul.bf16.gmra.mxu0 %v83
  %v1958 = vpop.f32.mrf.mxu0
  %v1959 = vadd.f32 %v352, %v1958
  %v1960 = vpop.f32.mrf.mxu0
  %1961 = vdwg.mxu0
  %1962 = vmatpush.bf16.msra.mxu0 %v1188
  %1963 = vmatpush.bf16.msra.mxu0 %v1184
  %1964 = vmatpush.bf16.msra.mxu0 %v1180
  %1965 = vmatpush.bf16.msra.mxu0 %v1176
  %1966 = vmatpush.bf16.msra.mxu0 %v1172
  %1967 = vmatpush.bf16.msra.mxu0 %v1168
  %1968 = vmatpush.bf16.msra.mxu0 %v1164
  %1969 = vmatpush.bf16.msra.mxu0 %v1160
  %1970 = vmatmul.bf16.gmra.mxu0 %v84
  %v1971 = vpop.f32.mrf.mxu0
  %v1972 = vadd.f32 %v1959, %v1971
  %v1973 = vpop.f32.mrf.mxu0
  %1974 = vdwg.mxu0
  %1975 = vmatpush.bf16.msra.mxu0 %v1220
  %1976 = vmatpush.bf16.msra.mxu0 %v1216
  %1977 = vmatpush.bf16.msra.mxu0 %v1212
  %1978 = vmatpush.bf16.msra.mxu0 %v1208
  %1979 = vmatpush.bf16.msra.mxu0 %v1204
  %1980 = vmatpush.bf16.msra.mxu0 %v1200
  %1981 = vmatpush.bf16.msra.mxu0 %v1196
  %1982 = vmatpush.bf16.msra.mxu0 %v1192
  %1983 = vmatmul.bf16.gmra.mxu0 %v85
  %v1984 = vpop.f32.mrf.mxu0
  %v1985 = vadd.f32 %v1972, %v1984
  %v1986 = vpop.f32.mrf.mxu0
  %1987 = vdwg.mxu0
  %1988 = vmatpush.bf16.msra.mxu0 %v1252
  %1989 = vmatpush.bf16.msra.mxu0 %v1248
  %1990 = vmatpush.bf16.msra.mxu0 %v1244
  %1991 = vmatpush.bf16.msra.mxu0 %v1240
  %1992 = vmatpush.bf16.msra.mxu0 %v1236
  %1993 = vmatpush.bf16.msra.mxu0 %v1232
  %1994 = vmatpush.bf16.msra.mxu0 %v1228
  %1995 = vmatpush.bf16.msra.mxu0 %v1224
  %1996 = vmatmul.bf16.gmra.mxu0 %v86
  %v1997 = vpop.f32.mrf.mxu0
  %v1998 = vadd.f32 %v1985, %v1997
  %v1999 = vpop.f32.mrf.mxu0
  %2000 = vdwg.mxu0
  %2001 = vmatpush.bf16.msra.mxu0 %v1284
  %2002 = vmatpush.bf16.msra.mxu0 %v1280
  %2003 = vmatpush.bf16.msra.mxu0 %v1276
  %2004 = vmatpush.bf16.msra.mxu0 %v1272
  %2005 = vmatpush.bf16.msra.mxu0 %v1268
  %2006 = vmatpush.bf16.msra.mxu0 %v1264
  %2007 = vmatpush.bf16.msra.mxu0 %v1260
  %2008 = vmatpush.bf16.msra.mxu0 %v1256
  %2009 = vmatmul.bf16.gmra.mxu0 %v87
  %v2010 = vpop.f32.mrf.mxu0
  %v2011 = vadd.f32 %v1998, %v2010
  %v2012 = vpop.f32.mrf.mxu0
  %2013 = vdwg.mxu0
  %2014 = vmatpush.bf16.msra.mxu0 %v1316
  %2015 = vmatpush.bf16.msra.mxu0 %v1312
  %2016 = vmatpush.bf16.msra.mxu0 %v1308
  %2017 = vmatpush.bf16.msra.mxu0 %v1304
  %2018 = vmatpush.bf16.msra.mxu0 %v1300
  %2019 = vmatpush.bf16.msra.mxu0 %v1296
  %2020 = vmatpush.bf16.msra.mxu0 %v1292
  %2021 = vmatpush.bf16.msra.mxu0 %v1288
  %2022 = vmatmul.bf16.gmra.mxu0 %v88
  %v2023 = vpop.f32.mrf.mxu0
  %v2024 = vadd.f32 %v2011, %v2023
  %v2025 = vpop.f32.mrf.mxu0
  %2026 = vdwg.mxu0
  %2027 = vmatpush.bf16.msra.mxu0 %v1348
  %2028 = vmatpush.bf16.msra.mxu0 %v1344
  %2029 = vmatpush.bf16.msra.mxu0 %v1340
  %2030 = vmatpush.bf16.msra.mxu0 %v1336
  %2031 = vmatpush.bf16.msra.mxu0 %v1332
  %2032 = vmatpush.bf16.msra.mxu0 %v1328
  %2033 = vmatpush.bf16.msra.mxu0 %v1324
  %2034 = vmatpush.bf16.msra.mxu0 %v1320
  %2035 = vmatmul.bf16.gmra.mxu0 %v89
  %v2036 = vpop.f32.mrf.mxu0
  %v2037 = vadd.f32 %v2024, %v2036
  %v2038 = vpop.f32.mrf.mxu0
  %2039 = vdwg.mxu0
  %2040 = vmatpush.bf16.msra.mxu0 %v1380
  %2041 = vmatpush.bf16.msra.mxu0 %v1376
  %2042 = vmatpush.bf16.msra.mxu0 %v1372
  %2043 = vmatpush.bf16.msra.mxu0 %v1368
  %2044 = vmatpush.bf16.msra.mxu0 %v1364
  %2045 = vmatpush.bf16.msra.mxu0 %v1360
  %2046 = vmatpush.bf16.msra.mxu0 %v1356
  %2047 = vmatpush.bf16.msra.mxu0 %v1352
  %2048 = vmatmul.bf16.gmra.mxu0 %v90
  %v2049 = vpop.f32.mrf.mxu0
  %v2050 = vadd.f32 %v2037, %v2049
  %v2051 = vpop.f32.mrf.mxu0
  %2052 = vdwg.mxu0
  %v2053 = vmax.f32 %v1738, 0.0
  %v2054 = vmax.f32 %v1842, 0.0
  %v2055 = vmax.f32 %v1946, 0.0
  %v2056 = vmax.f32 %v2050, 0.0
  %v2057 = vpack.c.bf16 %v2053, %v2053
  %v2058 = vpack.c.bf16 %v2054, %v2054
  %v2059 = vpack.c.bf16 %v2055, %v2055
  %v2060 = vpack.c.bf16 %v2056, %v2056
  %v2061 = vld [vmem:[%s4] sm:$0xff]
  %v2062 = vld [vmem:[%s4 + $0x8] sm:$0xff]
  %v2063 = vld [vmem:[%s4 + $0x10] sm:$0xff]
  %v2064 = vld [vmem:[%s4 + $0x18] sm:$0xff]
  %v2065 = vld [vmem:[%s4 + $0x20] sm:$0xff]
  %v2066 = vld [vmem:[%s4 + $0x28] sm:$0xff]
  %v2067 = vld [vmem:[%s4 + $0x30] sm:$0xff]
  %v2068 = vld [vmem:[%s4 + $0x38] sm:$0xff]
  %v2069 = vld [vmem:[%s4 + $0x40] sm:$0xff]
  %v2070 = vld [vmem:[%s4 + $0x48] sm:$0xff]
  %v2071 = vld [vmem:[%s4 + $0x50] sm:$0xff]
  %v2072 = vld [vmem:[%s4 + $0x58] sm:$0xff]
  %v2073 = vld [vmem:[%s4 + $0x60] sm:$0xff]
  %v2074 = vld [vmem:[%s4 + $0x68] sm:$0xff]
  %v2075 = vld [vmem:[%s4 + $0x70] sm:$0xff]
  %v2076 = vld [vmem:[%s4 + $0x78] sm:$0xff]
  %v2077 = vld [vmem:[%s4 + $0x80] sm:$0xff]
  %v2078 = vld [vmem:[%s4 + $0x88] sm:$0xff]
  %v2079 = vld [vmem:[%s4 + $0x90] sm:$0xff]
  %v2080 = vld [vmem:[%s4 + $0x98] sm:$0xff]
  %v2081 = vld [vmem:[%s4 + $0xa0] sm:$0xff]
  %v2082 = vld [vmem:[%s4 + $0xa8] sm:$0xff]
  %v2083 = vld [vmem:[%s4 + $0xb0] sm:$0xff]
  %v2084 = vld [vmem:[%s4 + $0xb8] sm:$0xff]
  %v2085 = vld [vmem:[%s4 + $0xc0] sm:$0xff]
  %v2086 = vld [vmem:[%s4 + $0xc8] sm:$0xff]
  %v2087 = vld [vmem:[%s4 + $0xd0] sm:$0xff]
  %v2088 = vld [vmem:[%s4 + $0xd8] sm:$0xff]
  %v2089 = vld [vmem:[%s4 + $0xe0] sm:$0xff]
  %v2090 = vld [vmem:[%s4 + $0xe8] sm:$0xff]
  %v2091 = vld [vmem:[%s4 + $0xf0] sm:$0xff]
  %v2092 = vld [vmem:[%s4 + $0xf8] sm:$0xff]
  %v2093 = vld [vmem:[%s4 + $0x100] sm:$0xff]
  %v2094 = vld [vmem:[%s4 + $0x108] sm:$0xff]
  %v2095 = vld [vmem:[%s4 + $0x110] sm:$0xff]
  %v2096 = vld [vmem:[%s4 + $0x118] sm:$0xff]
  %v2097 = vld [vmem:[%s4 + $0x120] sm:$0xff]
  %v2098 = vld [vmem:[%s4 + $0x128] sm:$0xff]
  %v2099 = vld [vmem:[%s4 + $0x130] sm:$0xff]
  %v2100 = vld [vmem:[%s4 + $0x138] sm:$0xff]
  %v2101 = vld [vmem:[%s4 + $0x140] sm:$0xff]
  %v2102 = vld [vmem:[%s4 + $0x148] sm:$0xff]
  %v2103 = vld [vmem:[%s4 + $0x150] sm:$0xff]
  %v2104 = vld [vmem:[%s4 + $0x158] sm:$0xff]
  %v2105 = vld [vmem:[%s4 + $0x160] sm:$0xff]
  %v2106 = vld [vmem:[%s4 + $0x168] sm:$0xff]
  %v2107 = vld [vmem:[%s4 + $0x170] sm:$0xff]
  %v2108 = vld [vmem:[%s4 + $0x178] sm:$0xff]
  %v2109 = vld [vmem:[%s4 + $0x180] sm:$0xff]
  %v2110 = vld [vmem:[%s4 + $0x188] sm:$0xff]
  %v2111 = vld [vmem:[%s4 + $0x190] sm:$0xff]
  %v2112 = vld [vmem:[%s4 + $0x198] sm:$0xff]
  %v2113 = vld [vmem:[%s4 + $0x1a0] sm:$0xff]
  %v2114 = vld [vmem:[%s4 + $0x1a8] sm:$0xff]
  %v2115 = vld [vmem:[%s4 + $0x1b0] sm:$0xff]
  %v2116 = vld [vmem:[%s4 + $0x1b8] sm:$0xff]
  %v2117 = vld [vmem:[%s4 + $0x1c0] sm:$0xff]
  %v2118 = vld [vmem:[%s4 + $0x1c8] sm:$0xff]
  %v2119 = vld [vmem:[%s4 + $0x1d0] sm:$0xff]
  %v2120 = vld [vmem:[%s4 + $0x1d8] sm:$0xff]
  %v2121 = vld [vmem:[%s4 + $0x1e0] sm:$0xff]
  %v2122 = vld [vmem:[%s4 + $0x1e8] sm:$0xff]
  %v2123 = vld [vmem:[%s4 + $0x1f0] sm:$0xff]
  %v2124 = vld [vmem:[%s4 + $0x1f8] sm:$0xff]
  %v2125 = vld [vmem:[%s5] sm:$0x3]
  %v2127 = vperm.slane %v2125, 0
  %v2128 = vperm.slane %v2125, 1
  %v2195 = vunpack.c.l.b16 %v2061
  %v2196 = vunpack.c.h.b16 %v2061
  %v2197 = vunpack.c.l.b16 %v2062
  %v2198 = vunpack.c.h.b16 %v2062
  %v2199 = vunpack.c.l.b16 %v2063
  %v2200 = vunpack.c.h.b16 %v2063
  %v2201 = vunpack.c.l.b16 %v2064
  %v2202 = vunpack.c.h.b16 %v2064
  %v2203 = vunpack.c.l.b16 %v2065
  %v2204 = vunpack.c.h.b16 %v2065
  %v2205 = vunpack.c.l.b16 %v2066
  %v2206 = vunpack.c.h.b16 %v2066
  %v2207 = vunpack.c.l.b16 %v2067
  %v2208 = vunpack.c.h.b16 %v2067
  %v2209 = vunpack.c.l.b16 %v2068
  %v2210 = vunpack.c.h.b16 %v2068
  %v2211 = vunpack.c.l.b16 %v2069
  %v2212 = vunpack.c.h.b16 %v2069
  %v2213 = vunpack.c.l.b16 %v2070
  %v2214 = vunpack.c.h.b16 %v2070
  %v2215 = vunpack.c.l.b16 %v2071
  %v2216 = vunpack.c.h.b16 %v2071
  %v2217 = vunpack.c.l.b16 %v2072
  %v2218 = vunpack.c.h.b16 %v2072
  %v2219 = vunpack.c.l.b16 %v2073
  %v2220 = vunpack.c.h.b16 %v2073
  %v2221 = vunpack.c.l.b16 %v2074
  %v2222 = vunpack.c.h.b16 %v2074
  %v2223 = vunpack.c.l.b16 %v2075
  %v2224 = vunpack.c.h.b16 %v2075
  %v2225 = vunpack.c.l.b16 %v2076
  %v2226 = vunpack.c.h.b16 %v2076
  %v2227 = vunpack.c.l.b16 %v2077
  %v2228 = vunpack.c.h.b16 %v2077
  %v2229 = vunpack.c.l.b16 %v2078
  %v2230 = vunpack.c.h.b16 %v2078
  %v2231 = vunpack.c.l.b16 %v2079
  %v2232 = vunpack.c.h.b16 %v2079
  %v2233 = vunpack.c.l.b16 %v2080
  %v2234 = vunpack.c.h.b16 %v2080
  %v2235 = vunpack.c.l.b16 %v2081
  %v2236 = vunpack.c.h.b16 %v2081
  %v2237 = vunpack.c.l.b16 %v2082
  %v2238 = vunpack.c.h.b16 %v2082
  %v2239 = vunpack.c.l.b16 %v2083
  %v2240 = vunpack.c.h.b16 %v2083
  %v2241 = vunpack.c.l.b16 %v2084
  %v2242 = vunpack.c.h.b16 %v2084
  %v2243 = vunpack.c.l.b16 %v2085
  %v2244 = vunpack.c.h.b16 %v2085
  %v2245 = vunpack.c.l.b16 %v2086
  %v2246 = vunpack.c.h.b16 %v2086
  %v2247 = vunpack.c.l.b16 %v2087
  %v2248 = vunpack.c.h.b16 %v2087
  %v2249 = vunpack.c.l.b16 %v2088
  %v2250 = vunpack.c.h.b16 %v2088
  %v2251 = vunpack.c.l.b16 %v2089
  %v2252 = vunpack.c.h.b16 %v2089
  %v2253 = vunpack.c.l.b16 %v2090
  %v2254 = vunpack.c.h.b16 %v2090
  %v2255 = vunpack.c.l.b16 %v2091
  %v2256 = vunpack.c.h.b16 %v2091
  %v2257 = vunpack.c.l.b16 %v2092
  %v2258 = vunpack.c.h.b16 %v2092
  %v2259 = vunpack.c.l.b16 %v2093
  %v2260 = vunpack.c.h.b16 %v2093
  %v2261 = vunpack.c.l.b16 %v2094
  %v2262 = vunpack.c.h.b16 %v2094
  %v2263 = vunpack.c.l.b16 %v2095
  %v2264 = vunpack.c.h.b16 %v2095
  %v2265 = vunpack.c.l.b16 %v2096
  %v2266 = vunpack.c.h.b16 %v2096
  %v2267 = vunpack.c.l.b16 %v2097
  %v2268 = vunpack.c.h.b16 %v2097
  %v2269 = vunpack.c.l.b16 %v2098
  %v2270 = vunpack.c.h.b16 %v2098
  %v2271 = vunpack.c.l.b16 %v2099
  %v2272 = vunpack.c.h.b16 %v2099
  %v2273 = vunpack.c.l.b16 %v2100
  %v2274 = vunpack.c.h.b16 %v2100
  %v2275 = vunpack.c.l.b16 %v2101
  %v2276 = vunpack.c.h.b16 %v2101
  %v2277 = vunpack.c.l.b16 %v2102
  %v2278 = vunpack.c.h.b16 %v2102
  %v2279 = vunpack.c.l.b16 %v2103
  %v2280 = vunpack.c.h.b16 %v2103
  %v2281 = vunpack.c.l.b16 %v2104
  %v2282 = vunpack.c.h.b16 %v2104
  %v2283 = vunpack.c.l.b16 %v2105
  %v2284 = vunpack.c.h.b16 %v2105
  %v2285 = vunpack.c.l.b16 %v2106
  %v2286 = vunpack.c.h.b16 %v2106
  %v2287 = vunpack.c.l.b16 %v2107
  %v2288 = vunpack.c.h.b16 %v2107
  %v2289 = vunpack.c.l.b16 %v2108
  %v2290 = vunpack.c.h.b16 %v2108
  %v2291 = vunpack.c.l.b16 %v2109
  %v2292 = vunpack.c.h.b16 %v2109
  %v2293 = vunpack.c.l.b16 %v2110
  %v2294 = vunpack.c.h.b16 %v2110
  %v2295 = vunpack.c.l.b16 %v2111
  %v2296 = vunpack.c.h.b16 %v2111
  %v2297 = vunpack.c.l.b16 %v2112
  %v2298 = vunpack.c.h.b16 %v2112
  %v2299 = vunpack.c.l.b16 %v2113
  %v2300 = vunpack.c.h.b16 %v2113
  %v2301 = vunpack.c.l.b16 %v2114
  %v2302 = vunpack.c.h.b16 %v2114
  %v2303 = vunpack.c.l.b16 %v2115
  %v2304 = vunpack.c.h.b16 %v2115
  %v2305 = vunpack.c.l.b16 %v2116
  %v2306 = vunpack.c.h.b16 %v2116
  %v2307 = vunpack.c.l.b16 %v2117
  %v2308 = vunpack.c.h.b16 %v2117
  %v2309 = vunpack.c.l.b16 %v2118
  %v2310 = vunpack.c.h.b16 %v2118
  %v2311 = vunpack.c.l.b16 %v2119
  %v2312 = vunpack.c.h.b16 %v2119
  %v2313 = vunpack.c.l.b16 %v2120
  %v2314 = vunpack.c.h.b16 %v2120
  %v2315 = vunpack.c.l.b16 %v2121
  %v2316 = vunpack.c.h.b16 %v2121
  %v2317 = vunpack.c.l.b16 %v2122
  %v2318 = vunpack.c.h.b16 %v2122
  %v2319 = vunpack.c.l.b16 %v2123
  %v2320 = vunpack.c.h.b16 %v2123
  %v2321 = vunpack.c.l.b16 %v2124
  %v2322 = vunpack.c.h.b16 %v2124
  %v2323 = vpack.c.b16 %v2197, %v2195
  %v2324 = vpack.c.b16 %v2198, %v2196
  %v2325 = vpack.c.b16 %v2201, %v2199
  %v2326 = vpack.c.b16 %v2202, %v2200
  %v2327 = vpack.c.b16 %v2205, %v2203
  %v2328 = vpack.c.b16 %v2206, %v2204
  %v2329 = vpack.c.b16 %v2209, %v2207
  %v2330 = vpack.c.b16 %v2210, %v2208
  %v2331 = vpack.c.b16 %v2213, %v2211
  %v2332 = vpack.c.b16 %v2214, %v2212
  %v2333 = vpack.c.b16 %v2217, %v2215
  %v2334 = vpack.c.b16 %v2218, %v2216
  %v2335 = vpack.c.b16 %v2221, %v2219
  %v2336 = vpack.c.b16 %v2222, %v2220
  %v2337 = vpack.c.b16 %v2225, %v2223
  %v2338 = vpack.c.b16 %v2226, %v2224
  %v2339 = vpack.c.b16 %v2229, %v2227
  %v2340 = vpack.c.b16 %v2230, %v2228
  %v2341 = vpack.c.b16 %v2233, %v2231
  %v2342 = vpack.c.b16 %v2234, %v2232
  %v2343 = vpack.c.b16 %v2237, %v2235
  %v2344 = vpack.c.b16 %v2238, %v2236
  %v2345 = vpack.c.b16 %v2241, %v2239
  %v2346 = vpack.c.b16 %v2242, %v2240
  %v2347 = vpack.c.b16 %v2245, %v2243
  %v2348 = vpack.c.b16 %v2246, %v2244
  %v2349 = vpack.c.b16 %v2249, %v2247
  %v2350 = vpack.c.b16 %v2250, %v2248
  %v2351 = vpack.c.b16 %v2253, %v2251
  %v2352 = vpack.c.b16 %v2254, %v2252
  %v2353 = vpack.c.b16 %v2257, %v2255
  %v2354 = vpack.c.b16 %v2258, %v2256
  %v2355 = vpack.c.b16 %v2261, %v2259
  %v2356 = vpack.c.b16 %v2262, %v2260
  %v2357 = vpack.c.b16 %v2265, %v2263
  %v2358 = vpack.c.b16 %v2266, %v2264
  %v2359 = vpack.c.b16 %v2269, %v2267
  %v2360 = vpack.c.b16 %v2270, %v2268
  %v2361 = vpack.c.b16 %v2273, %v2271
  %v2362 = vpack.c.b16 %v2274, %v2272
  %v2363 = vpack.c.b16 %v2277, %v2275
  %v2364 = vpack.c.b16 %v2278, %v2276
  %v2365 = vpack.c.b16 %v2281, %v2279
  %v2366 = vpack.c.b16 %v2282, %v2280
  %v2367 = vpack.c.b16 %v2285, %v2283
  %v2368 = vpack.c.b16 %v2286, %v2284
  %v2369 = vpack.c.b16 %v2289, %v2287
  %v2370 = vpack.c.b16 %v2290, %v2288
  %v2371 = vpack.c.b16 %v2293, %v2291
  %v2372 = vpack.c.b16 %v2294, %v2292
  %v2373 = vpack.c.b16 %v2297, %v2295
  %v2374 = vpack.c.b16 %v2298, %v2296
  %v2375 = vpack.c.b16 %v2301, %v2299
  %v2376 = vpack.c.b16 %v2302, %v2300
  %v2377 = vpack.c.b16 %v2305, %v2303
  %v2378 = vpack.c.b16 %v2306, %v2304
  %v2379 = vpack.c.b16 %v2309, %v2307
  %v2380 = vpack.c.b16 %v2310, %v2308
  %v2381 = vpack.c.b16 %v2313, %v2311
  %v2382 = vpack.c.b16 %v2314, %v2312
  %v2383 = vpack.c.b16 %v2317, %v2315
  %v2384 = vpack.c.b16 %v2318, %v2316
  %v2385 = vpack.c.b16 %v2321, %v2319
  %v2386 = vpack.c.b16 %v2322, %v2320
  %2451 = vmatpush.bf16.msra.mxu0 %v2337
  %2452 = vmatpush.bf16.msra.mxu0 %v2335
  %2453 = vmatpush.bf16.msra.mxu0 %v2333
  %2454 = vmatpush.bf16.msra.mxu0 %v2331
  %2455 = vmatpush.bf16.msra.mxu0 %v2329
  %2456 = vmatpush.bf16.msra.mxu0 %v2327
  %2457 = vmatpush.bf16.msra.mxu0 %v2325
  %2458 = vmatpush.bf16.msra.mxu0 %v2323
  %2459 = vmatmul.bf16.gmra.mxu0 %v2057
  %v2460 = vpop.f32.mrf.mxu0
  %v2461 = vadd.f32 %v2127, %v2460
  %v2462 = vpop.f32.mrf.mxu0
  %2463 = vdwg.mxu0
  %2464 = vmatpush.bf16.msra.mxu0 %v2353
  %2465 = vmatpush.bf16.msra.mxu0 %v2351
  %2466 = vmatpush.bf16.msra.mxu0 %v2349
  %2467 = vmatpush.bf16.msra.mxu0 %v2347
  %2468 = vmatpush.bf16.msra.mxu0 %v2345
  %2469 = vmatpush.bf16.msra.mxu0 %v2343
  %2470 = vmatpush.bf16.msra.mxu0 %v2341
  %2471 = vmatpush.bf16.msra.mxu0 %v2339
  %2472 = vmatmul.bf16.gmra.mxu0 %v2058
  %v2473 = vpop.f32.mrf.mxu0
  %v2474 = vadd.f32 %v2461, %v2473
  %v2475 = vpop.f32.mrf.mxu0
  %2476 = vdwg.mxu0
  %2477 = vmatpush.bf16.msra.mxu0 %v2369
  %2478 = vmatpush.bf16.msra.mxu0 %v2367
  %2479 = vmatpush.bf16.msra.mxu0 %v2365
  %2480 = vmatpush.bf16.msra.mxu0 %v2363
  %2481 = vmatpush.bf16.msra.mxu0 %v2361
  %2482 = vmatpush.bf16.msra.mxu0 %v2359
  %2483 = vmatpush.bf16.msra.mxu0 %v2357
  %2484 = vmatpush.bf16.msra.mxu0 %v2355
  %2485 = vmatmul.bf16.gmra.mxu0 %v2059
  %v2486 = vpop.f32.mrf.mxu0
  %v2487 = vadd.f32 %v2474, %v2486
  %v2488 = vpop.f32.mrf.mxu0
  %2489 = vdwg.mxu0
  %2490 = vmatpush.bf16.msra.mxu0 %v2385
  %2491 = vmatpush.bf16.msra.mxu0 %v2383
  %2492 = vmatpush.bf16.msra.mxu0 %v2381
  %2493 = vmatpush.bf16.msra.mxu0 %v2379
  %2494 = vmatpush.bf16.msra.mxu0 %v2377
  %2495 = vmatpush.bf16.msra.mxu0 %v2375
  %2496 = vmatpush.bf16.msra.mxu0 %v2373
  %2497 = vmatpush.bf16.msra.mxu0 %v2371
  %2498 = vmatmul.bf16.gmra.mxu0 %v2060
  %v2499 = vpop.f32.mrf.mxu0
  %v2500 = vadd.f32 %v2487, %v2499
  %v2501 = vpop.f32.mrf.mxu0
  %2502 = vdwg.mxu0
  %2503 = vmatpush.bf16.msra.mxu0 %v2338
  %2504 = vmatpush.bf16.msra.mxu0 %v2336
  %2505 = vmatpush.bf16.msra.mxu0 %v2334
  %2506 = vmatpush.bf16.msra.mxu0 %v2332
  %2507 = vmatpush.bf16.msra.mxu0 %v2330
  %2508 = vmatpush.bf16.msra.mxu0 %v2328
  %2509 = vmatpush.bf16.msra.mxu0 %v2326
  %2510 = vmatpush.bf16.msra.mxu0 %v2324
  %2511 = vmatmul.bf16.gmra.mxu0 %v2057
  %v2512 = vpop.f32.mrf.mxu0
  %v2513 = vadd.f32 %v2128, %v2512
  %v2514 = vpop.f32.mrf.mxu0
  %2515 = vdwg.mxu0
  %2516 = vmatpush.bf16.msra.mxu0 %v2354
  %2517 = vmatpush.bf16.msra.mxu0 %v2352
  %2518 = vmatpush.bf16.msra.mxu0 %v2350
  %2519 = vmatpush.bf16.msra.mxu0 %v2348
  %2520 = vmatpush.bf16.msra.mxu0 %v2346
  %2521 = vmatpush.bf16.msra.mxu0 %v2344
  %2522 = vmatpush.bf16.msra.mxu0 %v2342
  %2523 = vmatpush.bf16.msra.mxu0 %v2340
  %2524 = vmatmul.bf16.gmra.mxu0 %v2058
  %v2525 = vpop.f32.mrf.mxu0
  %v2526 = vadd.f32 %v2513, %v2525
  %v2527 = vpop.f32.mrf.mxu0
  %2528 = vdwg.mxu0
  %2529 = vmatpush.bf16.msra.mxu0 %v2370
  %2530 = vmatpush.bf16.msra.mxu0 %v2368
  %2531 = vmatpush.bf16.msra.mxu0 %v2366
  %2532 = vmatpush.bf16.msra.mxu0 %v2364
  %2533 = vmatpush.bf16.msra.mxu0 %v2362
  %2534 = vmatpush.bf16.msra.mxu0 %v2360
  %2535 = vmatpush.bf16.msra.mxu0 %v2358
  %2536 = vmatpush.bf16.msra.mxu0 %v2356
  %2537 = vmatmul.bf16.gmra.mxu0 %v2059
  %v2538 = vpop.f32.mrf.mxu0
  %v2539 = vadd.f32 %v2526, %v2538
  %v2540 = vpop.f32.mrf.mxu0
  %2541 = vdwg.mxu0
  %2542 = vmatpush.bf16.msra.mxu0 %v2386
  %2543 = vmatpush.bf16.msra.mxu0 %v2384
  %2544 = vmatpush.bf16.msra.mxu0 %v2382
  %2545 = vmatpush.bf16.msra.mxu0 %v2380
  %2546 = vmatpush.bf16.msra.mxu0 %v2378
  %2547 = vmatpush.bf16.msra.mxu0 %v2376
  %2548 = vmatpush.bf16.msra.mxu0 %v2374
  %2549 = vmatpush.bf16.msra.mxu0 %v2372
  %2550 = vmatmul.bf16.gmra.mxu0 %v2060
  %v2551 = vpop.f32.mrf.mxu0
  %v2552 = vadd.f32 %v2539, %v2551
  %v2553 = vpop.f32.mrf.mxu0
  %2554 = vdwg.mxu0
  %v2555 = vmax.f32 %v2500, 0.0
  %v2556 = vmax.f32 %v2552, 0.0
  %v2557 = vpack.c.bf16 %v2555, %v2555
  %v2558 = vpack.c.bf16 %v2556, %v2556
  %v2559 = vld [vmem:[%s6] sm:$0xf]
  %v2560 = vld [vmem:[%s6 + $0x4] sm:$0xf]
  %v2561 = vld [vmem:[%s6 + $0x8] sm:$0xf]
  %v2562 = vld [vmem:[%s6 + $0xc] sm:$0xf]
  %v2563 = vld [vmem:[%s6 + $0x10] sm:$0xf]
  %v2564 = vld [vmem:[%s6 + $0x14] sm:$0xf]
  %v2565 = vld [vmem:[%s6 + $0x18] sm:$0xf]
  %v2566 = vld [vmem:[%s6 + $0x1c] sm:$0xf]
  %v2567 = vld [vmem:[%s6 + $0x20] sm:$0xf]
  %v2568 = vld [vmem:[%s6 + $0x24] sm:$0xf]
  %v2569 = vld [vmem:[%s6 + $0x28] sm:$0xf]
  %v2570 = vld [vmem:[%s6 + $0x2c] sm:$0xf]
  %v2571 = vld [vmem:[%s6 + $0x30] sm:$0xf]
  %v2572 = vld [vmem:[%s6 + $0x34] sm:$0xf]
  %v2573 = vld [vmem:[%s6 + $0x38] sm:$0xf]
  %v2574 = vld [vmem:[%s6 + $0x3c] sm:$0xf]
  %v2575 = vld [vmem:[%s6 + $0x40] sm:$0xf]
  %v2576 = vld [vmem:[%s6 + $0x44] sm:$0xf]
  %v2577 = vld [vmem:[%s6 + $0x48] sm:$0xf]
  %v2578 = vld [vmem:[%s6 + $0x4c] sm:$0xf]
  %v2579 = vld [vmem:[%s6 + $0x50] sm:$0xf]
  %v2580 = vld [vmem:[%s6 + $0x54] sm:$0xf]
  %v2581 = vld [vmem:[%s6 + $0x58] sm:$0xf]
  %v2582 = vld [vmem:[%s6 + $0x5c] sm:$0xf]
  %v2583 = vld [vmem:[%s6 + $0x60] sm:$0xf]
  %v2584 = vld [vmem:[%s6 + $0x64] sm:$0xf]
  %v2585 = vld [vmem:[%s6 + $0x68] sm:$0xf]
  %v2586 = vld [vmem:[%s6 + $0x6c] sm:$0xf]
  %v2587 = vld [vmem:[%s6 + $0x70] sm:$0xf]
  %v2588 = vld [vmem:[%s6 + $0x74] sm:$0xf]
  %v2589 = vld [vmem:[%s6 + $0x78] sm:$0xf]
  %v2590 = vld [vmem:[%s6 + $0x7c] sm:$0xf]
  %v2591 = vld [vmem:[%s7] sm:$0x1]
  %v2593 = vperm.slane %v2591, 0
  %v2627 = vunpack.c.l.b16 %v2559
  %v2628 = vunpack.c.l.b16 %v2560
  %v2629 = vunpack.c.l.b16 %v2561
  %v2630 = vunpack.c.l.b16 %v2562
  %v2631 = vunpack.c.l.b16 %v2563
  %v2632 = vunpack.c.l.b16 %v2564
  %v2633 = vunpack.c.l.b16 %v2565
  %v2634 = vunpack.c.l.b16 %v2566
  %v2635 = vunpack.c.l.b16 %v2567
  %v2636 = vunpack.c.l.b16 %v2568
  %v2637 = vunpack.c.l.b16 %v2569
  %v2638 = vunpack.c.l.b16 %v2570
  %v2639 = vunpack.c.l.b16 %v2571
  %v2640 = vunpack.c.l.b16 %v2572
  %v2641 = vunpack.c.l.b16 %v2573
  %v2642 = vunpack.c.l.b16 %v2574
  %v2643 = vunpack.c.l.b16 %v2575
  %v2644 = vunpack.c.l.b16 %v2576
  %v2645 = vunpack.c.l.b16 %v2577
  %v2646 = vunpack.c.l.b16 %v2578
  %v2647 = vunpack.c.l.b16 %v2579
  %v2648 = vunpack.c.l.b16 %v2580
  %v2649 = vunpack.c.l.b16 %v2581
  %v2650 = vunpack.c.l.b16 %v2582
  %v2651 = vunpack.c.l.b16 %v2583
  %v2652 = vunpack.c.l.b16 %v2584
  %v2653 = vunpack.c.l.b16 %v2585
  %v2654 = vunpack.c.l.b16 %v2586
  %v2655 = vunpack.c.l.b16 %v2587
  %v2656 = vunpack.c.l.b16 %v2588
  %v2657 = vunpack.c.l.b16 %v2589
  %v2658 = vunpack.c.l.b16 %v2590
  %v2659 = vpack.c.b16 %v2628, %v2627
  %v2660 = vpack.c.b16 %v2630, %v2629
  %v2661 = vpack.c.b16 %v2632, %v2631
  %v2662 = vpack.c.b16 %v2634, %v2633
  %v2663 = vpack.c.b16 %v2636, %v2635
  %v2664 = vpack.c.b16 %v2638, %v2637
  %v2665 = vpack.c.b16 %v2640, %v2639
  %v2666 = vpack.c.b16 %v2642, %v2641
  %v2667 = vpack.c.b16 %v2644, %v2643
  %v2668 = vpack.c.b16 %v2646, %v2645
  %v2669 = vpack.c.b16 %v2648, %v2647
  %v2670 = vpack.c.b16 %v2650, %v2649
  %v2671 = vpack.c.b16 %v2652, %v2651
  %v2672 = vpack.c.b16 %v2654, %v2653
  %v2673 = vpack.c.b16 %v2656, %v2655
  %v2674 = vpack.c.b16 %v2658, %v2657
  %2691 = vmatpush.bf16.msra.mxu0 %v2666
  %2692 = vmatpush.bf16.msra.mxu0 %v2665
  %2693 = vmatpush.bf16.msra.mxu0 %v2664
  %2694 = vmatpush.bf16.msra.mxu0 %v2663
  %2695 = vmatpush.bf16.msra.mxu0 %v2662
  %2696 = vmatpush.bf16.msra.mxu0 %v2661
  %2697 = vmatpush.bf16.msra.mxu0 %v2660
  %2698 = vmatpush.bf16.msra.mxu0 %v2659
  %2699 = vmatmul.bf16.gmra.mxu0 %v2557
  %v2700 = vpop.f32.mrf.mxu0
  %v2701 = vadd.f32 %v2593, %v2700
  %v2702 = vpop.f32.mrf.mxu0
  %2703 = vdwg.mxu0
  %2704 = vmatpush.bf16.msra.mxu0 %v2674
  %2705 = vmatpush.bf16.msra.mxu0 %v2673
  %2706 = vmatpush.bf16.msra.mxu0 %v2672
  %2707 = vmatpush.bf16.msra.mxu0 %v2671
  %2708 = vmatpush.bf16.msra.mxu0 %v2670
  %2709 = vmatpush.bf16.msra.mxu0 %v2669
  %2710 = vmatpush.bf16.msra.mxu0 %v2668
  %2711 = vmatpush.bf16.msra.mxu0 %v2667
  %2712 = vmatmul.bf16.gmra.mxu0 %v2558
  %v2713 = vpop.f32.mrf.mxu0
  %v2714 = vadd.f32 %v2701, %v2713
  %v2715 = vpop.f32.mrf.mxu0
  %2716 = vdwg.mxu0
  %vm2717 = vcmask 66560
  %2718 = vst.msk [vmem:[%s8] sm:$0x3] %vm2717, %v2714
  // Predicated region
  $region34: #{stn3d_forward.3} parent=0 // pred_check
    _
  $region35: #{stn3d_forward.3} parent=0 // pred_check_branch
    %2720 = sbr.rel (0) target = $region37
  $region36: #{stn3d_forward.3} parent=0 // pred_region
    _
  $region37: #{stn3d_forward.3} parent=0 // pred_fallthru
    _
  // Predicated region
  $region38: #{stn3d_forward.3} parent=0 // pred_check
    _
  $region39: #{stn3d_forward.3} parent=0 // pred_check_branch
    %2722 = sbr.rel (0) target = $region41
  $region40: #{stn3d_forward.3} parent=0 // pred_region
    _
  $region41: #{stn3d_forward.3} parent=0 // pred_fallthru
    _

</llo_original>
